<compile_context>
chip_gen: v7x
topology: tpu7x:2x2x1
jax: 0.10.0
libtpu: 0.0.40
codegen_flags: <defaults>
</compile_context>

<pallas_src>
import numpy as np
import jax
import jax.numpy as jnp
from jax.experimental import pallas as pl
from jax.experimental.pallas import tpu as pltpu

# ----------------------------- config (args) ---------------------------------
NUM_FILTERS = 16      # args.num_filters (hid_dim = z_dim)
NUM_CLASSES = 5       # args.num_classes
UPDATE_LR   = 0.01    # args.update_lr
NUM_UPDATES = 3       # args.num_updates (args.train = True)
IMG_SIZE    = 16      # 16 -> 8 -> 4 -> 2 -> 1 after 4 pools
FINAL_SIZE  = NUM_FILTERS * 1 * 1
BN_EPS      = 1e-5
HEAD_PAD    = 128     # logits head padded to a lane-dense 128-wide output

_HS   = [IMG_SIZE, IMG_SIZE // 2, IMG_SIZE // 4, IMG_SIZE // 8]   # 16, 8, 4, 2
_CINS = [3, NUM_FILTERS, NUM_FILTERS, NUM_FILTERS]


def _rup8(n):
    return (n + 7) // 8 * 8


# -------------------- static layout + 0/1 helper slabs (trace-time numpy) -----
def _layout(B):
    C = NUM_FILTERS
    r2 = [B * (h + 2) for h in _HS]          # padded row counts per block
    wc = [h * C for h in _HS]                # lane widths per block

    # banded conv-weight slab row offsets (all row counts already multiples of 8)
    bw_rows = [3 * _HS[k] * _CINS[k] for k in range(4)]
    bw_off = np.cumsum([0] + bw_rows)[:4].tolist()
    bw_tot = int(sum(bw_rows))

    # selection slab: RS_0..2 (row-select + next-block scatter fused), RA_3, SESO_0..3
    sel_rows = [r2[1], r2[2], r2[3], B] + wc
    sec_pad = [_rup8(r) for r in sel_rows]
    sel_off = np.cumsum([0] + sec_pad)[:8].tolist()
    sel_tot = int(sum(sec_pad))

    slab = np.zeros((sel_tot, 256), np.float32)
    # RS_k: zm row b*(H+2)+2h+1  ->  next-block padded row b*(Hn+2)+h+1
    for k in range(3):
        H, Hn = _HS[k], _HS[k + 1]
        off = sel_off[k]
        for b in range(B):
            for h in range(Hn):
                slab[off + b * (Hn + 2) + h + 1, b * (H + 2) + 2 * h + 1] = 1.0
    # RA_3: zm row b*4+1 -> feature row b
    off = sel_off[3]
    for b in range(B):
        slab[off + b, b * (_HS[3] + 2) + 1] = 1.0
    # SESO_k = [SE | SO]: even / odd x-column blocks (2x2 pool, x axis)
    for k in range(4):
        W = _HS[k]
        off = sel_off[4 + k]
        half = W * C // 2
        for xo in range(W // 2):
            for c in range(C):
                slab[off + (2 * xo) * C + c, xo * C + c] = 1.0
                slab[off + (2 * xo + 1) * C + c, half + xo * C + c] = 1.0

    # BN row-validity masks (valid padded rows are p = 1..H within each batch block)
    mask = np.zeros((r2[0], 8), np.float32)
    for k in range(4):
        H = _HS[k]
        for r in range(r2[k]):
            if 1 <= (r % (H + 2)) <= H:
                mask[r, k] = 1.0

    return dict(r2=r2, wc=wc, bw_rows=bw_rows, bw_off=bw_off, bw_tot=bw_tot,
                sel_rows=sel_rows, sel_off=sel_off,
                sel_slab=slab, mask_slab=mask)


def _banded_conv_weights(w, W):
    """Conv weight [Cout, Cin, 3, 3] -> stacked block-banded [3*W*Cin, W*Cout] (bf16).

    Row block dy holds BW_dy with BW_dy[x_in*Cin+ci, x_out*Cout+co] =
    w[co, ci, dy, x_in - x_out + 1] (zero outside the band), so the 3x3 conv
    (pad=1) becomes  Y = [op_0 | op_1 | op_2] @ BW  with op_dy the dy-row-shifted input.
    """
    cout, cin = w.shape[0], w.shape[1]
    D = np.stack([np.eye(W, k=1 - dx) for dx in range(3)]).astype(np.float32)
    bw = jnp.einsum('xab,oiyx->yaibo', jnp.asarray(D), w.astype(jnp.float32))
    return bw.reshape(3 * W * cin, W * cout).astype(jnp.bfloat16)


# ------------------------------ fused Pallas kernel ---------------------------
def _make_fused_kernel(B, lay):
    C = NUM_FILTERS

    def kernel(opcat0_ref, bw_ref, gb_ref, sel_ref, mask_ref, wlb_ref, out_ref):
        gb = gb_ref[...]          # [8, 256]  f32 : rows 2k gamma_l, 2k+1 beta_l
        masks = mask_ref[...]     # [R2_0, 8] f32 : column k = valid-row mask of block k

        opcat = opcat0_ref[...]   # [R2_0, 3*16*3] bf16 (pre-concatenated in wrapper)
        pooled = None
        for k in range(4):
            H = _HS[k]
            cin = _CINS[k]
            Wc = H * C
            R2 = B * (H + 2)
            n = float(B * H * H)

            # ---- conv3x3 (pad=1): ONE K-stacked bf16 GEMM (bias omitted: cancels in BN) ----
            bw = bw_ref[pl.ds(lay['bw_off'][k], 3 * H * cin), pl.ds(0, Wc)]
            y = jnp.dot(opcat, bw, preferred_element_type=jnp.float32)     # [R2, Wc] f32

            # ---- BN stats: masked sums (VPU) + lane butterfly reduction (no MXU, f32) ----
            m = masks[0:R2, k:k + 1]
            ymsk = y * m
            sq = jnp.concatenate(
                [jnp.sum(ymsk, axis=0, keepdims=True),
                 jnp.sum(ymsk * y, axis=0, keepdims=True)], axis=0)        # [2, Wc]
            sh = C
            while sh < Wc:   # after log2(W) shift-adds every lane x*C+c holds the channel total
                sq = sq + jnp.concatenate([sq[:, Wc - sh:], sq[:, :Wc - sh]], axis=1)
                sh *= 2
            mean_l = sq[0:1, :] * (1.0 / n)
            msq_l = sq[1:2, :] * (1.0 / n)
            rstd_l = jax.lax.rsqrt(msq_l - mean_l * mean_l + BN_EPS)
            scale_l = gb[2 * k:2 * k + 1, 0:Wc] * rstd_l
            shift_l = gb[2 * k + 1:2 * k + 2, 0:Wc] - mean_l * scale_l

            # ---- BN affine + ReLU, then 2x2 max pool ----
            z = jnp.maximum(y * scale_l + shift_l, 0.0)
            zm = jnp.maximum(z[:-1, :], z[1:, :]).astype(jnp.bfloat16)     # y-pair max (VPU)

            # row-select + scatter into next block's padded layout: ONE bf16 GEMM
            rs = sel_ref[pl.ds(lay['sel_off'][k], lay['sel_rows'][k]), pl.ds(0, R2 - 1)]
            selv = jnp.dot(rs, zm, preferred_element_type=jnp.float32)

            # x-pair pool: ONE [SE|SO] bf16 GEMM + lane-halves max
            seso = sel_ref[pl.ds(lay['sel_off'][4 + k], Wc), pl.ds(0, Wc)]
            ps = jnp.dot(selv.astype(jnp.bfloat16), seso,
                         preferred_element_type=jnp.float32)
            pooled = jnp.maximum(ps[:, :Wc // 2], ps[:, Wc // 2:])

            if k < 3:
                # build next block's lane-concatenated conv operand [op_0 | op_1 | op_2]
                # (zero re-pad + dy row shifts done with cheap sublane shifts, no GEMM)
                pb = pooled.astype(jnp.bfloat16)
                zrow = jnp.zeros((1, Wc // 2), jnp.bfloat16)
                op0 = jnp.concatenate([zrow, pb[:-1, :]], axis=0)
                op2 = jnp.concatenate([pb[1:, :], zrow], axis=0)
                opcat = jnp.concatenate([op0, pb, op2], axis=1)

        # ---- linear head (f32; output padded to 128 lanes, sliced in wrapper) ----
        wl = wlb_ref[pl.ds(0, FINAL_SIZE), :]
        bl = wlb_ref[pl.ds(FINAL_SIZE, 1), :]
        out_ref[...] = jnp.dot(pooled, wl, preferred_element_type=jnp.float32) + bl

    return kernel


def forward_pallas(params, x_nchw):
    """Conv_Standard.functional_forward (training-mode BN): one fused Pallas call."""
    B = int(x_nchw.shape[0])
    C = NUM_FILTERS
    lay = _layout(B)

    # ---- block-0 conv operand, pre-concatenated along lanes in the wrapper ----
    H = IMG_SIZE
    x = jnp.transpose(x_nchw, (0, 2, 3, 1)).astype(jnp.float32)        # NCHW -> NHWC
    x = jnp.pad(x, ((0, 0), (1, 1), (0, 0), (0, 0)))                   # zero-pad H
    l0 = x.reshape(B * (H + 2), H * 3)
    l0p = jnp.pad(l0, ((1, 1), (0, 0)))                                # guard rows
    R2 = B * (H + 2)
    opcat0 = jnp.concatenate([l0p[0:R2], l0p[1:R2 + 1], l0p[2:R2 + 2]],
                             axis=1).astype(jnp.bfloat16)              # [R2, 144]

    # ---- banded conv weights: one bf16 slab ----
    bw_slab = jnp.zeros((lay['bw_tot'], 256), jnp.bfloat16)
    for k in range(4):
        bwk = _banded_conv_weights(params[f'net.{k}.0.weight'], _HS[k])
        bw_slab = bw_slab.at[lay['bw_off'][k]:lay['bw_off'][k] + bwk.shape[0],
                             0:bwk.shape[1]].set(bwk)

    # ---- BN gamma/beta pre-broadcast to the x*C+c lane layout (one tiny f32 slab) ----
    gb = jnp.zeros((8, 256), jnp.float32)
    for k in range(4):
        Wc = _HS[k] * C
        gb = gb.at[2 * k, 0:Wc].set(
            jnp.tile(params[f'net.{k}.1.weight'].astype(jnp.float32), _HS[k]))
        gb = gb.at[2 * k + 1, 0:Wc].set(
            jnp.tile(params[f'net.{k}.1.bias'].astype(jnp.float32), _HS[k]))

    sel_slab = jnp.asarray(lay['sel_slab'], jnp.bfloat16)    # 0/1 matrices: exact in bf16
    mask_slab = jnp.asarray(lay['mask_slab'], jnp.float32)

    wlb = jnp.zeros((FINAL_SIZE + 1, HEAD_PAD), jnp.float32)
    wlb = wlb.at[:FINAL_SIZE, :NUM_CLASSES].set(params['logits.weight'].T.astype(jnp.float32))
    wlb = wlb.at[FINAL_SIZE, :NUM_CLASSES].set(params['logits.bias'].astype(jnp.float32))

    out = pl.pallas_call(
        _make_fused_kernel(B, lay),
        out_shape=jax.ShapeDtypeStruct((B, HEAD_PAD), jnp.float32),
        in_specs=[pl.BlockSpec(memory_space=pltpu.MemorySpace.VMEM)] * 6,
        out_specs=pl.BlockSpec(memory_space=pltpu.MemorySpace.VMEM),
        compiler_params=pltpu.CompilerParams(vmem_limit_bytes=16 * 1024 * 1024),
        cost_estimate=pl.CostEstimate(flops=60_000_000, transcendentals=4096,
                                      bytes_accessed=2 * 1024 * 1024),
    )(opcat0, bw_slab, gb, sel_slab, mask_slab, wlb)
    return out[:, :NUM_CLASSES]


# ---------------------- pure-JAX mirror (for autodiff / checks) ----------------
def _im2col(x):  # x: [B, H, W, C] NHWC  ->  [B*H*W, 9*C]
    b, h, w, c = x.shape
    xp = jnp.pad(x, ((0, 0), (1, 1), (1, 1), (0, 0)))
    cols = [xp[:, dy:dy + h, dx:dx + w, :] for dy in range(3) for dx in range(3)]
    pat = jnp.stack(cols, axis=3)                       # [B, H, W, 9, C]
    return pat.reshape(b * h * w, 9 * c)


def _maxpool2(x):  # [B, H, W, C] -> [B, H//2, W//2, C]
    b, h, w, c = x.shape
    ho, wo = h // 2, w // 2
    x = x[:, :2 * ho, :2 * wo, :].reshape(b, ho, 2, wo, 2, c)
    return jnp.max(x, axis=(2, 4))


def forward_ref(params, x_nchw):
    """Numerically faithful pure-JAX mirror of Conv_Standard.functional_forward."""
    x = jnp.transpose(x_nchw, (0, 2, 3, 1)).astype(jnp.float32)
    for blk in range(4):
        w = params[f'net.{blk}.0.weight']    # [Cout, Cin, 3, 3]
        b = params[f'net.{blk}.0.bias']
        g = params[f'net.{blk}.1.weight']
        be = params[f'net.{blk}.1.bias']
        bsz, h, ww, cin = x.shape
        cout = w.shape[0]
        patches = _im2col(x)
        w2 = jnp.transpose(w, (2, 3, 1, 0)).reshape(9 * cin, cout)
        y = patches @ w2 + b.reshape(1, -1)
        mean = jnp.mean(y, axis=0, keepdims=True)
        var = jnp.mean(jnp.square(y - mean), axis=0, keepdims=True)
        y = (y - mean) * jax.lax.rsqrt(var + BN_EPS)
        y = jnp.maximum(y * g.reshape(1, -1) + be.reshape(1, -1), 0.0)
        x = _maxpool2(y.reshape(bsz, h, ww, cout))
    bsz = x.shape[0]
    feat = jnp.transpose(x, (0, 3, 1, 2)).reshape(bsz, -1)   # matches torch .view on NCHW
    return feat @ params['logits.weight'].T + params['logits.bias'].reshape(1, -1)


def cross_entropy(logits, labels):   # nn.CrossEntropyLoss (mean reduction)
    lse = jax.nn.logsumexp(logits, axis=1)
    n = logits.shape[0]
    return jnp.mean(lse - logits[jnp.arange(n), labels])


# ------------------------------- MAML.forward --------------------------------
@jax.jit
def maml_forward(params, xs, ys, xq, yq):
    # inner-loop adaptation (autodiff through the pure-JAX mirror)
    def inner_loss(p):
        return cross_entropy(forward_ref(p, xs), ys)

    fast = dict(params)
    for _ in range(NUM_UPDATES):
        grads = jax.grad(inner_loss)(fast)
        fast = {k: fast[k] - UPDATE_LR * grads[k] for k in fast}

    # query pass with adapted weights: fully fused Pallas kernel
    query_logits = forward_pallas(fast, xq)
    query_loss = cross_entropy(query_logits, yq)
    y_pred = jnp.argmax(jax.nn.softmax(query_logits, axis=1), axis=1)
    query_acc = jnp.sum(y_pred == yq).astype(jnp.float32) / yq.shape[0]
    return query_loss, query_acc, query_logits, fast


# ------------------------------ parameter init --------------------------------
def init_params(key):
    params = {}
    cin = 3
    for blk in range(4):
        key, k1 = jax.random.split(key)
        params[f'net.{blk}.0.weight'] = 0.1 * jax.random.normal(
            k1, (NUM_FILTERS, cin, 3, 3), jnp.float32)
        params[f'net.{blk}.0.bias'] = jnp.zeros((NUM_FILTERS,), jnp.float32)
        params[f'net.{blk}.1.weight'] = jnp.ones((NUM_FILTERS,), jnp.float32)
        params[f'net.{blk}.1.bias'] = jnp.zeros((NUM_FILTERS,), jnp.float32)
        cin = NUM_FILTERS
    key, k1 = jax.random.split(key)
    params['logits.weight'] = 0.1 * jax.random.normal(
        k1, (NUM_CLASSES, FINAL_SIZE), jnp.float32)
    params['logits.bias'] = jnp.zeros((NUM_CLASSES,), jnp.float32)
    return params


# ----------------------------------- main -------------------------------------
if __name__ == "__main__":
    key = jax.random.PRNGKey(0)
    key, kp, ks, kq = jax.random.split(key, 4)

    params = init_params(kp)

    # 5-way, 1-shot support / 2-query episode
    xs = jax.random.normal(ks, (5, 3, IMG_SIZE, IMG_SIZE), jnp.float32)
    ys = jnp.arange(5, dtype=jnp.int32)
    xq = jax.random.normal(kq, (10, 3, IMG_SIZE, IMG_SIZE), jnp.float32)
    yq = jnp.tile(jnp.arange(5, dtype=jnp.int32), 2)

    query_loss, query_acc, query_logits, fast = maml_forward(params, xs, ys, xq, yq)
    jax.block_until_ready((query_loss, query_acc, query_logits))

    # sanity: fused Pallas query logits match the pure-JAX mirror with the same adapted
    # weights (bf16 MXU operands on conv/selection paths -> loose tolerance).
    ref_logits = forward_ref(fast, xq)
    max_diff = float(jnp.max(jnp.abs(query_logits - ref_logits)))
    assert max_diff < 1e-1, f"Pallas/ref logits mismatch: {max_diff}"

    print("KERNEL_OK")
</pallas_src>

<mosaic_0001>
module attributes {stable_mosaic.version = 11 : i64} {
  func.func @kernel(%arg0: memref<180x144xbf16, #tpu.memory_space<vmem>>, %arg1: memref<816x256xbf16, #tpu.memory_space<vmem>>, %arg2: memref<8x256xf32, #tpu.memory_space<vmem>>, %arg3: memref<704x256xbf16, #tpu.memory_space<vmem>>, %arg4: memref<180x8xf32, #tpu.memory_space<vmem>>, %arg5: memref<17x128xf32, #tpu.memory_space<vmem>>, %arg6: memref<10x128xf32, #tpu.memory_space<vmem>>) attributes {dimension_semantics = [], scalar_prefetch = 0 : i64, scratch_operands = 0 : i64, tpu.core_type = #tpu.core_type<tc>} {
    %c0 = arith.constant 0 : index
    %c0_0 = arith.constant 0 : index
    %0 = vector.load %arg2[%c0, %c0_0] : memref<8x256xf32, #tpu.memory_space<vmem>>, vector<8x256xf32>
    %c0_1 = arith.constant 0 : index
    %c0_2 = arith.constant 0 : index
    %1 = vector.load %arg4[%c0_1, %c0_2] : memref<180x8xf32, #tpu.memory_space<vmem>>, vector<180x8xf32>
    %c0_3 = arith.constant 0 : index
    %c0_4 = arith.constant 0 : index
    %2 = vector.load %arg0[%c0_3, %c0_4] : memref<180x144xbf16, #tpu.memory_space<vmem>>, vector<180x144xbf16>
    %c0_5 = arith.constant 0 : index
    %c0_6 = arith.constant 0 : index
    %3 = vector.load %arg1[%c0_5, %c0_6] : memref<816x256xbf16, #tpu.memory_space<vmem>>, vector<144x256xbf16>
    %cst = arith.constant dense<0.000000e+00> : vector<180x256xf32>
    %4 = tpu.matmul %2, %3, %cst {dimension_numbers = #tpu.dot_dimension_numbers<[1], [0], [0], [1], [0, 0, 1, 1], [], []>} : vector<180x144xbf16>, vector<144x256xbf16>, vector<180x256xf32> -> vector<180x256xf32>
    %5 = vector.extract_strided_slice %1 {offsets = [0, 0], sizes = [180, 1], strides = [1, 1]} : vector<180x8xf32> to vector<180x1xf32>
    %6 = vector.broadcast %5 : vector<180x1xf32> to vector<180x256xf32>
    %7 = arith.mulf %4, %6 : vector<180x256xf32>
    %cst_7 = arith.constant dense<0.000000e+00> : vector<256xf32>
    %8 = vector.multi_reduction <add>, %7, %cst_7 [0] : vector<180x256xf32> to vector<256xf32>
    %9 = vector.shape_cast %8 : vector<256xf32> to vector<1x256xf32>
    %10 = arith.mulf %7, %4 : vector<180x256xf32>
    %cst_8 = arith.constant dense<0.000000e+00> : vector<256xf32>
    %11 = vector.multi_reduction <add>, %10, %cst_8 [0] : vector<180x256xf32> to vector<256xf32>
    %12 = vector.shape_cast %11 : vector<256xf32> to vector<1x256xf32>
    %13 = tpu.concatenate %9, %12 in 0 : vector<1x256xf32>, vector<1x256xf32> -> vector<2x256xf32>
    %14 = vector.extract_strided_slice %13 {offsets = [0, 240], sizes = [2, 16], strides = [1, 1]} : vector<2x256xf32> to vector<2x16xf32>
    %15 = vector.extract_strided_slice %13 {offsets = [0, 0], sizes = [2, 240], strides = [1, 1]} : vector<2x256xf32> to vector<2x240xf32>
    %16 = tpu.concatenate %14, %15 in 1 : vector<2x16xf32>, vector<2x240xf32> -> vector<2x256xf32>
    %17 = arith.addf %13, %16 : vector<2x256xf32>
    %18 = vector.extract_strided_slice %17 {offsets = [0, 224], sizes = [2, 32], strides = [1, 1]} : vector<2x256xf32> to vector<2x32xf32>
    %19 = vector.extract_strided_slice %17 {offsets = [0, 0], sizes = [2, 224], strides = [1, 1]} : vector<2x256xf32> to vector<2x224xf32>
    %20 = tpu.concatenate %18, %19 in 1 : vector<2x32xf32>, vector<2x224xf32> -> vector<2x256xf32>
    %21 = arith.addf %17, %20 : vector<2x256xf32>
    %22 = vector.extract_strided_slice %21 {offsets = [0, 192], sizes = [2, 64], strides = [1, 1]} : vector<2x256xf32> to vector<2x64xf32>
    %23 = vector.extract_strided_slice %21 {offsets = [0, 0], sizes = [2, 192], strides = [1, 1]} : vector<2x256xf32> to vector<2x192xf32>
    %24 = tpu.concatenate %22, %23 in 1 : vector<2x64xf32>, vector<2x192xf32> -> vector<2x256xf32>
    %25 = arith.addf %21, %24 : vector<2x256xf32>
    %26 = vector.extract_strided_slice %25 {offsets = [0, 128], sizes = [2, 128], strides = [1, 1]} : vector<2x256xf32> to vector<2x128xf32>
    %27 = vector.extract_strided_slice %25 {offsets = [0, 0], sizes = [2, 128], strides = [1, 1]} : vector<2x256xf32> to vector<2x128xf32>
    %28 = tpu.concatenate %26, %27 in 1 : vector<2x128xf32>, vector<2x128xf32> -> vector<2x256xf32>
    %29 = arith.addf %25, %28 : vector<2x256xf32>
    %30 = vector.extract_strided_slice %29 {offsets = [0, 0], sizes = [1, 256], strides = [1, 1]} : vector<2x256xf32> to vector<1x256xf32>
    %cst_9 = arith.constant 3.906250e-04 : f32
    %31 = vector.broadcast %cst_9 : f32 to vector<1x256xf32>
    %32 = arith.mulf %30, %31 : vector<1x256xf32>
    %33 = vector.extract_strided_slice %29 {offsets = [1, 0], sizes = [1, 256], strides = [1, 1]} : vector<2x256xf32> to vector<1x256xf32>
    %cst_10 = arith.constant 3.906250e-04 : f32
    %34 = vector.broadcast %cst_10 : f32 to vector<1x256xf32>
    %35 = arith.mulf %33, %34 : vector<1x256xf32>
    %36 = arith.mulf %32, %32 : vector<1x256xf32>
    %37 = arith.subf %35, %36 : vector<1x256xf32>
    %cst_11 = arith.constant 9.99999974E-6 : f32
    %38 = vector.broadcast %cst_11 : f32 to vector<1x256xf32>
    %39 = arith.addf %37, %38 : vector<1x256xf32>
    %40 = math.rsqrt %39 : vector<1x256xf32>
    %41 = vector.extract_strided_slice %0 {offsets = [0, 0], sizes = [1, 256], strides = [1, 1]} : vector<8x256xf32> to vector<1x256xf32>
    %42 = arith.mulf %41, %40 : vector<1x256xf32>
    %43 = vector.extract_strided_slice %0 {offsets = [1, 0], sizes = [1, 256], strides = [1, 1]} : vector<8x256xf32> to vector<1x256xf32>
    %44 = arith.mulf %32, %42 : vector<1x256xf32>
    %45 = arith.subf %43, %44 : vector<1x256xf32>
    %46 = vector.broadcast %42 : vector<1x256xf32> to vector<180x256xf32>
    %47 = arith.mulf %4, %46 : vector<180x256xf32>
    %48 = vector.broadcast %45 : vector<1x256xf32> to vector<180x256xf32>
    %49 = arith.addf %47, %48 : vector<180x256xf32>
    %cst_12 = arith.constant 0.000000e+00 : f32
    %50 = vector.broadcast %cst_12 : f32 to vector<180x256xf32>
    %51 = arith.maximumf %49, %50 : vector<180x256xf32>
    %52 = vector.extract_strided_slice %51 {offsets = [0, 0], sizes = [179, 256], strides = [1, 1]} : vector<180x256xf32> to vector<179x256xf32>
    %53 = vector.extract_strided_slice %51 {offsets = [1, 0], sizes = [179, 256], strides = [1, 1]} : vector<180x256xf32> to vector<179x256xf32>
    %54 = arith.maximumf %52, %53 : vector<179x256xf32>
    %55 = arith.truncf %54 : vector<179x256xf32> to vector<179x256xbf16>
    %c0_13 = arith.constant 0 : index
    %c0_14 = arith.constant 0 : index
    %56 = vector.load %arg3[%c0_13, %c0_14] : memref<704x256xbf16, #tpu.memory_space<vmem>>, vector<100x179xbf16>
    %cst_15 = arith.constant dense<0.000000e+00> : vector<100x256xf32>
    %57 = tpu.matmul %56, %55, %cst_15 {dimension_numbers = #tpu.dot_dimension_numbers<[1], [0], [0], [1], [0, 0, 1, 1], [], []>} : vector<100x179xbf16>, vector<179x256xbf16>, vector<100x256xf32> -> vector<100x256xf32>
    %c224 = arith.constant 224 : index
    %c0_16 = arith.constant 0 : index
    %58 = vector.load %arg3[%c224, %c0_16] : memref<704x256xbf16, #tpu.memory_space<vmem>>, vector<256x256xbf16>
    %59 = arith.truncf %57 : vector<100x256xf32> to vector<100x256xbf16>
    %cst_17 = arith.constant dense<0.000000e+00> : vector<100x256xf32>
    %60 = tpu.matmul %59, %58, %cst_17 {dimension_numbers = #tpu.dot_dimension_numbers<[1], [0], [0], [1], [0, 0, 1, 1], [], []>} : vector<100x256xbf16>, vector<256x256xbf16>, vector<100x256xf32> -> vector<100x256xf32>
    %61 = vector.extract_strided_slice %60 {offsets = [0, 0], sizes = [100, 128], strides = [1, 1]} : vector<100x256xf32> to vector<100x128xf32>
    %62 = vector.extract_strided_slice %60 {offsets = [0, 128], sizes = [100, 128], strides = [1, 1]} : vector<100x256xf32> to vector<100x128xf32>
    %63 = arith.maximumf %61, %62 : vector<100x128xf32>
    %64 = arith.truncf %63 : vector<100x128xf32> to vector<100x128xbf16>
    %cst_18 = arith.constant 0.000000e+00 : bf16
    %65 = vector.broadcast %cst_18 : bf16 to vector<1x128xbf16>
    %66 = vector.extract_strided_slice %64 {offsets = [0, 0], sizes = [99, 128], strides = [1, 1]} : vector<100x128xbf16> to vector<99x128xbf16>
    %67 = tpu.concatenate %65, %66 in 0 : vector<1x128xbf16>, vector<99x128xbf16> -> vector<100x128xbf16>
    %68 = vector.extract_strided_slice %64 {offsets = [1, 0], sizes = [99, 128], strides = [1, 1]} : vector<100x128xbf16> to vector<99x128xbf16>
    %69 = tpu.concatenate %68, %65 in 0 : vector<99x128xbf16>, vector<1x128xbf16> -> vector<100x128xbf16>
    %70 = tpu.concatenate %67, %64, %69 in 1 : vector<100x128xbf16>, vector<100x128xbf16>, vector<100x128xbf16> -> vector<100x384xbf16>
    %c144 = arith.constant 144 : index
    %c0_19 = arith.constant 0 : index
    %71 = vector.load %arg1[%c144, %c0_19] : memref<816x256xbf16, #tpu.memory_space<vmem>>, vector<384x128xbf16>
    %cst_20 = arith.constant dense<0.000000e+00> : vector<100x128xf32>
    %72 = tpu.matmul %70, %71, %cst_20 {dimension_numbers = #tpu.dot_dimension_numbers<[1], [0], [0], [1], [0, 0, 1, 1], [], []>} : vector<100x384xbf16>, vector<384x128xbf16>, vector<100x128xf32> -> vector<100x128xf32>
    %73 = vector.extract_strided_slice %1 {offsets = [0, 1], sizes = [100, 1], strides = [1, 1]} : vector<180x8xf32> to vector<100x1xf32>
    %74 = vector.broadcast %73 : vector<100x1xf32> to vector<100x128xf32>
    %75 = arith.mulf %72, %74 : vector<100x128xf32>
    %cst_21 = arith.constant dense<0.000000e+00> : vector<128xf32>
    %76 = vector.multi_reduction <add>, %75, %cst_21 [0] : vector<100x128xf32> to vector<128xf32>
    %77 = vector.shape_cast %76 : vector<128xf32> to vector<1x128xf32>
    %78 = arith.mulf %75, %72 : vector<100x128xf32>
    %cst_22 = arith.constant dense<0.000000e+00> : vector<128xf32>
    %79 = vector.multi_reduction <add>, %78, %cst_22 [0] : vector<100x128xf32> to vector<128xf32>
    %80 = vector.shape_cast %79 : vector<128xf32> to vector<1x128xf32>
    %81 = tpu.concatenate %77, %80 in 0 : vector<1x128xf32>, vector<1x128xf32> -> vector<2x128xf32>
    %82 = vector.extract_strided_slice %81 {offsets = [0, 112], sizes = [2, 16], strides = [1, 1]} : vector<2x128xf32> to vector<2x16xf32>
    %83 = vector.extract_strided_slice %81 {offsets = [0, 0], sizes = [2, 112], strides = [1, 1]} : vector<2x128xf32> to vector<2x112xf32>
    %84 = tpu.concatenate %82, %83 in 1 : vector<2x16xf32>, vector<2x112xf32> -> vector<2x128xf32>
    %85 = arith.addf %81, %84 : vector<2x128xf32>
    %86 = vector.extract_strided_slice %85 {offsets = [0, 96], sizes = [2, 32], strides = [1, 1]} : vector<2x128xf32> to vector<2x32xf32>
    %87 = vector.extract_strided_slice %85 {offsets = [0, 0], sizes = [2, 96], strides = [1, 1]} : vector<2x128xf32> to vector<2x96xf32>
    %88 = tpu.concatenate %86, %87 in 1 : vector<2x32xf32>, vector<2x96xf32> -> vector<2x128xf32>
    %89 = arith.addf %85, %88 : vector<2x128xf32>
    %90 = vector.extract_strided_slice %89 {offsets = [0, 64], sizes = [2, 64], strides = [1, 1]} : vector<2x128xf32> to vector<2x64xf32>
    %91 = vector.extract_strided_slice %89 {offsets = [0, 0], sizes = [2, 64], strides = [1, 1]} : vector<2x128xf32> to vector<2x64xf32>
    %92 = tpu.concatenate %90, %91 in 1 : vector<2x64xf32>, vector<2x64xf32> -> vector<2x128xf32>
    %93 = arith.addf %89, %92 : vector<2x128xf32>
    %94 = vector.extract_strided_slice %93 {offsets = [0, 0], sizes = [1, 128], strides = [1, 1]} : vector<2x128xf32> to vector<1x128xf32>
    %cst_23 = arith.constant 1.562500e-03 : f32
    %95 = vector.broadcast %cst_23 : f32 to vector<1x128xf32>
    %96 = arith.mulf %94, %95 : vector<1x128xf32>
    %97 = vector.extract_strided_slice %93 {offsets = [1, 0], sizes = [1, 128], strides = [1, 1]} : vector<2x128xf32> to vector<1x128xf32>
    %cst_24 = arith.constant 1.562500e-03 : f32
    %98 = vector.broadcast %cst_24 : f32 to vector<1x128xf32>
    %99 = arith.mulf %97, %98 : vector<1x128xf32>
    %100 = arith.mulf %96, %96 : vector<1x128xf32>
    %101 = arith.subf %99, %100 : vector<1x128xf32>
    %cst_25 = arith.constant 9.99999974E-6 : f32
    %102 = vector.broadcast %cst_25 : f32 to vector<1x128xf32>
    %103 = arith.addf %101, %102 : vector<1x128xf32>
    %104 = math.rsqrt %103 : vector<1x128xf32>
    %105 = vector.extract_strided_slice %0 {offsets = [2, 0], sizes = [1, 128], strides = [1, 1]} : vector<8x256xf32> to vector<1x128xf32>
    %106 = arith.mulf %105, %104 : vector<1x128xf32>
    %107 = vector.extract_strided_slice %0 {offsets = [3, 0], sizes = [1, 128], strides = [1, 1]} : vector<8x256xf32> to vector<1x128xf32>
    %108 = arith.mulf %96, %106 : vector<1x128xf32>
    %109 = arith.subf %107, %108 : vector<1x128xf32>
    %110 = vector.broadcast %106 : vector<1x128xf32> to vector<100x128xf32>
    %111 = arith.mulf %72, %110 : vector<100x128xf32>
    %112 = vector.broadcast %109 : vector<1x128xf32> to vector<100x128xf32>
    %113 = arith.addf %111, %112 : vector<100x128xf32>
    %cst_26 = arith.constant 0.000000e+00 : f32
    %114 = vector.broadcast %cst_26 : f32 to vector<100x128xf32>
    %115 = arith.maximumf %113, %114 : vector<100x128xf32>
    %116 = vector.extract_strided_slice %115 {offsets = [0, 0], sizes = [99, 128], strides = [1, 1]} : vector<100x128xf32> to vector<99x128xf32>
    %117 = vector.extract_strided_slice %115 {offsets = [1, 0], sizes = [99, 128], strides = [1, 1]} : vector<100x128xf32> to vector<99x128xf32>
    %118 = arith.maximumf %116, %117 : vector<99x128xf32>
    %119 = arith.truncf %118 : vector<99x128xf32> to vector<99x128xbf16>
    %c104 = arith.constant 104 : index
    %c0_27 = arith.constant 0 : index
    %120 = vector.load %arg3[%c104, %c0_27] : memref<704x256xbf16, #tpu.memory_space<vmem>>, vector<60x99xbf16>
    %cst_28 = arith.constant dense<0.000000e+00> : vector<60x128xf32>
    %121 = tpu.matmul %120, %119, %cst_28 {dimension_numbers = #tpu.dot_dimension_numbers<[1], [0], [0], [1], [0, 0, 1, 1], [], []>} : vector<60x99xbf16>, vector<99x128xbf16>, vector<60x128xf32> -> vector<60x128xf32>
    %c480 = arith.constant 480 : index
    %c0_29 = arith.constant 0 : index
    %122 = vector.load %arg3[%c480, %c0_29] : memref<704x256xbf16, #tpu.memory_space<vmem>>, vector<128x128xbf16>
    %123 = arith.truncf %121 : vector<60x128xf32> to vector<60x128xbf16>
    %cst_30 = arith.constant dense<0.000000e+00> : vector<60x128xf32>
    %124 = tpu.matmul %123, %122, %cst_30 {dimension_numbers = #tpu.dot_dimension_numbers<[1], [0], [0], [1], [0, 0, 1, 1], [], []>} : vector<60x128xbf16>, vector<128x128xbf16>, vector<60x128xf32> -> vector<60x128xf32>
    %125 = vector.extract_strided_slice %124 {offsets = [0, 0], sizes = [60, 64], strides = [1, 1]} : vector<60x128xf32> to vector<60x64xf32>
    %126 = vector.extract_strided_slice %124 {offsets = [0, 64], sizes = [60, 64], strides = [1, 1]} : vector<60x128xf32> to vector<60x64xf32>
    %127 = arith.maximumf %125, %126 : vector<60x64xf32>
    %128 = arith.truncf %127 : vector<60x64xf32> to vector<60x64xbf16>
    %cst_31 = arith.constant 0.000000e+00 : bf16
    %129 = vector.broadcast %cst_31 : bf16 to vector<1x64xbf16>
    %130 = vector.extract_strided_slice %128 {offsets = [0, 0], sizes = [59, 64], strides = [1, 1]} : vector<60x64xbf16> to vector<59x64xbf16>
    %131 = tpu.concatenate %129, %130 in 0 : vector<1x64xbf16>, vector<59x64xbf16> -> vector<60x64xbf16>
    %132 = vector.extract_strided_slice %128 {offsets = [1, 0], sizes = [59, 64], strides = [1, 1]} : vector<60x64xbf16> to vector<59x64xbf16>
    %133 = tpu.concatenate %132, %129 in 0 : vector<59x64xbf16>, vector<1x64xbf16> -> vector<60x64xbf16>
    %134 = tpu.concatenate %131, %128, %133 in 1 : vector<60x64xbf16>, vector<60x64xbf16>, vector<60x64xbf16> -> vector<60x192xbf16>
    %c528 = arith.constant 528 : index
    %c0_32 = arith.constant 0 : index
    %135 = vector.load %arg1[%c528, %c0_32] : memref<816x256xbf16, #tpu.memory_space<vmem>>, vector<192x64xbf16>
    %cst_33 = arith.constant dense<0.000000e+00> : vector<60x64xf32>
    %136 = tpu.matmul %134, %135, %cst_33 {dimension_numbers = #tpu.dot_dimension_numbers<[1], [0], [0], [1], [0, 0, 1, 1], [], []>} : vector<60x192xbf16>, vector<192x64xbf16>, vector<60x64xf32> -> vector<60x64xf32>
    %137 = vector.extract_strided_slice %1 {offsets = [0, 2], sizes = [60, 1], strides = [1, 1]} : vector<180x8xf32> to vector<60x1xf32>
    %138 = vector.broadcast %137 : vector<60x1xf32> to vector<60x64xf32>
    %139 = arith.mulf %136, %138 : vector<60x64xf32>
    %cst_34 = arith.constant dense<0.000000e+00> : vector<64xf32>
    %140 = vector.multi_reduction <add>, %139, %cst_34 [0] : vector<60x64xf32> to vector<64xf32>
    %141 = vector.shape_cast %140 : vector<64xf32> to vector<1x64xf32>
    %142 = arith.mulf %139, %136 : vector<60x64xf32>
    %cst_35 = arith.constant dense<0.000000e+00> : vector<64xf32>
    %143 = vector.multi_reduction <add>, %142, %cst_35 [0] : vector<60x64xf32> to vector<64xf32>
    %144 = vector.shape_cast %143 : vector<64xf32> to vector<1x64xf32>
    %145 = tpu.concatenate %141, %144 in 0 : vector<1x64xf32>, vector<1x64xf32> -> vector<2x64xf32>
    %146 = vector.extract_strided_slice %145 {offsets = [0, 48], sizes = [2, 16], strides = [1, 1]} : vector<2x64xf32> to vector<2x16xf32>
    %147 = vector.extract_strided_slice %145 {offsets = [0, 0], sizes = [2, 48], strides = [1, 1]} : vector<2x64xf32> to vector<2x48xf32>
    %148 = tpu.concatenate %146, %147 in 1 : vector<2x16xf32>, vector<2x48xf32> -> vector<2x64xf32>
    %149 = arith.addf %145, %148 : vector<2x64xf32>
    %150 = vector.extract_strided_slice %149 {offsets = [0, 32], sizes = [2, 32], strides = [1, 1]} : vector<2x64xf32> to vector<2x32xf32>
    %151 = vector.extract_strided_slice %149 {offsets = [0, 0], sizes = [2, 32], strides = [1, 1]} : vector<2x64xf32> to vector<2x32xf32>
    %152 = tpu.concatenate %150, %151 in 1 : vector<2x32xf32>, vector<2x32xf32> -> vector<2x64xf32>
    %153 = arith.addf %149, %152 : vector<2x64xf32>
    %154 = vector.extract_strided_slice %153 {offsets = [0, 0], sizes = [1, 64], strides = [1, 1]} : vector<2x64xf32> to vector<1x64xf32>
    %cst_36 = arith.constant 6.250000e-03 : f32
    %155 = vector.broadcast %cst_36 : f32 to vector<1x64xf32>
    %156 = arith.mulf %154, %155 : vector<1x64xf32>
    %157 = vector.extract_strided_slice %153 {offsets = [1, 0], sizes = [1, 64], strides = [1, 1]} : vector<2x64xf32> to vector<1x64xf32>
    %cst_37 = arith.constant 6.250000e-03 : f32
    %158 = vector.broadcast %cst_37 : f32 to vector<1x64xf32>
    %159 = arith.mulf %157, %158 : vector<1x64xf32>
    %160 = arith.mulf %156, %156 : vector<1x64xf32>
    %161 = arith.subf %159, %160 : vector<1x64xf32>
    %cst_38 = arith.constant 9.99999974E-6 : f32
    %162 = vector.broadcast %cst_38 : f32 to vector<1x64xf32>
    %163 = arith.addf %161, %162 : vector<1x64xf32>
    %164 = math.rsqrt %163 : vector<1x64xf32>
    %165 = vector.extract_strided_slice %0 {offsets = [4, 0], sizes = [1, 64], strides = [1, 1]} : vector<8x256xf32> to vector<1x64xf32>
    %166 = arith.mulf %165, %164 : vector<1x64xf32>
    %167 = vector.extract_strided_slice %0 {offsets = [5, 0], sizes = [1, 64], strides = [1, 1]} : vector<8x256xf32> to vector<1x64xf32>
    %168 = arith.mulf %156, %166 : vector<1x64xf32>
    %169 = arith.subf %167, %168 : vector<1x64xf32>
    %170 = vector.broadcast %166 : vector<1x64xf32> to vector<60x64xf32>
    %171 = arith.mulf %136, %170 : vector<60x64xf32>
    %172 = vector.broadcast %169 : vector<1x64xf32> to vector<60x64xf32>
    %173 = arith.addf %171, %172 : vector<60x64xf32>
    %cst_39 = arith.constant 0.000000e+00 : f32
    %174 = vector.broadcast %cst_39 : f32 to vector<60x64xf32>
    %175 = arith.maximumf %173, %174 : vector<60x64xf32>
    %176 = vector.extract_strided_slice %175 {offsets = [0, 0], sizes = [59, 64], strides = [1, 1]} : vector<60x64xf32> to vector<59x64xf32>
    %177 = vector.extract_strided_slice %175 {offsets = [1, 0], sizes = [59, 64], strides = [1, 1]} : vector<60x64xf32> to vector<59x64xf32>
    %178 = arith.maximumf %176, %177 : vector<59x64xf32>
    %179 = arith.truncf %178 : vector<59x64xf32> to vector<59x64xbf16>
    %c168 = arith.constant 168 : index
    %c0_40 = arith.constant 0 : index
    %180 = vector.load %arg3[%c168, %c0_40] : memref<704x256xbf16, #tpu.memory_space<vmem>>, vector<40x59xbf16>
    %cst_41 = arith.constant dense<0.000000e+00> : vector<40x64xf32>
    %181 = tpu.matmul %180, %179, %cst_41 {dimension_numbers = #tpu.dot_dimension_numbers<[1], [0], [0], [1], [0, 0, 1, 1], [], []>} : vector<40x59xbf16>, vector<59x64xbf16>, vector<40x64xf32> -> vector<40x64xf32>
    %c608 = arith.constant 608 : index
    %c0_42 = arith.constant 0 : index
    %182 = vector.load %arg3[%c608, %c0_42] : memref<704x256xbf16, #tpu.memory_space<vmem>>, vector<64x64xbf16>
    %183 = arith.truncf %181 : vector<40x64xf32> to vector<40x64xbf16>
    %cst_43 = arith.constant dense<0.000000e+00> : vector<40x64xf32>
    %184 = tpu.matmul %183, %182, %cst_43 {dimension_numbers = #tpu.dot_dimension_numbers<[1], [0], [0], [1], [0, 0, 1, 1], [], []>} : vector<40x64xbf16>, vector<64x64xbf16>, vector<40x64xf32> -> vector<40x64xf32>
    %185 = vector.extract_strided_slice %184 {offsets = [0, 0], sizes = [40, 32], strides = [1, 1]} : vector<40x64xf32> to vector<40x32xf32>
    %186 = vector.extract_strided_slice %184 {offsets = [0, 32], sizes = [40, 32], strides = [1, 1]} : vector<40x64xf32> to vector<40x32xf32>
    %187 = arith.maximumf %185, %186 : vector<40x32xf32>
    %188 = arith.truncf %187 : vector<40x32xf32> to vector<40x32xbf16>
    %cst_44 = arith.constant 0.000000e+00 : bf16
    %189 = vector.broadcast %cst_44 : bf16 to vector<1x32xbf16>
    %190 = vector.extract_strided_slice %188 {offsets = [0, 0], sizes = [39, 32], strides = [1, 1]} : vector<40x32xbf16> to vector<39x32xbf16>
    %191 = tpu.concatenate %189, %190 in 0 : vector<1x32xbf16>, vector<39x32xbf16> -> vector<40x32xbf16>
    %192 = vector.extract_strided_slice %188 {offsets = [1, 0], sizes = [39, 32], strides = [1, 1]} : vector<40x32xbf16> to vector<39x32xbf16>
    %193 = tpu.concatenate %192, %189 in 0 : vector<39x32xbf16>, vector<1x32xbf16> -> vector<40x32xbf16>
    %194 = tpu.concatenate %191, %188, %193 in 1 : vector<40x32xbf16>, vector<40x32xbf16>, vector<40x32xbf16> -> vector<40x96xbf16>
    %c720 = arith.constant 720 : index
    %c0_45 = arith.constant 0 : index
    %195 = vector.load %arg1[%c720, %c0_45] : memref<816x256xbf16, #tpu.memory_space<vmem>>, vector<96x32xbf16>
    %cst_46 = arith.constant dense<0.000000e+00> : vector<40x32xf32>
    %196 = tpu.matmul %194, %195, %cst_46 {dimension_numbers = #tpu.dot_dimension_numbers<[1], [0], [0], [1], [0, 0, 1, 1], [], []>} : vector<40x96xbf16>, vector<96x32xbf16>, vector<40x32xf32> -> vector<40x32xf32>
    %197 = vector.extract_strided_slice %1 {offsets = [0, 3], sizes = [40, 1], strides = [1, 1]} : vector<180x8xf32> to vector<40x1xf32>
    %198 = vector.broadcast %197 : vector<40x1xf32> to vector<40x32xf32>
    %199 = arith.mulf %196, %198 : vector<40x32xf32>
    %cst_47 = arith.constant dense<0.000000e+00> : vector<32xf32>
    %200 = vector.multi_reduction <add>, %199, %cst_47 [0] : vector<40x32xf32> to vector<32xf32>
    %201 = vector.shape_cast %200 : vector<32xf32> to vector<1x32xf32>
    %202 = arith.mulf %199, %196 : vector<40x32xf32>
    %cst_48 = arith.constant dense<0.000000e+00> : vector<32xf32>
    %203 = vector.multi_reduction <add>, %202, %cst_48 [0] : vector<40x32xf32> to vector<32xf32>
    %204 = vector.shape_cast %203 : vector<32xf32> to vector<1x32xf32>
    %205 = tpu.concatenate %201, %204 in 0 : vector<1x32xf32>, vector<1x32xf32> -> vector<2x32xf32>
    %206 = vector.extract_strided_slice %205 {offsets = [0, 16], sizes = [2, 16], strides = [1, 1]} : vector<2x32xf32> to vector<2x16xf32>
    %207 = vector.extract_strided_slice %205 {offsets = [0, 0], sizes = [2, 16], strides = [1, 1]} : vector<2x32xf32> to vector<2x16xf32>
    %208 = tpu.concatenate %206, %207 in 1 : vector<2x16xf32>, vector<2x16xf32> -> vector<2x32xf32>
    %209 = arith.addf %205, %208 : vector<2x32xf32>
    %210 = vector.extract_strided_slice %209 {offsets = [0, 0], sizes = [1, 32], strides = [1, 1]} : vector<2x32xf32> to vector<1x32xf32>
    %cst_49 = arith.constant 2.500000e-02 : f32
    %211 = vector.broadcast %cst_49 : f32 to vector<1x32xf32>
    %212 = arith.mulf %210, %211 : vector<1x32xf32>
    %213 = vector.extract_strided_slice %209 {offsets = [1, 0], sizes = [1, 32], strides = [1, 1]} : vector<2x32xf32> to vector<1x32xf32>
    %cst_50 = arith.constant 2.500000e-02 : f32
    %214 = vector.broadcast %cst_50 : f32 to vector<1x32xf32>
    %215 = arith.mulf %213, %214 : vector<1x32xf32>
    %216 = arith.mulf %212, %212 : vector<1x32xf32>
    %217 = arith.subf %215, %216 : vector<1x32xf32>
    %cst_51 = arith.constant 9.99999974E-6 : f32
    %218 = vector.broadcast %cst_51 : f32 to vector<1x32xf32>
    %219 = arith.addf %217, %218 : vector<1x32xf32>
    %220 = math.rsqrt %219 : vector<1x32xf32>
    %221 = vector.extract_strided_slice %0 {offsets = [6, 0], sizes = [1, 32], strides = [1, 1]} : vector<8x256xf32> to vector<1x32xf32>
    %222 = arith.mulf %221, %220 : vector<1x32xf32>
    %223 = vector.extract_strided_slice %0 {offsets = [7, 0], sizes = [1, 32], strides = [1, 1]} : vector<8x256xf32> to vector<1x32xf32>
    %224 = arith.mulf %212, %222 : vector<1x32xf32>
    %225 = arith.subf %223, %224 : vector<1x32xf32>
    %226 = vector.broadcast %222 : vector<1x32xf32> to vector<40x32xf32>
    %227 = arith.mulf %196, %226 : vector<40x32xf32>
    %228 = vector.broadcast %225 : vector<1x32xf32> to vector<40x32xf32>
    %229 = arith.addf %227, %228 : vector<40x32xf32>
    %cst_52 = arith.constant 0.000000e+00 : f32
    %230 = vector.broadcast %cst_52 : f32 to vector<40x32xf32>
    %231 = arith.maximumf %229, %230 : vector<40x32xf32>
    %232 = vector.extract_strided_slice %231 {offsets = [0, 0], sizes = [39, 32], strides = [1, 1]} : vector<40x32xf32> to vector<39x32xf32>
    %233 = vector.extract_strided_slice %231 {offsets = [1, 0], sizes = [39, 32], strides = [1, 1]} : vector<40x32xf32> to vector<39x32xf32>
    %234 = arith.maximumf %232, %233 : vector<39x32xf32>
    %235 = arith.truncf %234 : vector<39x32xf32> to vector<39x32xbf16>
    %c208 = arith.constant 208 : index
    %c0_53 = arith.constant 0 : index
    %236 = vector.load %arg3[%c208, %c0_53] : memref<704x256xbf16, #tpu.memory_space<vmem>>, vector<10x39xbf16>
    %cst_54 = arith.constant dense<0.000000e+00> : vector<10x32xf32>
    %237 = tpu.matmul %236, %235, %cst_54 {dimension_numbers = #tpu.dot_dimension_numbers<[1], [0], [0], [1], [0, 0, 1, 1], [], []>} : vector<10x39xbf16>, vector<39x32xbf16>, vector<10x32xf32> -> vector<10x32xf32>
    %c672 = arith.constant 672 : index
    %c0_55 = arith.constant 0 : index
    %238 = vector.load %arg3[%c672, %c0_55] : memref<704x256xbf16, #tpu.memory_space<vmem>>, vector<32x32xbf16>
    %239 = arith.truncf %237 : vector<10x32xf32> to vector<10x32xbf16>
    %cst_56 = arith.constant dense<0.000000e+00> : vector<10x32xf32>
    %240 = tpu.matmul %239, %238, %cst_56 {dimension_numbers = #tpu.dot_dimension_numbers<[1], [0], [0], [1], [0, 0, 1, 1], [], []>} : vector<10x32xbf16>, vector<32x32xbf16>, vector<10x32xf32> -> vector<10x32xf32>
    %241 = vector.extract_strided_slice %240 {offsets = [0, 0], sizes = [10, 16], strides = [1, 1]} : vector<10x32xf32> to vector<10x16xf32>
    %242 = vector.extract_strided_slice %240 {offsets = [0, 16], sizes = [10, 16], strides = [1, 1]} : vector<10x32xf32> to vector<10x16xf32>
    %243 = arith.maximumf %241, %242 : vector<10x16xf32>
    %c0_57 = arith.constant 0 : index
    %c0_58 = arith.constant 0 : index
    %244 = vector.load %arg5[%c0_57, %c0_58] : memref<17x128xf32, #tpu.memory_space<vmem>>, vector<16x128xf32>
    %c16 = arith.constant 16 : index
    %c0_59 = arith.constant 0 : index
    %245 = vector.load %arg5[%c16, %c0_59] : memref<17x128xf32, #tpu.memory_space<vmem>>, vector<1x128xf32>
    %cst_60 = arith.constant dense<0.000000e+00> : vector<10x128xf32>
    %246 = tpu.matmul %243, %244, %cst_60 {dimension_numbers = #tpu.dot_dimension_numbers<[1], [0], [0], [1], [0, 0, 1, 1], [], []>} : vector<10x16xf32>, vector<16x128xf32>, vector<10x128xf32> -> vector<10x128xf32>
    %247 = vector.broadcast %245 : vector<1x128xf32> to vector<10x128xf32>
    %248 = arith.addf %246, %247 : vector<10x128xf32>
    %c0_61 = arith.constant 0 : index
    %c0_62 = arith.constant 0 : index
    %249 = vector.load %arg6[%c0_61, %c0_62] : memref<10x128xf32, #tpu.memory_space<vmem>>, vector<10x128xf32>
    tpu.vector_store %arg6[%c0_61, %c0_62], %248 {strides = array<i32>} : memref<10x128xf32, #tpu.memory_space<vmem>>, vector<10x128xf32>,
    return
  }
}

</mosaic_0001>

<llo_original>
// kernel: tile.43
$region0: #{tile.43}
  #allocation0 [shape = 's32[1]{0}', space=sflag, size = 0x4, scoped, tag = 'scoped memory for tile.43']
  %s0 = inlined_call_operand.vmem [shape: f32[16], index: 0, kind: input, shape index: {}]
  %s1 = inlined_call_operand.vmem [shape: f32[16,16], index: 1, kind: output, shape index: {}]
  // Predicated region
  $region2: #{tile.43} parent=0 // pred_check
    _
  $region3: #{tile.43} parent=0 // pred_check_branch
    %3 = sbr.rel (0) target = $region5
  $region4: #{tile.43} parent=0 // pred_region
    _
  $region5: #{tile.43} parent=0 // pred_fallthru
    _
  %v4 = vld [vmem:[%s0] ss:$0 sm:$0xff]
  %5 = vst [vmem:[%s1] sm:$0xff] %v4
  %s6 = scalar_lea.vmem %s1, 8
  %7 = vst [vmem:[%s6] sm:$0xff] %v4

// kernel: tile.53
$region0: #{tile.53}
  #allocation0 [shape = 's32[1]{0}', space=sflag, size = 0x4, scoped, tag = 'scoped memory for tile.53']
  %s0 = inlined_call_operand.vmem [shape: f32[16], index: 0, kind: input, shape index: {}]
  %s1 = inlined_call_operand.vmem [shape: f32[8,16], index: 1, kind: output, shape index: {}]
  // Predicated region
  $region2: #{tile.53} parent=0 // pred_check
    _
  $region3: #{tile.53} parent=0 // pred_check_branch
    %3 = sbr.rel (0) target = $region5
  $region4: #{tile.53} parent=0 // pred_region
    _
  $region5: #{tile.53} parent=0 // pred_fallthru
    _
  %v4 = vld [vmem:[%s0] ss:$0 sm:$0xff]
  %5 = vst [vmem:[%s1] sm:$0xff] %v4

// kernel: tile.63
$region0: #{tile.63}
  #allocation0 [shape = 's32[1]{0}', space=sflag, size = 0x4, scoped, tag = 'scoped memory for tile.63']
  %s0 = inlined_call_operand.vmem [shape: f32[16], index: 0, kind: input, shape index: {}]
  %s1 = inlined_call_operand.vmem [shape: f32[4,16], index: 1, kind: output, shape index: {}]
  // Predicated region
  $region2: #{tile.63} parent=0 // pred_check
    _
  $region3: #{tile.63} parent=0 // pred_check_branch
    %3 = sbr.rel (0) target = $region5
  $region4: #{tile.63} parent=0 // pred_region
    _
  $region5: #{tile.63} parent=0 // pred_fallthru
    _
  %v4 = vld [vmem:[%s0] ss:$0 sm:$0xff]
  %5 = vst [vmem:[%s1] sm:$0xf] %v4

// kernel: tile.73
$region0: #{tile.73}
  #allocation0 [shape = 's32[1]{0}', space=sflag, size = 0x4, scoped, tag = 'scoped memory for tile.73']
  %s0 = inlined_call_operand.vmem [shape: f32[16], index: 0, kind: input, shape index: {}]
  %s1 = inlined_call_operand.vmem [shape: f32[2,16], index: 1, kind: output, shape index: {}]
  // Predicated region
  $region2: #{tile.73} parent=0 // pred_check
    _
  $region3: #{tile.73} parent=0 // pred_check_branch
    %3 = sbr.rel (0) target = $region5
  $region4: #{tile.73} parent=0 // pred_region
    _
  $region5: #{tile.73} parent=0 // pred_fallthru
    _
  %v4 = vld [vmem:[%s0] ss:$0 sm:$0xff]
  %5 = vst [vmem:[%s1] sm:$0x3] %v4

// kernel: maml_forward.1
$region0: #{maml_forward.1}
  #allocation0 [shape = 'u32[]', space=smem, size = 0x4, offset = 0x4, fixed_abs, tag = 'smem constant byte address 0x4 - core index']
  #allocation1 [shape = 'u32[144,128]{1,0:T(1,128)}', space=vmem, size = 0x12000, scoped, tag = 'internal scratch']
  %s0 = inlined_call_operand.vmem [shape: bf16[180,144], index: 0, kind: input, shape index: {}]
  %s1 = inlined_call_operand.vmem [shape: bf16[816,256], index: 1, kind: input, shape index: {}]
  %s2 = inlined_call_operand.vmem [shape: f32[8,256], index: 2, kind: input, shape index: {}]
  %s3 = inlined_call_operand.vmem [shape: bf16[704,256], index: 3, kind: input, shape index: {}]
  %s4 = inlined_call_operand.vmem [shape: f32[180,8], index: 4, kind: input, shape index: {}]
  %s5 = inlined_call_operand.vmem [shape: f32[17,128], index: 5, kind: input, shape index: {}]
  %s6 = inlined_call_operand.vmem [shape: f32[10,128], index: 6, kind: output, shape index: {}]
  %s7 = sld [smem:[#allocation0]]
  $region34: #{maml_forward.1} parent=0
    _
  %s9 = ssub.s32 1, %s7
  %s10 = scalar_select 0, %s9, %s7
  // Predicated region
  $region2: #{maml_forward.1} parent=0 // pred_check
    _
  $region3: #{maml_forward.1} parent=0 // pred_check_branch
    %12 = sbr.rel (0) target = $region5
  $region4: #{maml_forward.1} parent=0 // pred_region
    _
  $region5: #{maml_forward.1} parent=0 // pred_fallthru
    _
  // Predicated region
  $region6: #{maml_forward.1} parent=0 // pred_check
    _
  $region7: #{maml_forward.1} parent=0 // pred_check_branch
    %14 = sbr.rel (0) target = $region9
  $region8: #{maml_forward.1} parent=0 // pred_region
    _
  $region9: #{maml_forward.1} parent=0 // pred_fallthru
    _
  // Predicated region
  $region10: #{maml_forward.1} parent=0 // pred_check
    _
  $region11: #{maml_forward.1} parent=0 // pred_check_branch
    %16 = sbr.rel (0) target = $region13
  $region12: #{maml_forward.1} parent=0 // pred_region
    _
  $region13: #{maml_forward.1} parent=0 // pred_fallthru
    _
  // Predicated region
  $region14: #{maml_forward.1} parent=0 // pred_check
    _
  $region15: #{maml_forward.1} parent=0 // pred_check_branch
    %18 = sbr.rel (0) target = $region17
  $region16: #{maml_forward.1} parent=0 // pred_region
    _
  $region17: #{maml_forward.1} parent=0 // pred_fallthru
    _
  // Predicated region
  $region18: #{maml_forward.1} parent=0 // pred_check
    _
  $region19: #{maml_forward.1} parent=0 // pred_check_branch
    %20 = sbr.rel (0) target = $region21
  $region20: #{maml_forward.1} parent=0 // pred_region
    _
  $region21: #{maml_forward.1} parent=0 // pred_fallthru
    _
  // Predicated region
  $region22: #{maml_forward.1} parent=0 // pred_check
    _
  $region23: #{maml_forward.1} parent=0 // pred_check_branch
    %22 = sbr.rel (0) target = $region25
  $region24: #{maml_forward.1} parent=0 // pred_region
    _
  $region25: #{maml_forward.1} parent=0 // pred_fallthru
    _
  %v24 = vld [vmem:[%s2] sm:$0xff]
  %v25 = vld [vmem:[%s2 + $0x8] sm:$0xff]
  %v26 = vld [vmem:[%s4] sm:$0xff]
  %v27 = vld [vmem:[%s4 + $0x8] sm:$0xff]
  %v28 = vld [vmem:[%s4 + $0x10] sm:$0xff]
  %v29 = vld [vmem:[%s4 + $0x18] sm:$0xff]
  %v30 = vld [vmem:[%s4 + $0x20] sm:$0xff]
  %v31 = vld [vmem:[%s4 + $0x28] sm:$0xff]
  %v32 = vld [vmem:[%s4 + $0x30] sm:$0xff]
  %v33 = vld [vmem:[%s4 + $0x38] sm:$0xff]
  %v34 = vld [vmem:[%s4 + $0x40] sm:$0xff]
  %v35 = vld [vmem:[%s4 + $0x48] sm:$0xff]
  %v36 = vld [vmem:[%s4 + $0x50] sm:$0xff]
  %v37 = vld [vmem:[%s4 + $0x58] sm:$0xff]
  %v38 = vld [vmem:[%s4 + $0x60] sm:$0xff]
  %v39 = vld [vmem:[%s4 + $0x68] sm:$0xff]
  %v40 = vld [vmem:[%s4 + $0x70] sm:$0xff]
  %v41 = vld [vmem:[%s4 + $0x78] sm:$0xff]
  %v42 = vld [vmem:[%s4 + $0x80] sm:$0xff]
  %v43 = vld [vmem:[%s4 + $0x88] sm:$0xff]
  %v44 = vld [vmem:[%s4 + $0x90] sm:$0xff]
  %v45 = vld [vmem:[%s4 + $0x98] sm:$0xff]
  %v46 = vld [vmem:[%s4 + $0xa0] sm:$0xff]
  %v47 = vld [vmem:[%s4 + $0xa8] sm:$0xff]
  %v48 = vld [vmem:[%s4 + $0xb0] sm:$0xf]
  %v49 = vld [vmem:[%s0] sm:$0xff]
  %v50 = vld [vmem:[%s0 + $0x8] sm:$0xff]
  %v51 = vld [vmem:[%s0 + $0x10] sm:$0xff]
  %v52 = vld [vmem:[%s0 + $0x18] sm:$0xff]
  %v53 = vld [vmem:[%s0 + $0x20] sm:$0xff]
  %v54 = vld [vmem:[%s0 + $0x28] sm:$0xff]
  %v55 = vld [vmem:[%s0 + $0x30] sm:$0xff]
  %v56 = vld [vmem:[%s0 + $0x38] sm:$0xff]
  %v57 = vld [vmem:[%s0 + $0x40] sm:$0xff]
  %v58 = vld [vmem:[%s0 + $0x48] sm:$0xff]
  %v59 = vld [vmem:[%s0 + $0x50] sm:$0xff]
  %v60 = vld [vmem:[%s0 + $0x58] sm:$0xff]
  %v61 = vld [vmem:[%s0 + $0x60] sm:$0xff]
  %v62 = vld [vmem:[%s0 + $0x68] sm:$0xff]
  %v63 = vld [vmem:[%s0 + $0x70] sm:$0xff]
  %v64 = vld [vmem:[%s0 + $0x78] sm:$0xff]
  %v65 = vld [vmem:[%s0 + $0x80] sm:$0xff]
  %v66 = vld [vmem:[%s0 + $0x88] sm:$0xff]
  %v67 = vld [vmem:[%s0 + $0x90] sm:$0xff]
  %v68 = vld [vmem:[%s0 + $0x98] sm:$0xff]
  %v69 = vld [vmem:[%s0 + $0xa0] sm:$0xff]
  %v70 = vld [vmem:[%s0 + $0xa8] sm:$0xff]
  %v71 = vld [vmem:[%s0 + $0xb0] sm:$0x33]
  %v72 = vld [vmem:[%s1] sm:$0xff]
  %v73 = vld [vmem:[%s1 + $0x8] sm:$0xff]
  %v74 = vld [vmem:[%s1 + $0x10] sm:$0xff]
  %v75 = vld [vmem:[%s1 + $0x18] sm:$0xff]
  %v76 = vld [vmem:[%s1 + $0x20] sm:$0xff]
  %v77 = vld [vmem:[%s1 + $0x28] sm:$0xff]
  %v78 = vld [vmem:[%s1 + $0x30] sm:$0xff]
  %v79 = vld [vmem:[%s1 + $0x38] sm:$0xff]
  %v80 = vld [vmem:[%s1 + $0x40] sm:$0xff]
  %v81 = vld [vmem:[%s1 + $0x48] sm:$0xff]
  %v82 = vld [vmem:[%s1 + $0x50] sm:$0xff]
  %v83 = vld [vmem:[%s1 + $0x58] sm:$0xff]
  %v84 = vld [vmem:[%s1 + $0x60] sm:$0xff]
  %v85 = vld [vmem:[%s1 + $0x68] sm:$0xff]
  %v86 = vld [vmem:[%s1 + $0x70] sm:$0xff]
  %v87 = vld [vmem:[%s1 + $0x78] sm:$0xff]
  %v88 = vld [vmem:[%s1 + $0x80] sm:$0xff]
  %v89 = vld [vmem:[%s1 + $0x88] sm:$0xff]
  %v113 = vunpack.c.l.b16 %v49
  %v114 = vunpack.c.h.b16 %v49
  %v115 = vunpack.c.l.b16 %v50
  %v116 = vunpack.c.h.b16 %v50
  %v117 = vunpack.c.l.b16 %v51
  %v118 = vunpack.c.h.b16 %v51
  %v119 = vunpack.c.l.b16 %v52
  %v120 = vunpack.c.h.b16 %v52
  %v121 = vunpack.c.l.b16 %v53
  %v122 = vunpack.c.h.b16 %v53
  %v123 = vunpack.c.l.b16 %v54
  %v124 = vunpack.c.h.b16 %v54
  %v125 = vunpack.c.l.b16 %v55
  %v126 = vunpack.c.h.b16 %v55
  %v127 = vunpack.c.l.b16 %v56
  %v128 = vunpack.c.h.b16 %v56
  %v129 = vunpack.c.l.b16 %v57
  %v130 = vunpack.c.h.b16 %v57
  %v131 = vunpack.c.l.b16 %v58
  %v132 = vunpack.c.h.b16 %v58
  %v133 = vunpack.c.l.b16 %v59
  %v134 = vunpack.c.h.b16 %v59
  %v135 = vunpack.c.l.b16 %v60
  %v136 = vunpack.c.h.b16 %v60
  %v137 = vunpack.c.l.b16 %v61
  %v138 = vunpack.c.h.b16 %v61
  %v139 = vunpack.c.l.b16 %v62
  %v140 = vunpack.c.h.b16 %v62
  %v141 = vunpack.c.l.b16 %v63
  %v142 = vunpack.c.h.b16 %v63
  %v143 = vunpack.c.l.b16 %v64
  %v144 = vunpack.c.h.b16 %v64
  %v145 = vunpack.c.l.b16 %v65
  %v146 = vunpack.c.h.b16 %v65
  %v147 = vunpack.c.l.b16 %v66
  %v148 = vunpack.c.h.b16 %v66
  %v149 = vunpack.c.l.b16 %v67
  %v150 = vunpack.c.h.b16 %v67
  %v151 = vunpack.c.l.b16 %v68
  %v152 = vunpack.c.h.b16 %v68
  %v153 = vunpack.c.l.b16 %v69
  %v154 = vunpack.c.h.b16 %v69
  %v155 = vunpack.c.l.b16 %v70
  %v156 = vunpack.c.h.b16 %v70
  %v157 = vunpack.c.l.b16 %v71
  %v158 = vunpack.c.h.b16 %v71
  %v159 = vpack.c.b16 %v115, %v113
  %v160 = vpack.c.b16 %v116, %v114
  %v161 = vpack.c.b16 %v119, %v117
  %v162 = vpack.c.b16 %v120, %v118
  %v163 = vpack.c.b16 %v123, %v121
  %v164 = vpack.c.b16 %v124, %v122
  %v165 = vpack.c.b16 %v127, %v125
  %v166 = vpack.c.b16 %v128, %v126
  %v167 = vpack.c.b16 %v131, %v129
  %v168 = vpack.c.b16 %v132, %v130
  %v169 = vpack.c.b16 %v135, %v133
  %v170 = vpack.c.b16 %v136, %v134
  %v171 = vpack.c.b16 %v139, %v137
  %v172 = vpack.c.b16 %v140, %v138
  %v173 = vpack.c.b16 %v143, %v141
  %v174 = vpack.c.b16 %v144, %v142
  %v175 = vpack.c.b16 %v147, %v145
  %v176 = vpack.c.b16 %v148, %v146
  %v177 = vpack.c.b16 %v151, %v149
  %v178 = vpack.c.b16 %v152, %v150
  %v179 = vpack.c.b16 %v155, %v153
  %v180 = vpack.c.b16 %v156, %v154
  %v181 = vpack.c.b16 %v157, %v157
  %v182 = vpack.c.b16 %v158, %v158
  %v213 = vunpack.c.l.b16 %v72
  %v214 = vunpack.c.h.b16 %v72
  %v215 = vunpack.c.l.b16 %v73
  %v216 = vunpack.c.h.b16 %v73
  %v217 = vunpack.c.l.b16 %v74
  %v218 = vunpack.c.h.b16 %v74
  %v219 = vunpack.c.l.b16 %v75
  %v220 = vunpack.c.h.b16 %v75
  %v221 = vunpack.c.l.b16 %v76
  %v222 = vunpack.c.h.b16 %v76
  %v223 = vunpack.c.l.b16 %v77
  %v224 = vunpack.c.h.b16 %v77
  %v225 = vunpack.c.l.b16 %v78
  %v226 = vunpack.c.h.b16 %v78
  %v227 = vunpack.c.l.b16 %v79
  %v228 = vunpack.c.h.b16 %v79
  %v229 = vunpack.c.l.b16 %v80
  %v230 = vunpack.c.h.b16 %v80
  %v231 = vunpack.c.l.b16 %v81
  %v232 = vunpack.c.h.b16 %v81
  %v233 = vunpack.c.l.b16 %v82
  %v234 = vunpack.c.h.b16 %v82
  %v235 = vunpack.c.l.b16 %v83
  %v236 = vunpack.c.h.b16 %v83
  %v237 = vunpack.c.l.b16 %v84
  %v238 = vunpack.c.h.b16 %v84
  %v239 = vunpack.c.l.b16 %v85
  %v240 = vunpack.c.h.b16 %v85
  %v241 = vunpack.c.l.b16 %v86
  %v242 = vunpack.c.h.b16 %v86
  %v243 = vunpack.c.l.b16 %v87
  %v244 = vunpack.c.h.b16 %v87
  %v245 = vunpack.c.l.b16 %v88
  %v246 = vunpack.c.h.b16 %v88
  %v247 = vunpack.c.l.b16 %v89
  %v248 = vunpack.c.h.b16 %v89
  %v249 = vpack.c.b16 %v215, %v213
  %v250 = vpack.c.b16 %v216, %v214
  %v251 = vpack.c.b16 %v219, %v217
  %v252 = vpack.c.b16 %v220, %v218
  %v253 = vpack.c.b16 %v223, %v221
  %v254 = vpack.c.b16 %v224, %v222
  %v255 = vpack.c.b16 %v227, %v225
  %v256 = vpack.c.b16 %v228, %v226
  %v257 = vpack.c.b16 %v231, %v229
  %v258 = vpack.c.b16 %v232, %v230
  %v259 = vpack.c.b16 %v235, %v233
  %v260 = vpack.c.b16 %v236, %v234
  %v261 = vpack.c.b16 %v239, %v237
  %v262 = vpack.c.b16 %v240, %v238
  %v263 = vpack.c.b16 %v243, %v241
  %v264 = vpack.c.b16 %v244, %v242
  %v265 = vpack.c.b16 %v247, %v245
  %v266 = vpack.c.b16 %v248, %v246
  %vm285 = vcmask 130048
  %v287 = vsel %vm285, %v160, 0
  %v290 = vsel %vm285, %v162, 0
  %v293 = vsel %vm285, %v164, 0
  %v296 = vsel %vm285, %v166, 0
  %v299 = vsel %vm285, %v168, 0
  %v302 = vsel %vm285, %v170, 0
  %v305 = vsel %vm285, %v172, 0
  %v308 = vsel %vm285, %v174, 0
  %v311 = vsel %vm285, %v176, 0
  %v314 = vsel %vm285, %v178, 0
  %v317 = vsel %vm285, %v180, 0
  %v320 = vsel %vm285, %v182, 0
  %322 = vmatprep.subr.bf16.mxu0 %v250
  %323 = vmatpush1.bf16.msra.mxu0 %v249
  %324 = vmatprep.subr.bf16.mxu0 %v252
  %325 = vmatpush1.bf16.msra.mxu0 %v251
  %326 = vmatprep.subr.bf16.mxu0 %v254
  %327 = vmatpush1.bf16.msra.mxu0 %v253
  %328 = vmatprep.subr.bf16.mxu0 %v256
  %329 = vmatpush1.bf16.msra.mxu0 %v255
  %330 = vmatprep.subr.bf16.mxu0 %v258
  %331 = vmatpush1.bf16.msra.mxu0 %v257
  %332 = vmatprep.subr.bf16.mxu0 %v260
  %333 = vmatpush1.bf16.msra.mxu0 %v259
  %334 = vmatprep.subr.bf16.mxu0 %v262
  %335 = vmatpush1.bf16.msra.mxu0 %v261
  %336 = vmatprep.subr.bf16.mxu0 %v264
  %337 = vmatpush1.bf16.msra.mxu0 %v263
  %338 = vmatprep.subr.bf16.mxu0 %v266
  %339 = vmatpush1.bf16.msra.mxu0 %v265
  %340 = vmatprep.subr.bf16.mxu0 0
  %341 = vmatpush1.bf16.msra.mxu0 0
  %342 = vmatprep.subr.bf16.mxu0 0
  %343 = vmatpush1.bf16.msra.mxu0 0
  %344 = vmatprep.subr.bf16.mxu0 0
  %345 = vmatpush1.bf16.msra.mxu0 0
  %346 = vmatprep.subr.bf16.mxu0 0
  %347 = vmatpush1.bf16.msra.mxu0 0
  %348 = vmatprep.subr.bf16.mxu0 0
  %349 = vmatpush1.bf16.msra.mxu0 0
  %350 = vmatprep.subr.bf16.mxu0 0
  %351 = vmatpush1.bf16.msra.mxu0 0
  %352 = vmatprep.subr.bf16.mxu0 0
  %353 = vmatpush1.bf16.msra.mxu0 0
  %354 = vmatprep.mubr.bf16.mxu0 %v287
  %355 = vmatmul.mubr.bf16.gmra.mrb[0].mxu0 %v159
  %v356 = vpop.f32.mrb[0].mxu0
  %v357 = vadd.f32 0.0, %v356
  %v358 = vpop.f32.mrb[0].mxu0
  %v359 = vadd.f32 0.0, %v358
  %v360 = vpop.f32.mrb[0].mxu0
  %v361 = vadd.f32 0.0, %v360
  %v362 = vpop.f32.mrb[0].mxu0
  %v363 = vadd.f32 0.0, %v362
  %364 = vmatprep.mubr.bf16.mxu0 %v290
  %365 = vmatmul.mubr.bf16.gmra.mrb[0].mxu0 %v161
  %v366 = vpop.f32.mrb[0].mxu0
  %v367 = vadd.f32 0.0, %v366
  %v368 = vpop.f32.mrb[0].mxu0
  %v369 = vadd.f32 0.0, %v368
  %v370 = vpop.f32.mrb[0].mxu0
  %v371 = vadd.f32 0.0, %v370
  %v372 = vpop.f32.mrb[0].mxu0
  %v373 = vadd.f32 0.0, %v372
  %374 = vmatprep.mubr.bf16.mxu0 %v293
  %375 = vmatmul.mubr.bf16.gmra.mrb[0].mxu0 %v163
  %v376 = vpop.f32.mrb[0].mxu0
  %v377 = vadd.f32 0.0, %v376
  %v378 = vpop.f32.mrb[0].mxu0
  %v379 = vadd.f32 0.0, %v378
  %v380 = vpop.f32.mrb[0].mxu0
  %v381 = vadd.f32 0.0, %v380
  %v382 = vpop.f32.mrb[0].mxu0
  %v383 = vadd.f32 0.0, %v382
  %384 = vmatprep.mubr.bf16.mxu0 %v296
  %385 = vmatmul.mubr.bf16.gmra.mrb[0].mxu0 %v165
  %v386 = vpop.f32.mrb[0].mxu0
  %v387 = vadd.f32 0.0, %v386
  %v388 = vpop.f32.mrb[0].mxu0
  %v389 = vadd.f32 0.0, %v388
  %v390 = vpop.f32.mrb[0].mxu0
  %v391 = vadd.f32 0.0, %v390
  %v392 = vpop.f32.mrb[0].mxu0
  %v393 = vadd.f32 0.0, %v392
  %394 = vmatprep.mubr.bf16.mxu0 %v299
  %395 = vmatmul.mubr.bf16.gmra.mrb[0].mxu0 %v167
  %v396 = vpop.f32.mrb[0].mxu0
  %v397 = vadd.f32 0.0, %v396
  %v398 = vpop.f32.mrb[0].mxu0
  %v399 = vadd.f32 0.0, %v398
  %v400 = vpop.f32.mrb[0].mxu0
  %v401 = vadd.f32 0.0, %v400
  %v402 = vpop.f32.mrb[0].mxu0
  %v403 = vadd.f32 0.0, %v402
  %404 = vmatprep.mubr.bf16.mxu0 %v302
  %405 = vmatmul.mubr.bf16.gmra.mrb[0].mxu0 %v169
  %v406 = vpop.f32.mrb[0].mxu0
  %v407 = vadd.f32 0.0, %v406
  %v408 = vpop.f32.mrb[0].mxu0
  %v409 = vadd.f32 0.0, %v408
  %v410 = vpop.f32.mrb[0].mxu0
  %v411 = vadd.f32 0.0, %v410
  %v412 = vpop.f32.mrb[0].mxu0
  %v413 = vadd.f32 0.0, %v412
  %414 = vmatprep.mubr.bf16.mxu0 %v305
  %415 = vmatmul.mubr.bf16.gmra.mrb[0].mxu0 %v171
  %v416 = vpop.f32.mrb[0].mxu0
  %v417 = vadd.f32 0.0, %v416
  %v418 = vpop.f32.mrb[0].mxu0
  %v419 = vadd.f32 0.0, %v418
  %v420 = vpop.f32.mrb[0].mxu0
  %v421 = vadd.f32 0.0, %v420
  %v422 = vpop.f32.mrb[0].mxu0
  %v423 = vadd.f32 0.0, %v422
  %424 = vmatprep.mubr.bf16.mxu0 %v308
  %425 = vmatmul.mubr.bf16.gmra.mrb[0].mxu0 %v173
  %v426 = vpop.f32.mrb[0].mxu0
  %v427 = vadd.f32 0.0, %v426
  %v428 = vpop.f32.mrb[0].mxu0
  %v429 = vadd.f32 0.0, %v428
  %v430 = vpop.f32.mrb[0].mxu0
  %v431 = vadd.f32 0.0, %v430
  %v432 = vpop.f32.mrb[0].mxu0
  %v433 = vadd.f32 0.0, %v432
  %434 = vmatprep.mubr.bf16.mxu0 %v311
  %435 = vmatmul.mubr.bf16.gmra.mrb[0].mxu0 %v175
  %v436 = vpop.f32.mrb[0].mxu0
  %v437 = vadd.f32 0.0, %v436
  %v438 = vpop.f32.mrb[0].mxu0
  %v439 = vadd.f32 0.0, %v438
  %v440 = vpop.f32.mrb[0].mxu0
  %v441 = vadd.f32 0.0, %v440
  %v442 = vpop.f32.mrb[0].mxu0
  %v443 = vadd.f32 0.0, %v442
  %444 = vmatprep.mubr.bf16.mxu0 %v314
  %445 = vmatmul.mubr.bf16.gmra.mrb[0].mxu0 %v177
  %v446 = vpop.f32.mrb[0].mxu0
  %v447 = vadd.f32 0.0, %v446
  %v448 = vpop.f32.mrb[0].mxu0
  %v449 = vadd.f32 0.0, %v448
  %v450 = vpop.f32.mrb[0].mxu0
  %v451 = vadd.f32 0.0, %v450
  %v452 = vpop.f32.mrb[0].mxu0
  %v453 = vadd.f32 0.0, %v452
  %454 = vmatprep.mubr.bf16.mxu0 %v317
  %455 = vmatmul.mubr.bf16.gmra.mrb[0].mxu0 %v179
  %v456 = vpop.f32.mrb[0].mxu0
  %v457 = vadd.f32 0.0, %v456
  %v458 = vpop.f32.mrb[0].mxu0
  %v459 = vadd.f32 0.0, %v458
  %v460 = vpop.f32.mrb[0].mxu0
  %v461 = vadd.f32 0.0, %v460
  %v462 = vpop.f32.mrb[0].mxu0
  %v463 = vadd.f32 0.0, %v462
  %464 = vmatprep.mubr.bf16.mxu0 %v320
  %465 = vmatmul.mubr.bf16.gmra.mrb[0].mxu0 %v181
  %v466 = vpop.f32.mrb[0].mxu0
  %v467 = vadd.f32 0.0, %v466
  %v468 = vpop.f32.mrb[0].mxu0
  %v469 = vadd.f32 0.0, %v468
  %v470 = vpop.f32.mrb[0].mxu0
  %v471 = vpop.f32.mrb[0].mxu0
  %472 = vdwg.mxu0
  %474 = vset.pattern.permute.xlu0 0
  %475 = vperm.xlu0 %474, %v26
  %v476 = vpop.permute.xlu0 %475
  %479 = vset.pattern.permute.xlu0 0
  %480 = vperm.xlu0 %479, %v27
  %v481 = vpop.permute.xlu0 %480
  %484 = vset.pattern.permute.xlu0 0
  %485 = vperm.xlu0 %484, %v28
  %v486 = vpop.permute.xlu0 %485
  %489 = vset.pattern.permute.xlu0 0
  %490 = vperm.xlu0 %489, %v29
  %v491 = vpop.permute.xlu0 %490
  %494 = vset.pattern.permute.xlu0 0
  %495 = vperm.xlu0 %494, %v30
  %v496 = vpop.permute.xlu0 %495
  %499 = vset.pattern.permute.xlu0 0
  %500 = vperm.xlu0 %499, %v31
  %v501 = vpop.permute.xlu0 %500
  %504 = vset.pattern.permute.xlu0 0
  %505 = vperm.xlu0 %504, %v32
  %v506 = vpop.permute.xlu0 %505
  %509 = vset.pattern.permute.xlu0 0
  %510 = vperm.xlu0 %509, %v33
  %v511 = vpop.permute.xlu0 %510
  %514 = vset.pattern.permute.xlu0 0
  %515 = vperm.xlu0 %514, %v34
  %v516 = vpop.permute.xlu0 %515
  %519 = vset.pattern.permute.xlu0 0
  %520 = vperm.xlu0 %519, %v35
  %v521 = vpop.permute.xlu0 %520
  %524 = vset.pattern.permute.xlu0 0
  %525 = vperm.xlu0 %524, %v36
  %v526 = vpop.permute.xlu0 %525
  %529 = vset.pattern.permute.xlu0 0
  %530 = vperm.xlu0 %529, %v37
  %v531 = vpop.permute.xlu0 %530
  %534 = vset.pattern.permute.xlu0 0
  %535 = vperm.xlu0 %534, %v38
  %v536 = vpop.permute.xlu0 %535
  %539 = vset.pattern.permute.xlu0 0
  %540 = vperm.xlu0 %539, %v39
  %v541 = vpop.permute.xlu0 %540
  %544 = vset.pattern.permute.xlu0 0
  %545 = vperm.xlu0 %544, %v40
  %v546 = vpop.permute.xlu0 %545
  %549 = vset.pattern.permute.xlu0 0
  %550 = vperm.xlu0 %549, %v41
  %v551 = vpop.permute.xlu0 %550
  %554 = vset.pattern.permute.xlu0 0
  %555 = vperm.xlu0 %554, %v42
  %v556 = vpop.permute.xlu0 %555
  %559 = vset.pattern.permute.xlu0 0
  %560 = vperm.xlu0 %559, %v43
  %v561 = vpop.permute.xlu0 %560
  %564 = vset.pattern.permute.xlu0 0
  %565 = vperm.xlu0 %564, %v44
  %v566 = vpop.permute.xlu0 %565
  %569 = vset.pattern.permute.xlu0 0
  %570 = vperm.xlu0 %569, %v45
  %v571 = vpop.permute.xlu0 %570
  %574 = vset.pattern.permute.xlu0 0
  %575 = vperm.xlu0 %574, %v46
  %v576 = vpop.permute.xlu0 %575
  %579 = vset.pattern.permute.xlu0 0
  %580 = vperm.xlu0 %579, %v47
  %v581 = vpop.permute.xlu0 %580
  %584 = vset.pattern.permute.xlu0 0
  %585 = vperm.xlu0 %584, %v48
  %v586 = vpop.permute.xlu0 %585
  %v588 = vmul.f32 %v357, %v476
  %v589 = vmul.f32 %v359, %v476
  %v590 = vmul.f32 %v361, %v481
  %v591 = vmul.f32 %v363, %v481
  %v592 = vmul.f32 %v367, %v486
  %v593 = vmul.f32 %v369, %v486
  %v594 = vmul.f32 %v371, %v491
  %v595 = vmul.f32 %v373, %v491
  %v596 = vmul.f32 %v377, %v496
  %v597 = vmul.f32 %v379, %v496
  %v598 = vmul.f32 %v381, %v501
  %v599 = vmul.f32 %v383, %v501
  %v600 = vmul.f32 %v387, %v506
  %v601 = vmul.f32 %v389, %v506
  %v602 = vmul.f32 %v391, %v511
  %v603 = vmul.f32 %v393, %v511
  %v604 = vmul.f32 %v397, %v516
  %v605 = vmul.f32 %v399, %v516
  %v606 = vmul.f32 %v401, %v521
  %v607 = vmul.f32 %v403, %v521
  %v608 = vmul.f32 %v407, %v526
  %v609 = vmul.f32 %v409, %v526
  %v610 = vmul.f32 %v411, %v531
  %v611 = vmul.f32 %v413, %v531
  %v612 = vmul.f32 %v417, %v536
  %v613 = vmul.f32 %v419, %v536
  %v614 = vmul.f32 %v421, %v541
  %v615 = vmul.f32 %v423, %v541
  %v616 = vmul.f32 %v427, %v546
  %v617 = vmul.f32 %v429, %v546
  %v618 = vmul.f32 %v431, %v551
  %v619 = vmul.f32 %v433, %v551
  %v620 = vmul.f32 %v437, %v556
  %v621 = vmul.f32 %v439, %v556
  %v622 = vmul.f32 %v441, %v561
  %v623 = vmul.f32 %v443, %v561
  %v624 = vmul.f32 %v447, %v566
  %v625 = vmul.f32 %v449, %v566
  %v626 = vmul.f32 %v451, %v571
  %v627 = vmul.f32 %v453, %v571
  %v628 = vmul.f32 %v457, %v576
  %v629 = vmul.f32 %v459, %v576
  %v630 = vmul.f32 %v461, %v581
  %v631 = vmul.f32 %v463, %v581
  %v632 = vmul.f32 %v467, %v586
  %v633 = vmul.f32 %v469, %v586
  %v634 = vadd.f32 %v588, %v590
  %v635 = vadd.f32 %v634, %v592
  %v636 = vadd.f32 %v635, %v594
  %v637 = vadd.f32 %v636, %v596
  %v638 = vadd.f32 %v637, %v598
  %v639 = vadd.f32 %v638, %v600
  %v640 = vadd.f32 %v639, %v602
  %v641 = vadd.f32 %v640, %v604
  %v642 = vadd.f32 %v641, %v606
  %v643 = vadd.f32 %v642, %v608
  %v644 = vadd.f32 %v643, %v610
  %v645 = vadd.f32 %v644, %v612
  %v646 = vadd.f32 %v645, %v614
  %v647 = vadd.f32 %v646, %v616
  %v648 = vadd.f32 %v647, %v618
  %v649 = vadd.f32 %v648, %v620
  %v650 = vadd.f32 %v649, %v622
  %v651 = vadd.f32 %v650, %v624
  %v652 = vadd.f32 %v651, %v626
  %v653 = vadd.f32 %v652, %v628
  %v654 = vadd.f32 %v653, %v630
  %vm655 = vcmask 1043456
  %v656 = vsel %vm655, %v632, 0.0
  %v657 = vadd.f32 %v654, %v656
  %v658 = vrot.slane %v657, 4
  %v659 = vadd.f32 %v657, %v658
  %v660 = vrot.slane %v659, 2
  %v661 = vadd.f32 %v659, %v660
  %v662 = vrot.slane %v661, 1
  %v663 = vadd.f32 %v661, %v662
  %v664 = vadd.f32 %v589, %v591
  %v665 = vadd.f32 %v664, %v593
  %v666 = vadd.f32 %v665, %v595
  %v667 = vadd.f32 %v666, %v597
  %v668 = vadd.f32 %v667, %v599
  %v669 = vadd.f32 %v668, %v601
  %v670 = vadd.f32 %v669, %v603
  %v671 = vadd.f32 %v670, %v605
  %v672 = vadd.f32 %v671, %v607
  %v673 = vadd.f32 %v672, %v609
  %v674 = vadd.f32 %v673, %v611
  %v675 = vadd.f32 %v674, %v613
  %v676 = vadd.f32 %v675, %v615
  %v677 = vadd.f32 %v676, %v617
  %v678 = vadd.f32 %v677, %v619
  %v679 = vadd.f32 %v678, %v621
  %v680 = vadd.f32 %v679, %v623
  %v681 = vadd.f32 %v680, %v625
  %v682 = vadd.f32 %v681, %v627
  %v683 = vadd.f32 %v682, %v629
  %v684 = vadd.f32 %v683, %v631
  %v685 = vsel %vm655, %v633, 0.0
  %v686 = vadd.f32 %v684, %v685
  %v687 = vrot.slane %v686, 4
  %v688 = vadd.f32 %v686, %v687
  %v689 = vrot.slane %v688, 2
  %v690 = vadd.f32 %v688, %v689
  %v691 = vrot.slane %v690, 1
  %v692 = vadd.f32 %v690, %v691
  %v693 = vmul.f32 %v588, %v357
  %v694 = vmul.f32 %v589, %v359
  %v695 = vmul.f32 %v590, %v361
  %v696 = vmul.f32 %v591, %v363
  %v697 = vmul.f32 %v592, %v367
  %v698 = vmul.f32 %v593, %v369
  %v699 = vmul.f32 %v594, %v371
  %v700 = vmul.f32 %v595, %v373
  %v701 = vmul.f32 %v596, %v377
  %v702 = vmul.f32 %v597, %v379
  %v703 = vmul.f32 %v598, %v381
  %v704 = vmul.f32 %v599, %v383
  %v705 = vmul.f32 %v600, %v387
  %v706 = vmul.f32 %v601, %v389
  %v707 = vmul.f32 %v602, %v391
  %v708 = vmul.f32 %v603, %v393
  %v709 = vmul.f32 %v604, %v397
  %v710 = vmul.f32 %v605, %v399
  %v711 = vmul.f32 %v606, %v401
  %v712 = vmul.f32 %v607, %v403
  %v713 = vmul.f32 %v608, %v407
  %v714 = vmul.f32 %v609, %v409
  %v715 = vmul.f32 %v610, %v411
  %v716 = vmul.f32 %v611, %v413
  %v717 = vmul.f32 %v612, %v417
  %v718 = vmul.f32 %v613, %v419
  %v719 = vmul.f32 %v614, %v421
  %v720 = vmul.f32 %v615, %v423
  %v721 = vmul.f32 %v616, %v427
  %v722 = vmul.f32 %v617, %v429
  %v723 = vmul.f32 %v618, %v431
  %v724 = vmul.f32 %v619, %v433
  %v725 = vmul.f32 %v620, %v437
  %v726 = vmul.f32 %v621, %v439
  %v727 = vmul.f32 %v622, %v441
  %v728 = vmul.f32 %v623, %v443
  %v729 = vmul.f32 %v624, %v447
  %v730 = vmul.f32 %v625, %v449
  %v731 = vmul.f32 %v626, %v451
  %v732 = vmul.f32 %v627, %v453
  %v733 = vmul.f32 %v628, %v457
  %v734 = vmul.f32 %v629, %v459
  %v735 = vmul.f32 %v630, %v461
  %v736 = vmul.f32 %v631, %v463
  %v737 = vmul.f32 %v632, %v467
  %v738 = vmul.f32 %v633, %v469
  %v739 = vadd.f32 %v693, %v695
  %v740 = vadd.f32 %v739, %v697
  %v741 = vadd.f32 %v740, %v699
  %v742 = vadd.f32 %v741, %v701
  %v743 = vadd.f32 %v742, %v703
  %v744 = vadd.f32 %v743, %v705
  %v745 = vadd.f32 %v744, %v707
  %v746 = vadd.f32 %v745, %v709
  %v747 = vadd.f32 %v746, %v711
  %v748 = vadd.f32 %v747, %v713
  %v749 = vadd.f32 %v748, %v715
  %v750 = vadd.f32 %v749, %v717
  %v751 = vadd.f32 %v750, %v719
  %v752 = vadd.f32 %v751, %v721
  %v753 = vadd.f32 %v752, %v723
  %v754 = vadd.f32 %v753, %v725
  %v755 = vadd.f32 %v754, %v727
  %v756 = vadd.f32 %v755, %v729
  %v757 = vadd.f32 %v756, %v731
  %v758 = vadd.f32 %v757, %v733
  %v759 = vadd.f32 %v758, %v735
  %v760 = vsel %vm655, %v737, 0.0
  %v761 = vadd.f32 %v759, %v760
  %v762 = vrot.slane %v761, 4
  %v763 = vadd.f32 %v761, %v762
  %v764 = vrot.slane %v763, 2
  %v765 = vadd.f32 %v763, %v764
  %v766 = vrot.slane %v765, 1
  %v767 = vadd.f32 %v765, %v766
  %v768 = vadd.f32 %v694, %v696
  %v769 = vadd.f32 %v768, %v698
  %v770 = vadd.f32 %v769, %v700
  %v771 = vadd.f32 %v770, %v702
  %v772 = vadd.f32 %v771, %v704
  %v773 = vadd.f32 %v772, %v706
  %v774 = vadd.f32 %v773, %v708
  %v775 = vadd.f32 %v774, %v710
  %v776 = vadd.f32 %v775, %v712
  %v777 = vadd.f32 %v776, %v714
  %v778 = vadd.f32 %v777, %v716
  %v779 = vadd.f32 %v778, %v718
  %v780 = vadd.f32 %v779, %v720
  %v781 = vadd.f32 %v780, %v722
  %v782 = vadd.f32 %v781, %v724
  %v783 = vadd.f32 %v782, %v726
  %v784 = vadd.f32 %v783, %v728
  %v785 = vadd.f32 %v784, %v730
  %v786 = vadd.f32 %v785, %v732
  %v787 = vadd.f32 %v786, %v734
  %v788 = vadd.f32 %v787, %v736
  %v789 = vsel %vm655, %v738, 0.0
  %v790 = vadd.f32 %v788, %v789
  %v791 = vrot.slane %v790, 4
  %v792 = vadd.f32 %v790, %v791
  %v793 = vrot.slane %v792, 2
  %v794 = vadd.f32 %v792, %v793
  %v795 = vrot.slane %v794, 1
  %v796 = vadd.f32 %v794, %v795
  %vm797 = vcmask 1040384
  %v798 = vsel %vm797, %v663, %v767
  %v799 = vsel %vm797, %v692, %v796
  %801 = vrot.lane.b32.xlu0 %v799, 16
  %v802 = vpop.permute.xlu0 %801
  %805 = vrot.lane.b32.xlu0 %v798, 16
  %v806 = vpop.permute.xlu0 %805
  %v807 = vsel %vm285, %v806, %v802
  %v810 = vsel %vm285, %v802, %v806
  %v811 = vadd.f32 %v798, %v810
  %v812 = vadd.f32 %v799, %v807
  %814 = vrot.lane.b32.xlu0 %v812, 32
  %v815 = vpop.permute.xlu0 %814
  %818 = vrot.lane.b32.xlu0 %v811, 32
  %v819 = vpop.permute.xlu0 %818
  %vm820 = vcmask 261120
  %v821 = vsel %vm820, %v819, %v815
  %v824 = vsel %vm820, %v815, %v819
  %v825 = vadd.f32 %v811, %v824
  %v826 = vadd.f32 %v812, %v821
  %828 = vrot.lane.b32.xlu0 %v826, 64
  %v829 = vpop.permute.xlu0 %828
  %832 = vrot.lane.b32.xlu0 %v825, 64
  %v833 = vpop.permute.xlu0 %832
  %vm834 = vcmask 523264
  %v835 = vsel %vm834, %v833, %v829
  %v838 = vsel %vm834, %v829, %v833
  %v839 = vadd.f32 %v825, %v838
  %v840 = vadd.f32 %v826, %v835
  %v841 = vadd.f32 %v839, %v840
  %v842 = vmul.f32 %v841, 0.000390625
  %v843 = vmul.f32 %v842, %v842
  %v845 = vrot.slane %v843, 7
  %v847 = vsub.f32 %v842, %v845
  %v848 = vadd.f32 %v847, 1e-05
  %v849 = vrsqrt.pop %v848
  %v851 = vrot.slane %v849, 1
  %v853 = vmul.f32 %v24, %v851
  %v854 = vmul.f32 %v25, %v851
  %v855 = vmul.f32 %v842, %v853
  %v856 = vmul.f32 %v842, %v854
  %v859 = vrot.slane %v855, 7
  %v860 = vrot.slane %v856, 7
  %v863 = vsub.f32 %v24, %v859
  %v864 = vsub.f32 %v25, %v860
  %v865 = vlaneseq
  %v866 = vshrl.u32 %v865, 7
  %v867 = vsub.s32 0, %v866
  %v868 = vrot.slane %v853, %v867
  %v869 = vlaneseq
  %v870 = vshrl.u32 %v869, 7
  %v871 = vsub.s32 0, %v870
  %v872 = vrot.slane %v854, %v871
  %v873 = vmul.f32 %v357, %v868
  %v874 = vmul.f32 %v359, %v872
  %v875 = vmul.f32 %v361, %v868
  %v876 = vmul.f32 %v363, %v872
  %v877 = vmul.f32 %v367, %v868
  %v878 = vmul.f32 %v369, %v872
  %v879 = vmul.f32 %v371, %v868
  %v880 = vmul.f32 %v373, %v872
  %v881 = vmul.f32 %v377, %v868
  %v882 = vmul.f32 %v379, %v872
  %v883 = vmul.f32 %v381, %v868
  %v884 = vmul.f32 %v383, %v872
  %v885 = vmul.f32 %v387, %v868
  %v886 = vmul.f32 %v389, %v872
  %v887 = vmul.f32 %v391, %v868
  %v888 = vmul.f32 %v393, %v872
  %v889 = vmul.f32 %v397, %v868
  %v890 = vmul.f32 %v399, %v872
  %v891 = vmul.f32 %v401, %v868
  %v892 = vmul.f32 %v403, %v872
  %v893 = vmul.f32 %v407, %v868
  %v894 = vmul.f32 %v409, %v872
  %v895 = vmul.f32 %v411, %v868
  %v896 = vmul.f32 %v413, %v872
  %v897 = vmul.f32 %v417, %v868
  %v898 = vmul.f32 %v419, %v872
  %v899 = vmul.f32 %v421, %v868
  %v900 = vmul.f32 %v423, %v872
  %v901 = vmul.f32 %v427, %v868
  %v902 = vmul.f32 %v429, %v872
  %v903 = vmul.f32 %v431, %v868
  %v904 = vmul.f32 %v433, %v872
  %v905 = vmul.f32 %v437, %v868
  %v906 = vmul.f32 %v439, %v872
  %v907 = vmul.f32 %v441, %v868
  %v908 = vmul.f32 %v443, %v872
  %v909 = vmul.f32 %v447, %v868
  %v910 = vmul.f32 %v449, %v872
  %v911 = vmul.f32 %v451, %v868
  %v912 = vmul.f32 %v453, %v872
  %v913 = vmul.f32 %v457, %v868
  %v914 = vmul.f32 %v459, %v872
  %v915 = vmul.f32 %v461, %v868
  %v916 = vmul.f32 %v463, %v872
  %v917 = vmul.f32 %v467, %v868
  %v918 = vmul.f32 %v469, %v872
  %v919 = vlaneseq
  %v920 = vshrl.u32 %v919, 7
  %v921 = vsub.s32 1, %v920
  %v922 = vrot.slane %v863, %v921
  %v923 = vlaneseq
  %v924 = vshrl.u32 %v923, 7
  %v925 = vsub.s32 1, %v924
  %v926 = vrot.slane %v864, %v925
  %v927 = vadd.f32 %v873, %v922
  %v928 = vadd.f32 %v874, %v926
  %v929 = vadd.f32 %v875, %v922
  %v930 = vadd.f32 %v876, %v926
  %v931 = vadd.f32 %v877, %v922
  %v932 = vadd.f32 %v878, %v926
  %v933 = vadd.f32 %v879, %v922
  %v934 = vadd.f32 %v880, %v926
  %v935 = vadd.f32 %v881, %v922
  %v936 = vadd.f32 %v882, %v926
  %v937 = vadd.f32 %v883, %v922
  %v938 = vadd.f32 %v884, %v926
  %v939 = vadd.f32 %v885, %v922
  %v940 = vadd.f32 %v886, %v926
  %v941 = vadd.f32 %v887, %v922
  %v942 = vadd.f32 %v888, %v926
  %v943 = vadd.f32 %v889, %v922
  %v944 = vadd.f32 %v890, %v926
  %v945 = vadd.f32 %v891, %v922
  %v946 = vadd.f32 %v892, %v926
  %v947 = vadd.f32 %v893, %v922
  %v948 = vadd.f32 %v894, %v926
  %v949 = vadd.f32 %v895, %v922
  %v950 = vadd.f32 %v896, %v926
  %v951 = vadd.f32 %v897, %v922
  %v952 = vadd.f32 %v898, %v926
  %v953 = vadd.f32 %v899, %v922
  %v954 = vadd.f32 %v900, %v926
  %v955 = vadd.f32 %v901, %v922
  %v956 = vadd.f32 %v902, %v926
  %v957 = vadd.f32 %v903, %v922
  %v958 = vadd.f32 %v904, %v926
  %v959 = vadd.f32 %v905, %v922
  %v960 = vadd.f32 %v906, %v926
  %v961 = vadd.f32 %v907, %v922
  %v962 = vadd.f32 %v908, %v926
  %v963 = vadd.f32 %v909, %v922
  %v964 = vadd.f32 %v910, %v926
  %v965 = vadd.f32 %v911, %v922
  %v966 = vadd.f32 %v912, %v926
  %v967 = vadd.f32 %v913, %v922
  %v968 = vadd.f32 %v914, %v926
  %v969 = vadd.f32 %v915, %v922
  %v970 = vadd.f32 %v916, %v926
  %v971 = vadd.f32 %v917, %v922
  %v972 = vadd.f32 %v918, %v926
  %v973 = vmax.f32 %v927, 0.0
  %v974 = vmax.f32 %v928, 0.0
  %v975 = vmax.f32 %v929, 0.0
  %v976 = vmax.f32 %v930, 0.0
  %v977 = vmax.f32 %v931, 0.0
  %v978 = vmax.f32 %v932, 0.0
  %v979 = vmax.f32 %v933, 0.0
  %v980 = vmax.f32 %v934, 0.0
  %v981 = vmax.f32 %v935, 0.0
  %v982 = vmax.f32 %v936, 0.0
  %v983 = vmax.f32 %v937, 0.0
  %v984 = vmax.f32 %v938, 0.0
  %v985 = vmax.f32 %v939, 0.0
  %v986 = vmax.f32 %v940, 0.0
  %v987 = vmax.f32 %v941, 0.0
  %v988 = vmax.f32 %v942, 0.0
  %v989 = vmax.f32 %v943, 0.0
  %v990 = vmax.f32 %v944, 0.0
  %v991 = vmax.f32 %v945, 0.0
  %v992 = vmax.f32 %v946, 0.0
  %v993 = vmax.f32 %v947, 0.0
  %v994 = vmax.f32 %v948, 0.0
  %v995 = vmax.f32 %v949, 0.0
  %v996 = vmax.f32 %v950, 0.0
  %v997 = vmax.f32 %v951, 0.0
  %v998 = vmax.f32 %v952, 0.0
  %v999 = vmax.f32 %v953, 0.0
  %v1000 = vmax.f32 %v954, 0.0
  %v1001 = vmax.f32 %v955, 0.0
  %v1002 = vmax.f32 %v956, 0.0
  %v1003 = vmax.f32 %v957, 0.0
  %v1004 = vmax.f32 %v958, 0.0
  %v1005 = vmax.f32 %v959, 0.0
  %v1006 = vmax.f32 %v960, 0.0
  %v1007 = vmax.f32 %v961, 0.0
  %v1008 = vmax.f32 %v962, 0.0
  %v1009 = vmax.f32 %v963, 0.0
  %v1010 = vmax.f32 %v964, 0.0
  %v1011 = vmax.f32 %v965, 0.0
  %v1012 = vmax.f32 %v966, 0.0
  %v1013 = vmax.f32 %v967, 0.0
  %v1014 = vmax.f32 %v968, 0.0
  %v1015 = vmax.f32 %v969, 0.0
  %v1016 = vmax.f32 %v970, 0.0
  %v1017 = vmax.f32 %v971, 0.0
  %v1018 = vmax.f32 %v972, 0.0
  %vm1065 = vcmask 1046528
  %v1066 = vrot.slane %v973, 1
  %v1067 = vrot.slane %v975, 1
  %v1068 = vsel %vm1065, %v1066, %v1067
  %v1069 = vrot.slane %v974, 1
  %v1070 = vrot.slane %v976, 1
  %v1071 = vsel %vm1065, %v1069, %v1070
  %v1072 = vrot.slane %v977, 1
  %v1073 = vsel %vm1065, %v1067, %v1072
  %v1074 = vrot.slane %v978, 1
  %v1075 = vsel %vm1065, %v1070, %v1074
  %v1076 = vrot.slane %v979, 1
  %v1077 = vsel %vm1065, %v1072, %v1076
  %v1078 = vrot.slane %v980, 1
  %v1079 = vsel %vm1065, %v1074, %v1078
  %v1080 = vrot.slane %v981, 1
  %v1081 = vsel %vm1065, %v1076, %v1080
  %v1082 = vrot.slane %v982, 1
  %v1083 = vsel %vm1065, %v1078, %v1082
  %v1084 = vrot.slane %v983, 1
  %v1085 = vsel %vm1065, %v1080, %v1084
  %v1086 = vrot.slane %v984, 1
  %v1087 = vsel %vm1065, %v1082, %v1086
  %v1088 = vrot.slane %v985, 1
  %v1089 = vsel %vm1065, %v1084, %v1088
  %v1090 = vrot.slane %v986, 1
  %v1091 = vsel %vm1065, %v1086, %v1090
  %v1092 = vrot.slane %v987, 1
  %v1093 = vsel %vm1065, %v1088, %v1092
  %v1094 = vrot.slane %v988, 1
  %v1095 = vsel %vm1065, %v1090, %v1094
  %v1096 = vrot.slane %v989, 1
  %v1097 = vsel %vm1065, %v1092, %v1096
  %v1098 = vrot.slane %v990, 1
  %v1099 = vsel %vm1065, %v1094, %v1098
  %v1100 = vrot.slane %v991, 1
  %v1101 = vsel %vm1065, %v1096, %v1100
  %v1102 = vrot.slane %v992, 1
  %v1103 = vsel %vm1065, %v1098, %v1102
  %v1104 = vrot.slane %v993, 1
  %v1105 = vsel %vm1065, %v1100, %v1104
  %v1106 = vrot.slane %v994, 1
  %v1107 = vsel %vm1065, %v1102, %v1106
  %v1108 = vrot.slane %v995, 1
  %v1109 = vsel %vm1065, %v1104, %v1108
  %v1110 = vrot.slane %v996, 1
  %v1111 = vsel %vm1065, %v1106, %v1110
  %v1112 = vrot.slane %v997, 1
  %v1113 = vsel %vm1065, %v1108, %v1112
  %v1114 = vrot.slane %v998, 1
  %v1115 = vsel %vm1065, %v1110, %v1114
  %v1116 = vrot.slane %v999, 1
  %v1117 = vsel %vm1065, %v1112, %v1116
  %v1118 = vrot.slane %v1000, 1
  %v1119 = vsel %vm1065, %v1114, %v1118
  %v1120 = vrot.slane %v1001, 1
  %v1121 = vsel %vm1065, %v1116, %v1120
  %v1122 = vrot.slane %v1002, 1
  %v1123 = vsel %vm1065, %v1118, %v1122
  %v1124 = vrot.slane %v1003, 1
  %v1125 = vsel %vm1065, %v1120, %v1124
  %v1126 = vrot.slane %v1004, 1
  %v1127 = vsel %vm1065, %v1122, %v1126
  %v1128 = vrot.slane %v1005, 1
  %v1129 = vsel %vm1065, %v1124, %v1128
  %v1130 = vrot.slane %v1006, 1
  %v1131 = vsel %vm1065, %v1126, %v1130
  %v1132 = vrot.slane %v1007, 1
  %v1133 = vsel %vm1065, %v1128, %v1132
  %v1134 = vrot.slane %v1008, 1
  %v1135 = vsel %vm1065, %v1130, %v1134
  %v1136 = vrot.slane %v1009, 1
  %v1137 = vsel %vm1065, %v1132, %v1136
  %v1138 = vrot.slane %v1010, 1
  %v1139 = vsel %vm1065, %v1134, %v1138
  %v1140 = vrot.slane %v1011, 1
  %v1141 = vsel %vm1065, %v1136, %v1140
  %v1142 = vrot.slane %v1012, 1
  %v1143 = vsel %vm1065, %v1138, %v1142
  %v1144 = vrot.slane %v1013, 1
  %v1145 = vsel %vm1065, %v1140, %v1144
  %v1146 = vrot.slane %v1014, 1
  %v1147 = vsel %vm1065, %v1142, %v1146
  %v1148 = vrot.slane %v1015, 1
  %v1149 = vsel %vm1065, %v1144, %v1148
  %v1150 = vrot.slane %v1016, 1
  %v1151 = vsel %vm1065, %v1146, %v1150
  %v1152 = vrot.slane %v1017, 1
  %v1153 = vsel %vm1065, %v1148, %v1152
  %v1154 = vrot.slane %v1018, 1
  %v1155 = vsel %vm1065, %v1150, %v1154
  %v1202 = vmax.f32 %v973, %v1068
  %v1203 = vmax.f32 %v974, %v1071
  %v1204 = vmax.f32 %v975, %v1073
  %v1205 = vmax.f32 %v976, %v1075
  %v1206 = vmax.f32 %v977, %v1077
  %v1207 = vmax.f32 %v978, %v1079
  %v1208 = vmax.f32 %v979, %v1081
  %v1209 = vmax.f32 %v980, %v1083
  %v1210 = vmax.f32 %v981, %v1085
  %v1211 = vmax.f32 %v982, %v1087
  %v1212 = vmax.f32 %v983, %v1089
  %v1213 = vmax.f32 %v984, %v1091
  %v1214 = vmax.f32 %v985, %v1093
  %v1215 = vmax.f32 %v986, %v1095
  %v1216 = vmax.f32 %v987, %v1097
  %v1217 = vmax.f32 %v988, %v1099
  %v1218 = vmax.f32 %v989, %v1101
  %v1219 = vmax.f32 %v990, %v1103
  %v1220 = vmax.f32 %v991, %v1105
  %v1221 = vmax.f32 %v992, %v1107
  %v1222 = vmax.f32 %v993, %v1109
  %v1223 = vmax.f32 %v994, %v1111
  %v1224 = vmax.f32 %v995, %v1113
  %v1225 = vmax.f32 %v996, %v1115
  %v1226 = vmax.f32 %v997, %v1117
  %v1227 = vmax.f32 %v998, %v1119
  %v1228 = vmax.f32 %v999, %v1121
  %v1229 = vmax.f32 %v1000, %v1123
  %v1230 = vmax.f32 %v1001, %v1125
  %v1231 = vmax.f32 %v1002, %v1127
  %v1232 = vmax.f32 %v1003, %v1129
  %v1233 = vmax.f32 %v1004, %v1131
  %v1234 = vmax.f32 %v1005, %v1133
  %v1235 = vmax.f32 %v1006, %v1135
  %v1236 = vmax.f32 %v1007, %v1137
  %v1237 = vmax.f32 %v1008, %v1139
  %v1238 = vmax.f32 %v1009, %v1141
  %v1239 = vmax.f32 %v1010, %v1143
  %v1240 = vmax.f32 %v1011, %v1145
  %v1241 = vmax.f32 %v1012, %v1147
  %v1242 = vmax.f32 %v1013, %v1149
  %v1243 = vmax.f32 %v1014, %v1151
  %v1244 = vmax.f32 %v1015, %v1153
  %v1245 = vmax.f32 %v1016, %v1155
  %v1246 = vmax.f32 %v1017, %v1152
  %v1247 = vmax.f32 %v1018, %v1154
  %v1248 = vpack.c.bf16 %v1204, %v1202
  %v1249 = vpack.c.bf16 %v1205, %v1203
  %v1250 = vpack.c.bf16 %v1208, %v1206
  %v1251 = vpack.c.bf16 %v1209, %v1207
  %v1252 = vpack.c.bf16 %v1212, %v1210
  %v1253 = vpack.c.bf16 %v1213, %v1211
  %v1254 = vpack.c.bf16 %v1216, %v1214
  %v1255 = vpack.c.bf16 %v1217, %v1215
  %v1256 = vpack.c.bf16 %v1220, %v1218
  %v1257 = vpack.c.bf16 %v1221, %v1219
  %v1258 = vpack.c.bf16 %v1224, %v1222
  %v1259 = vpack.c.bf16 %v1225, %v1223
  %v1260 = vpack.c.bf16 %v1228, %v1226
  %v1261 = vpack.c.bf16 %v1229, %v1227
  %v1262 = vpack.c.bf16 %v1232, %v1230
  %v1263 = vpack.c.bf16 %v1233, %v1231
  %v1264 = vpack.c.bf16 %v1236, %v1234
  %v1265 = vpack.c.bf16 %v1237, %v1235
  %v1266 = vpack.c.bf16 %v1240, %v1238
  %v1267 = vpack.c.bf16 %v1241, %v1239
  %v1268 = vpack.c.bf16 %v1244, %v1242
  %v1269 = vpack.c.bf16 %v1245, %v1243
  %v1270 = vpack.c.bf16 %v1246, %v1246
  %v1271 = vpack.c.bf16 %v1247, %v1247
  %v1272 = vld [vmem:[%s3] sm:$0xff]
  %v1273 = vld [vmem:[%s3 + $0x8] sm:$0xff]
  %v1274 = vld [vmem:[%s3 + $0x10] sm:$0xff]
  %v1275 = vld [vmem:[%s3 + $0x18] sm:$0xff]
  %v1276 = vld [vmem:[%s3 + $0x20] sm:$0xff]
  %v1277 = vld [vmem:[%s3 + $0x28] sm:$0xff]
  %v1278 = vld [vmem:[%s3 + $0x30] sm:$0xff]
  %v1279 = vld [vmem:[%s3 + $0x38] sm:$0xff]
  %v1280 = vld [vmem:[%s3 + $0x40] sm:$0xff]
  %v1281 = vld [vmem:[%s3 + $0x48] sm:$0xff]
  %v1282 = vld [vmem:[%s3 + $0x50] sm:$0xff]
  %v1283 = vld [vmem:[%s3 + $0x58] sm:$0xff]
  %v1284 = vld [vmem:[%s3 + $0x60] sm:$0x33]
  %v1298 = vunpack.c.l.b16 %v1272
  %v1299 = vunpack.c.h.b16 %v1272
  %v1300 = vunpack.c.l.b16 %v1273
  %v1301 = vunpack.c.h.b16 %v1273
  %v1302 = vunpack.c.l.b16 %v1274
  %v1303 = vunpack.c.h.b16 %v1274
  %v1304 = vunpack.c.l.b16 %v1275
  %v1305 = vunpack.c.h.b16 %v1275
  %v1306 = vunpack.c.l.b16 %v1276
  %v1307 = vunpack.c.h.b16 %v1276
  %v1308 = vunpack.c.l.b16 %v1277
  %v1309 = vunpack.c.h.b16 %v1277
  %v1310 = vunpack.c.l.b16 %v1278
  %v1311 = vunpack.c.h.b16 %v1278
  %v1312 = vunpack.c.l.b16 %v1279
  %v1313 = vunpack.c.h.b16 %v1279
  %v1314 = vunpack.c.l.b16 %v1280
  %v1315 = vunpack.c.h.b16 %v1280
  %v1316 = vunpack.c.l.b16 %v1281
  %v1317 = vunpack.c.h.b16 %v1281
  %v1318 = vunpack.c.l.b16 %v1282
  %v1319 = vunpack.c.h.b16 %v1282
  %v1320 = vunpack.c.l.b16 %v1283
  %v1321 = vunpack.c.h.b16 %v1283
  %v1322 = vunpack.c.l.b16 %v1284
  %v1323 = vunpack.c.h.b16 %v1284
  %v1324 = vpack.c.b16 %v1300, %v1298
  %v1325 = vpack.c.b16 %v1301, %v1299
  %v1326 = vpack.c.b16 %v1304, %v1302
  %v1327 = vpack.c.b16 %v1305, %v1303
  %v1328 = vpack.c.b16 %v1308, %v1306
  %v1329 = vpack.c.b16 %v1309, %v1307
  %v1330 = vpack.c.b16 %v1312, %v1310
  %v1331 = vpack.c.b16 %v1313, %v1311
  %v1332 = vpack.c.b16 %v1316, %v1314
  %v1333 = vpack.c.b16 %v1317, %v1315
  %v1334 = vpack.c.b16 %v1320, %v1318
  %v1335 = vpack.c.b16 %v1321, %v1319
  %v1336 = vpack.c.b16 %v1322, %v1322
  %v1337 = vpack.c.b16 %v1323, %v1323
  %vm1345 = vcmask 416768
  %v1347 = vsel %vm1345, %v1325, 0
  %v1350 = vsel %vm1345, %v1327, 0
  %v1353 = vsel %vm1345, %v1329, 0
  %v1356 = vsel %vm1345, %v1331, 0
  %v1359 = vsel %vm1345, %v1333, 0
  %v1362 = vsel %vm1345, %v1335, 0
  %v1365 = vsel %vm1345, %v1337, 0
  %vm1367 = vcmask 1041408
  %v1368 = vsel %vm797, 4294967295, 65535
  %v1369 = vsel %vm1367, %v1368, 0
  %v1371 = vand.u32 %v1270, %v1369
  %v1374 = vand.u32 %v1271, %v1369
  %1376 = vmatprep.subr.bf16.mxu0 %v1249
  %1377 = vmatpush1.bf16.msra.mxu0 %v1248
  %1378 = vmatprep.subr.bf16.mxu0 %v1251
  %1379 = vmatpush1.bf16.msra.mxu0 %v1250
  %1380 = vmatprep.subr.bf16.mxu0 %v1253
  %1381 = vmatpush1.bf16.msra.mxu0 %v1252
  %1382 = vmatprep.subr.bf16.mxu0 %v1255
  %1383 = vmatpush1.bf16.msra.mxu0 %v1254
  %1384 = vmatprep.subr.bf16.mxu0 %v1257
  %1385 = vmatpush1.bf16.msra.mxu0 %v1256
  %1386 = vmatprep.subr.bf16.mxu0 %v1259
  %1387 = vmatpush1.bf16.msra.mxu0 %v1258
  %1388 = vmatprep.subr.bf16.mxu0 %v1261
  %1389 = vmatpush1.bf16.msra.mxu0 %v1260
  %1390 = vmatprep.subr.bf16.mxu0 %v1263
  %1391 = vmatpush1.bf16.msra.mxu0 %v1262
  %1392 = vmatprep.subr.bf16.mxu0 %v1265
  %1393 = vmatpush1.bf16.msra.mxu0 %v1264
  %1394 = vmatprep.subr.bf16.mxu0 %v1267
  %1395 = vmatpush1.bf16.msra.mxu0 %v1266
  %1396 = vmatprep.subr.bf16.mxu0 %v1269
  %1397 = vmatpush1.bf16.msra.mxu0 %v1268
  %1398 = vmatprep.subr.bf16.mxu0 %v1374
  %1399 = vmatpush1.bf16.msra.mxu0 %v1371
  %1400 = vmatprep.subr.bf16.mxu0 0
  %1401 = vmatpush1.bf16.msra.mxu0 0
  %1402 = vmatprep.subr.bf16.mxu0 0
  %1403 = vmatpush1.bf16.msra.mxu0 0
  %1404 = vmatprep.subr.bf16.mxu0 0
  %1405 = vmatpush1.bf16.msra.mxu0 0
  %1406 = vmatprep.subr.bf16.mxu0 0
  %1407 = vmatpush1.bf16.msra.mxu0 0
  %1408 = vmatprep.mubr.bf16.mxu0 %v1347
  %1409 = vmatmul.mubr.bf16.gmra.mrb[0].mxu0 %v1324
  %v1410 = vpop.f32.mrb[0].mxu0
  %v1411 = vadd.f32 0.0, %v1410
  %v1412 = vpop.f32.mrb[0].mxu0
  %v1413 = vadd.f32 0.0, %v1412
  %v1414 = vpop.f32.mrb[0].mxu0
  %v1415 = vadd.f32 0.0, %v1414
  %v1416 = vpop.f32.mrb[0].mxu0
  %v1417 = vadd.f32 0.0, %v1416
  %1418 = vmatprep.mubr.bf16.mxu0 %v1350
  %1419 = vmatmul.mubr.bf16.gmra.mrb[0].mxu0 %v1326
  %v1420 = vpop.f32.mrb[0].mxu0
  %v1421 = vadd.f32 0.0, %v1420
  %v1422 = vpop.f32.mrb[0].mxu0
  %v1423 = vadd.f32 0.0, %v1422
  %v1424 = vpop.f32.mrb[0].mxu0
  %v1425 = vadd.f32 0.0, %v1424
  %v1426 = vpop.f32.mrb[0].mxu0
  %v1427 = vadd.f32 0.0, %v1426
  %1428 = vmatprep.mubr.bf16.mxu0 %v1353
  %1429 = vmatmul.mubr.bf16.gmra.mrb[0].mxu0 %v1328
  %v1430 = vpop.f32.mrb[0].mxu0
  %v1431 = vadd.f32 0.0, %v1430
  %v1432 = vpop.f32.mrb[0].mxu0
  %v1433 = vadd.f32 0.0, %v1432
  %v1434 = vpop.f32.mrb[0].mxu0
  %v1435 = vadd.f32 0.0, %v1434
  %v1436 = vpop.f32.mrb[0].mxu0
  %v1437 = vadd.f32 0.0, %v1436
  %1438 = vmatprep.mubr.bf16.mxu0 %v1356
  %1439 = vmatmul.mubr.bf16.gmra.mrb[0].mxu0 %v1330
  %v1440 = vpop.f32.mrb[0].mxu0
  %v1441 = vadd.f32 0.0, %v1440
  %v1442 = vpop.f32.mrb[0].mxu0
  %v1443 = vadd.f32 0.0, %v1442
  %v1444 = vpop.f32.mrb[0].mxu0
  %v1445 = vadd.f32 0.0, %v1444
  %v1446 = vpop.f32.mrb[0].mxu0
  %v1447 = vadd.f32 0.0, %v1446
  %1448 = vmatprep.mubr.bf16.mxu0 %v1359
  %1449 = vmatmul.mubr.bf16.gmra.mrb[0].mxu0 %v1332
  %v1450 = vpop.f32.mrb[0].mxu0
  %v1451 = vadd.f32 0.0, %v1450
  %v1452 = vpop.f32.mrb[0].mxu0
  %v1453 = vadd.f32 0.0, %v1452
  %v1454 = vpop.f32.mrb[0].mxu0
  %v1455 = vadd.f32 0.0, %v1454
  %v1456 = vpop.f32.mrb[0].mxu0
  %v1457 = vadd.f32 0.0, %v1456
  %1458 = vmatprep.mubr.bf16.mxu0 %v1362
  %1459 = vmatmul.mubr.bf16.gmra.mrb[0].mxu0 %v1334
  %v1460 = vpop.f32.mrb[0].mxu0
  %v1461 = vadd.f32 0.0, %v1460
  %v1462 = vpop.f32.mrb[0].mxu0
  %v1463 = vadd.f32 0.0, %v1462
  %v1464 = vpop.f32.mrb[0].mxu0
  %v1465 = vadd.f32 0.0, %v1464
  %v1466 = vpop.f32.mrb[0].mxu0
  %v1467 = vadd.f32 0.0, %v1466
  %1468 = vmatprep.mubr.bf16.mxu0 %v1365
  %1469 = vmatmul.mubr.bf16.gmra.mrb[0].mxu0 %v1336
  %v1470 = vpop.f32.mrb[0].mxu0
  %v1471 = vadd.f32 0.0, %v1470
  %v1472 = vpop.f32.mrb[0].mxu0
  %v1473 = vadd.f32 0.0, %v1472
  %v1474 = vpop.f32.mrb[0].mxu0
  %v1475 = vpop.f32.mrb[0].mxu0
  %1476 = vdwg.mxu0
  %v1477 = vld [vmem:[%s3 + $0xe0] sm:$0xff]
  %v1478 = vld [vmem:[%s3 + $0xe8] sm:$0xff]
  %v1479 = vld [vmem:[%s3 + $0xf0] sm:$0xff]
  %v1480 = vld [vmem:[%s3 + $0xf8] sm:$0xff]
  %v1481 = vld [vmem:[%s3 + $0x100] sm:$0xff]
  %v1482 = vld [vmem:[%s3 + $0x108] sm:$0xff]
  %v1483 = vld [vmem:[%s3 + $0x110] sm:$0xff]
  %v1484 = vld [vmem:[%s3 + $0x118] sm:$0xff]
  %v1485 = vld [vmem:[%s3 + $0x120] sm:$0xff]
  %v1486 = vld [vmem:[%s3 + $0x128] sm:$0xff]
  %v1487 = vld [vmem:[%s3 + $0x130] sm:$0xff]
  %v1488 = vld [vmem:[%s3 + $0x138] sm:$0xff]
  %v1489 = vld [vmem:[%s3 + $0x140] sm:$0xff]
  %v1490 = vld [vmem:[%s3 + $0x148] sm:$0xff]
  %v1491 = vld [vmem:[%s3 + $0x150] sm:$0xff]
  %v1492 = vld [vmem:[%s3 + $0x158] sm:$0xff]
  %v1493 = vld [vmem:[%s3 + $0x160] sm:$0xff]
  %v1494 = vld [vmem:[%s3 + $0x168] sm:$0xff]
  %v1495 = vld [vmem:[%s3 + $0x170] sm:$0xff]
  %v1496 = vld [vmem:[%s3 + $0x178] sm:$0xff]
  %v1497 = vld [vmem:[%s3 + $0x180] sm:$0xff]
  %v1498 = vld [vmem:[%s3 + $0x188] sm:$0xff]
  %v1499 = vld [vmem:[%s3 + $0x190] sm:$0xff]
  %v1500 = vld [vmem:[%s3 + $0x198] sm:$0xff]
  %v1501 = vld [vmem:[%s3 + $0x1a0] sm:$0xff]
  %v1502 = vld [vmem:[%s3 + $0x1a8] sm:$0xff]
  %v1503 = vld [vmem:[%s3 + $0x1b0] sm:$0xff]
  %v1504 = vld [vmem:[%s3 + $0x1b8] sm:$0xff]
  %v1505 = vld [vmem:[%s3 + $0x1c0] sm:$0xff]
  %v1506 = vld [vmem:[%s3 + $0x1c8] sm:$0xff]
  %v1507 = vld [vmem:[%s3 + $0x1d0] sm:$0xff]
  %v1508 = vld [vmem:[%s3 + $0x1d8] sm:$0xff]
  %v1509 = vpack.c.bf16 %v1415, %v1411
  %v1510 = vpack.c.bf16 %v1417, %v1413
  %v1511 = vpack.c.bf16 %v1425, %v1421
  %v1512 = vpack.c.bf16 %v1427, %v1423
  %v1513 = vpack.c.bf16 %v1435, %v1431
  %v1514 = vpack.c.bf16 %v1437, %v1433
  %v1515 = vpack.c.bf16 %v1445, %v1441
  %v1516 = vpack.c.bf16 %v1447, %v1443
  %v1517 = vpack.c.bf16 %v1455, %v1451
  %v1518 = vpack.c.bf16 %v1457, %v1453
  %v1519 = vpack.c.bf16 %v1465, %v1461
  %v1520 = vpack.c.bf16 %v1467, %v1463
  %v1521 = vpack.c.bf16 %v1471, %v1471
  %v1522 = vpack.c.bf16 %v1473, %v1473
  %v1555 = vunpack.c.l.b16 %v1477
  %v1556 = vunpack.c.h.b16 %v1477
  %v1557 = vunpack.c.l.b16 %v1478
  %v1558 = vunpack.c.h.b16 %v1478
  %v1559 = vunpack.c.l.b16 %v1479
  %v1560 = vunpack.c.h.b16 %v1479
  %v1561 = vunpack.c.l.b16 %v1480
  %v1562 = vunpack.c.h.b16 %v1480
  %v1563 = vunpack.c.l.b16 %v1481
  %v1564 = vunpack.c.h.b16 %v1481
  %v1565 = vunpack.c.l.b16 %v1482
  %v1566 = vunpack.c.h.b16 %v1482
  %v1567 = vunpack.c.l.b16 %v1483
  %v1568 = vunpack.c.h.b16 %v1483
  %v1569 = vunpack.c.l.b16 %v1484
  %v1570 = vunpack.c.h.b16 %v1484
  %v1571 = vunpack.c.l.b16 %v1485
  %v1572 = vunpack.c.h.b16 %v1485
  %v1573 = vunpack.c.l.b16 %v1486
  %v1574 = vunpack.c.h.b16 %v1486
  %v1575 = vunpack.c.l.b16 %v1487
  %v1576 = vunpack.c.h.b16 %v1487
  %v1577 = vunpack.c.l.b16 %v1488
  %v1578 = vunpack.c.h.b16 %v1488
  %v1579 = vunpack.c.l.b16 %v1489
  %v1580 = vunpack.c.h.b16 %v1489
  %v1581 = vunpack.c.l.b16 %v1490
  %v1582 = vunpack.c.h.b16 %v1490
  %v1583 = vunpack.c.l.b16 %v1491
  %v1584 = vunpack.c.h.b16 %v1491
  %v1585 = vunpack.c.l.b16 %v1492
  %v1586 = vunpack.c.h.b16 %v1492
  %v1587 = vunpack.c.l.b16 %v1493
  %v1588 = vunpack.c.h.b16 %v1493
  %v1589 = vunpack.c.l.b16 %v1494
  %v1590 = vunpack.c.h.b16 %v1494
  %v1591 = vunpack.c.l.b16 %v1495
  %v1592 = vunpack.c.h.b16 %v1495
  %v1593 = vunpack.c.l.b16 %v1496
  %v1594 = vunpack.c.h.b16 %v1496
  %v1595 = vunpack.c.l.b16 %v1497
  %v1596 = vunpack.c.h.b16 %v1497
  %v1597 = vunpack.c.l.b16 %v1498
  %v1598 = vunpack.c.h.b16 %v1498
  %v1599 = vunpack.c.l.b16 %v1499
  %v1600 = vunpack.c.h.b16 %v1499
  %v1601 = vunpack.c.l.b16 %v1500
  %v1602 = vunpack.c.h.b16 %v1500
  %v1603 = vunpack.c.l.b16 %v1501
  %v1604 = vunpack.c.h.b16 %v1501
  %v1605 = vunpack.c.l.b16 %v1502
  %v1606 = vunpack.c.h.b16 %v1502
  %v1607 = vunpack.c.l.b16 %v1503
  %v1608 = vunpack.c.h.b16 %v1503
  %v1609 = vunpack.c.l.b16 %v1504
  %v1610 = vunpack.c.h.b16 %v1504
  %v1611 = vunpack.c.l.b16 %v1505
  %v1612 = vunpack.c.h.b16 %v1505
  %v1613 = vunpack.c.l.b16 %v1506
  %v1614 = vunpack.c.h.b16 %v1506
  %v1615 = vunpack.c.l.b16 %v1507
  %v1616 = vunpack.c.h.b16 %v1507
  %v1617 = vunpack.c.l.b16 %v1508
  %v1618 = vunpack.c.h.b16 %v1508
  %v1619 = vpack.c.b16 %v1557, %v1555
  %v1620 = vpack.c.b16 %v1558, %v1556
  %v1621 = vpack.c.b16 %v1561, %v1559
  %v1622 = vpack.c.b16 %v1562, %v1560
  %v1623 = vpack.c.b16 %v1565, %v1563
  %v1624 = vpack.c.b16 %v1566, %v1564
  %v1625 = vpack.c.b16 %v1569, %v1567
  %v1626 = vpack.c.b16 %v1570, %v1568
  %v1627 = vpack.c.b16 %v1573, %v1571
  %v1628 = vpack.c.b16 %v1574, %v1572
  %v1629 = vpack.c.b16 %v1577, %v1575
  %v1630 = vpack.c.b16 %v1578, %v1576
  %v1631 = vpack.c.b16 %v1581, %v1579
  %v1632 = vpack.c.b16 %v1582, %v1580
  %v1633 = vpack.c.b16 %v1585, %v1583
  %v1634 = vpack.c.b16 %v1586, %v1584
  %v1635 = vpack.c.b16 %v1589, %v1587
  %v1636 = vpack.c.b16 %v1590, %v1588
  %v1637 = vpack.c.b16 %v1593, %v1591
  %v1638 = vpack.c.b16 %v1594, %v1592
  %v1639 = vpack.c.b16 %v1597, %v1595
  %v1640 = vpack.c.b16 %v1598, %v1596
  %v1641 = vpack.c.b16 %v1601, %v1599
  %v1642 = vpack.c.b16 %v1602, %v1600
  %v1643 = vpack.c.b16 %v1605, %v1603
  %v1644 = vpack.c.b16 %v1606, %v1604
  %v1645 = vpack.c.b16 %v1609, %v1607
  %v1646 = vpack.c.b16 %v1610, %v1608
  %v1647 = vpack.c.b16 %v1613, %v1611
  %v1648 = vpack.c.b16 %v1614, %v1612
  %v1649 = vpack.c.b16 %v1617, %v1615
  %v1650 = vpack.c.b16 %v1618, %v1616
  %1683 = vmatprep.subr.bf16.mxu0 %v1620
  %1684 = vmatpush1.bf16.msra.mxu0 %v1619
  %1685 = vmatprep.subr.bf16.mxu0 %v1622
  %1686 = vmatpush1.bf16.msra.mxu0 %v1621
  %1687 = vmatprep.subr.bf16.mxu0 %v1624
  %1688 = vmatpush1.bf16.msra.mxu0 %v1623
  %1689 = vmatprep.subr.bf16.mxu0 %v1626
  %1690 = vmatpush1.bf16.msra.mxu0 %v1625
  %1691 = vmatprep.subr.bf16.mxu0 %v1628
  %1692 = vmatpush1.bf16.msra.mxu0 %v1627
  %1693 = vmatprep.subr.bf16.mxu0 %v1630
  %1694 = vmatpush1.bf16.msra.mxu0 %v1629
  %1695 = vmatprep.subr.bf16.mxu0 %v1632
  %1696 = vmatpush1.bf16.msra.mxu0 %v1631
  %1697 = vmatprep.subr.bf16.mxu0 %v1634
  %1698 = vmatpush1.bf16.msra.mxu0 %v1633
  %1699 = vmatprep.subr.bf16.mxu0 %v1636
  %1700 = vmatpush1.bf16.msra.mxu0 %v1635
  %1701 = vmatprep.subr.bf16.mxu0 %v1638
  %1702 = vmatpush1.bf16.msra.mxu0 %v1637
  %1703 = vmatprep.subr.bf16.mxu0 %v1640
  %1704 = vmatpush1.bf16.msra.mxu0 %v1639
  %1705 = vmatprep.subr.bf16.mxu0 %v1642
  %1706 = vmatpush1.bf16.msra.mxu0 %v1641
  %1707 = vmatprep.subr.bf16.mxu0 %v1644
  %1708 = vmatpush1.bf16.msra.mxu0 %v1643
  %1709 = vmatprep.subr.bf16.mxu0 %v1646
  %1710 = vmatpush1.bf16.msra.mxu0 %v1645
  %1711 = vmatprep.subr.bf16.mxu0 %v1648
  %1712 = vmatpush1.bf16.msra.mxu0 %v1647
  %1713 = vmatprep.subr.bf16.mxu0 %v1650
  %1714 = vmatpush1.bf16.msra.mxu0 %v1649
  %1715 = vmatprep.mubr.bf16.mxu0 %v1510
  %1716 = vmatmul.mubr.bf16.gmra.mrb[0].mxu0 %v1509
  %v1717 = vpop.f32.mrb[0].mxu0
  %v1718 = vadd.f32 0.0, %v1717
  %v1719 = vpop.f32.mrb[0].mxu0
  %v1720 = vadd.f32 0.0, %v1719
  %v1721 = vpop.f32.mrb[0].mxu0
  %v1722 = vadd.f32 0.0, %v1721
  %v1723 = vpop.f32.mrb[0].mxu0
  %v1724 = vadd.f32 0.0, %v1723
  %1725 = vmatprep.mubr.bf16.mxu0 %v1512
  %1726 = vmatmul.mubr.bf16.gmra.mrb[0].mxu0 %v1511
  %v1727 = vpop.f32.mrb[0].mxu0
  %v1728 = vadd.f32 0.0, %v1727
  %v1729 = vpop.f32.mrb[0].mxu0
  %v1730 = vadd.f32 0.0, %v1729
  %v1731 = vpop.f32.mrb[0].mxu0
  %v1732 = vadd.f32 0.0, %v1731
  %v1733 = vpop.f32.mrb[0].mxu0
  %v1734 = vadd.f32 0.0, %v1733
  %1735 = vmatprep.mubr.bf16.mxu0 %v1514
  %1736 = vmatmul.mubr.bf16.gmra.mrb[0].mxu0 %v1513
  %v1737 = vpop.f32.mrb[0].mxu0
  %v1738 = vadd.f32 0.0, %v1737
  %v1739 = vpop.f32.mrb[0].mxu0
  %v1740 = vadd.f32 0.0, %v1739
  %v1741 = vpop.f32.mrb[0].mxu0
  %v1742 = vadd.f32 0.0, %v1741
  %v1743 = vpop.f32.mrb[0].mxu0
  %v1744 = vadd.f32 0.0, %v1743
  %1745 = vmatprep.mubr.bf16.mxu0 %v1516
  %1746 = vmatmul.mubr.bf16.gmra.mrb[0].mxu0 %v1515
  %v1747 = vpop.f32.mrb[0].mxu0
  %v1748 = vadd.f32 0.0, %v1747
  %v1749 = vpop.f32.mrb[0].mxu0
  %v1750 = vadd.f32 0.0, %v1749
  %v1751 = vpop.f32.mrb[0].mxu0
  %v1752 = vadd.f32 0.0, %v1751
  %v1753 = vpop.f32.mrb[0].mxu0
  %v1754 = vadd.f32 0.0, %v1753
  %1755 = vmatprep.mubr.bf16.mxu0 %v1518
  %1756 = vmatmul.mubr.bf16.gmra.mrb[0].mxu0 %v1517
  %v1757 = vpop.f32.mrb[0].mxu0
  %v1758 = vadd.f32 0.0, %v1757
  %v1759 = vpop.f32.mrb[0].mxu0
  %v1760 = vadd.f32 0.0, %v1759
  %v1761 = vpop.f32.mrb[0].mxu0
  %v1762 = vadd.f32 0.0, %v1761
  %v1763 = vpop.f32.mrb[0].mxu0
  %v1764 = vadd.f32 0.0, %v1763
  %1765 = vmatprep.mubr.bf16.mxu0 %v1520
  %1766 = vmatmul.mubr.bf16.gmra.mrb[0].mxu0 %v1519
  %v1767 = vpop.f32.mrb[0].mxu0
  %v1768 = vadd.f32 0.0, %v1767
  %v1769 = vpop.f32.mrb[0].mxu0
  %v1770 = vadd.f32 0.0, %v1769
  %v1771 = vpop.f32.mrb[0].mxu0
  %v1772 = vadd.f32 0.0, %v1771
  %v1773 = vpop.f32.mrb[0].mxu0
  %v1774 = vadd.f32 0.0, %v1773
  %1775 = vmatprep.mubr.bf16.mxu0 %v1522
  %1776 = vmatmul.mubr.bf16.gmra.mrb[0].mxu0 %v1521
  %v1777 = vpop.f32.mrb[0].mxu0
  %v1778 = vadd.f32 0.0, %v1777
  %v1779 = vpop.f32.mrb[0].mxu0
  %v1780 = vadd.f32 0.0, %v1779
  %v1781 = vpop.f32.mrb[0].mxu0
  %v1782 = vpop.f32.mrb[0].mxu0
  %1783 = vdwg.mxu0
  %v1784 = vmax.f32 %v1718, %v1720
  %v1785 = vmax.f32 %v1722, %v1724
  %v1786 = vmax.f32 %v1728, %v1730
  %v1787 = vmax.f32 %v1732, %v1734
  %v1788 = vmax.f32 %v1738, %v1740
  %v1789 = vmax.f32 %v1742, %v1744
  %v1790 = vmax.f32 %v1748, %v1750
  %v1791 = vmax.f32 %v1752, %v1754
  %v1792 = vmax.f32 %v1758, %v1760
  %v1793 = vmax.f32 %v1762, %v1764
  %v1794 = vmax.f32 %v1768, %v1770
  %v1795 = vmax.f32 %v1772, %v1774
  %v1796 = vmax.f32 %v1778, %v1780
  %v1797 = vpack.c.bf16 %v1785, %v1784
  %v1798 = vpack.c.bf16 %v1787, %v1786
  %v1799 = vpack.c.bf16 %v1789, %v1788
  %v1800 = vpack.c.bf16 %v1791, %v1790
  %v1801 = vpack.c.bf16 %v1793, %v1792
  %v1802 = vpack.c.bf16 %v1795, %v1794
  %v1803 = vpack.c.bf16 %v1796, %v1796
  %vm1804 = vsmask.f32 256
  %v1806 = vshrl.u32 %v1797, 16
  %v1808 = vrot.slane %v1806, 7
  %v1809 = vshll.u32 %v1797, 16
  %v1811 = vor.u32 %v1808, %v1809
  %v1813 = vshrl.u32 %v1798, 16
  %v1815 = vrot.slane %v1813, 7
  %v1816 = vshll.u32 %v1798, 16
  %v1818 = vor.u32 %v1815, %v1816
  %v1819 = vsel %vm1804, %v1808, %v1818
  %v1821 = vshrl.u32 %v1799, 16
  %v1823 = vrot.slane %v1821, 7
  %v1824 = vshll.u32 %v1799, 16
  %v1826 = vor.u32 %v1823, %v1824
  %v1827 = vsel %vm1804, %v1815, %v1826
  %v1829 = vshrl.u32 %v1800, 16
  %v1831 = vrot.slane %v1829, 7
  %v1832 = vshll.u32 %v1800, 16
  %v1834 = vor.u32 %v1831, %v1832
  %v1835 = vsel %vm1804, %v1823, %v1834
  %v1837 = vshrl.u32 %v1801, 16
  %v1839 = vrot.slane %v1837, 7
  %v1840 = vshll.u32 %v1801, 16
  %v1842 = vor.u32 %v1839, %v1840
  %v1843 = vsel %vm1804, %v1831, %v1842
  %v1845 = vshrl.u32 %v1802, 16
  %v1847 = vrot.slane %v1845, 7
  %v1848 = vshll.u32 %v1802, 16
  %v1850 = vor.u32 %v1847, %v1848
  %v1851 = vsel %vm1804, %v1839, %v1850
  %v1853 = vshrl.u32 %v1803, 16
  %v1855 = vrot.slane %v1853, 7
  %v1856 = vshll.u32 %v1803, 16
  %v1858 = vor.u32 %v1855, %v1856
  %v1859 = vsel %vm1804, %v1847, %v1858
  %vm1867 = vcmask 1040384
  %vm1868 = vmand %vm1867, %vm1804
  %v1869 = vsel %vm1868, 0, %v1811
  %vm1870 = vsmask.f32 7424
  %v1871 = vrot.slane %v1809, 1
  %v1872 = vor.u32 %v1806, %v1871
  %v1873 = vrot.slane %v1816, 1
  %v1874 = vsel %vm1870, %v1872, %v1873
  %v1875 = vor.u32 %v1813, %v1873
  %v1876 = vrot.slane %v1824, 1
  %v1877 = vsel %vm1870, %v1875, %v1876
  %v1878 = vor.u32 %v1821, %v1876
  %v1879 = vrot.slane %v1832, 1
  %v1880 = vsel %vm1870, %v1878, %v1879
  %v1881 = vor.u32 %v1829, %v1879
  %v1882 = vrot.slane %v1840, 1
  %v1883 = vsel %vm1870, %v1881, %v1882
  %v1884 = vor.u32 %v1837, %v1882
  %v1885 = vrot.slane %v1848, 1
  %v1886 = vsel %vm1870, %v1884, %v1885
  %v1887 = vor.u32 %v1845, %v1885
  %v1888 = vrot.slane %v1856, 1
  %v1889 = vsel %vm1870, %v1887, %v1888
  %v1890 = vor.u32 %v1853, %v1888
  %vm1898 = vcmask 1041408
  %vm1899 = vsmask.f32 1280
  %vm1900 = vmand %vm1898, %vm1899
  %v1901 = vsel %vm1900, %v1890, 0
  %v1902 = vld [vmem:[%s1 + $0x90] sm:$0xf]
  %v1903 = vld [vmem:[%s1 + $0x98] sm:$0xf]
  %v1904 = vld [vmem:[%s1 + $0xa0] sm:$0xf]
  %v1905 = vld [vmem:[%s1 + $0xa8] sm:$0xf]
  %v1906 = vld [vmem:[%s1 + $0xb0] sm:$0xf]
  %v1907 = vld [vmem:[%s1 + $0xb8] sm:$0xf]
  %v1908 = vld [vmem:[%s1 + $0xc0] sm:$0xf]
  %v1909 = vld [vmem:[%s1 + $0xc8] sm:$0xf]
  %v1910 = vld [vmem:[%s1 + $0xd0] sm:$0xf]
  %v1911 = vld [vmem:[%s1 + $0xd8] sm:$0xf]
  %v1912 = vld [vmem:[%s1 + $0xe0] sm:$0xf]
  %v1913 = vld [vmem:[%s1 + $0xe8] sm:$0xf]
  %v1914 = vld [vmem:[%s1 + $0xf0] sm:$0xf]
  %v1915 = vld [vmem:[%s1 + $0xf8] sm:$0xf]
  %v1916 = vld [vmem:[%s1 + $0x100] sm:$0xf]
  %v1917 = vld [vmem:[%s1 + $0x108] sm:$0xf]
  %v1918 = vld [vmem:[%s1 + $0x110] sm:$0xf]
  %v1919 = vld [vmem:[%s1 + $0x118] sm:$0xf]
  %v1920 = vld [vmem:[%s1 + $0x120] sm:$0xf]
  %v1921 = vld [vmem:[%s1 + $0x128] sm:$0xf]
  %v1922 = vld [vmem:[%s1 + $0x130] sm:$0xf]
  %v1923 = vld [vmem:[%s1 + $0x138] sm:$0xf]
  %v1924 = vld [vmem:[%s1 + $0x140] sm:$0xf]
  %v1925 = vld [vmem:[%s1 + $0x148] sm:$0xf]
  %v1926 = vld [vmem:[%s1 + $0x150] sm:$0xf]
  %v1927 = vld [vmem:[%s1 + $0x158] sm:$0xf]
  %v1928 = vld [vmem:[%s1 + $0x160] sm:$0xf]
  %v1929 = vld [vmem:[%s1 + $0x168] sm:$0xf]
  %v1930 = vld [vmem:[%s1 + $0x170] sm:$0xf]
  %v1931 = vld [vmem:[%s1 + $0x178] sm:$0xf]
  %v1932 = vld [vmem:[%s1 + $0x180] sm:$0xf]
  %v1933 = vld [vmem:[%s1 + $0x188] sm:$0xf]
  %v1934 = vld [vmem:[%s1 + $0x190] sm:$0xf]
  %v1935 = vld [vmem:[%s1 + $0x198] sm:$0xf]
  %v1936 = vld [vmem:[%s1 + $0x1a0] sm:$0xf]
  %v1937 = vld [vmem:[%s1 + $0x1a8] sm:$0xf]
  %v1938 = vld [vmem:[%s1 + $0x1b0] sm:$0xf]
  %v1939 = vld [vmem:[%s1 + $0x1b8] sm:$0xf]
  %v1940 = vld [vmem:[%s1 + $0x1c0] sm:$0xf]
  %v1941 = vld [vmem:[%s1 + $0x1c8] sm:$0xf]
  %v1942 = vld [vmem:[%s1 + $0x1d0] sm:$0xf]
  %v1943 = vld [vmem:[%s1 + $0x1d8] sm:$0xf]
  %v1944 = vld [vmem:[%s1 + $0x1e0] sm:$0xf]
  %v1945 = vld [vmem:[%s1 + $0x1e8] sm:$0xf]
  %v1946 = vld [vmem:[%s1 + $0x1f0] sm:$0xf]
  %v1947 = vld [vmem:[%s1 + $0x1f8] sm:$0xf]
  %v1948 = vld [vmem:[%s1 + $0x200] sm:$0xf]
  %v1949 = vld [vmem:[%s1 + $0x208] sm:$0xf]
  %v1998 = vunpack.c.l.b16 %v1902
  %v1999 = vunpack.c.l.b16 %v1903
  %v2000 = vunpack.c.l.b16 %v1904
  %v2001 = vunpack.c.l.b16 %v1905
  %v2002 = vunpack.c.l.b16 %v1906
  %v2003 = vunpack.c.l.b16 %v1907
  %v2004 = vunpack.c.l.b16 %v1908
  %v2005 = vunpack.c.l.b16 %v1909
  %v2006 = vunpack.c.l.b16 %v1910
  %v2007 = vunpack.c.l.b16 %v1911
  %v2008 = vunpack.c.l.b16 %v1912
  %v2009 = vunpack.c.l.b16 %v1913
  %v2010 = vunpack.c.l.b16 %v1914
  %v2011 = vunpack.c.l.b16 %v1915
  %v2012 = vunpack.c.l.b16 %v1916
  %v2013 = vunpack.c.l.b16 %v1917
  %v2014 = vunpack.c.l.b16 %v1918
  %v2015 = vunpack.c.l.b16 %v1919
  %v2016 = vunpack.c.l.b16 %v1920
  %v2017 = vunpack.c.l.b16 %v1921
  %v2018 = vunpack.c.l.b16 %v1922
  %v2019 = vunpack.c.l.b16 %v1923
  %v2020 = vunpack.c.l.b16 %v1924
  %v2021 = vunpack.c.l.b16 %v1925
  %v2022 = vunpack.c.l.b16 %v1926
  %v2023 = vunpack.c.l.b16 %v1927
  %v2024 = vunpack.c.l.b16 %v1928
  %v2025 = vunpack.c.l.b16 %v1929
  %v2026 = vunpack.c.l.b16 %v1930
  %v2027 = vunpack.c.l.b16 %v1931
  %v2028 = vunpack.c.l.b16 %v1932
  %v2029 = vunpack.c.l.b16 %v1933
  %v2030 = vunpack.c.l.b16 %v1934
  %v2031 = vunpack.c.l.b16 %v1935
  %v2032 = vunpack.c.l.b16 %v1936
  %v2033 = vunpack.c.l.b16 %v1937
  %v2034 = vunpack.c.l.b16 %v1938
  %v2035 = vunpack.c.l.b16 %v1939
  %v2036 = vunpack.c.l.b16 %v1940
  %v2037 = vunpack.c.l.b16 %v1941
  %v2038 = vunpack.c.l.b16 %v1942
  %v2039 = vunpack.c.l.b16 %v1943
  %v2040 = vunpack.c.l.b16 %v1944
  %v2041 = vunpack.c.l.b16 %v1945
  %v2042 = vunpack.c.l.b16 %v1946
  %v2043 = vunpack.c.l.b16 %v1947
  %v2044 = vunpack.c.l.b16 %v1948
  %v2045 = vunpack.c.l.b16 %v1949
  %v2046 = vpack.c.b16 %v1999, %v1998
  %v2047 = vpack.c.b16 %v2001, %v2000
  %v2048 = vpack.c.b16 %v2003, %v2002
  %v2049 = vpack.c.b16 %v2005, %v2004
  %v2050 = vpack.c.b16 %v2007, %v2006
  %v2051 = vpack.c.b16 %v2009, %v2008
  %v2052 = vpack.c.b16 %v2011, %v2010
  %v2053 = vpack.c.b16 %v2013, %v2012
  %v2054 = vpack.c.b16 %v2015, %v2014
  %v2055 = vpack.c.b16 %v2017, %v2016
  %v2056 = vpack.c.b16 %v2019, %v2018
  %v2057 = vpack.c.b16 %v2021, %v2020
  %v2058 = vpack.c.b16 %v2023, %v2022
  %v2059 = vpack.c.b16 %v2025, %v2024
  %v2060 = vpack.c.b16 %v2027, %v2026
  %v2061 = vpack.c.b16 %v2029, %v2028
  %v2062 = vpack.c.b16 %v2031, %v2030
  %v2063 = vpack.c.b16 %v2033, %v2032
  %v2064 = vpack.c.b16 %v2035, %v2034
  %v2065 = vpack.c.b16 %v2037, %v2036
  %v2066 = vpack.c.b16 %v2039, %v2038
  %v2067 = vpack.c.b16 %v2041, %v2040
  %v2068 = vpack.c.b16 %v2043, %v2042
  %v2069 = vpack.c.b16 %v2045, %v2044
  %2094 = vmatprep.subr.bf16.mxu0 0
  %2095 = vmatpush1.bf16.msra.mxu0 %v2046
  %2096 = vmatprep.subr.bf16.mxu0 0
  %2097 = vmatpush1.bf16.msra.mxu0 %v2047
  %2098 = vmatprep.subr.bf16.mxu0 0
  %2099 = vmatpush1.bf16.msra.mxu0 %v2048
  %2100 = vmatprep.subr.bf16.mxu0 0
  %2101 = vmatpush1.bf16.msra.mxu0 %v2049
  %2102 = vmatprep.subr.bf16.mxu0 0
  %2103 = vmatpush1.bf16.msra.mxu0 %v2050
  %2104 = vmatprep.subr.bf16.mxu0 0
  %2105 = vmatpush1.bf16.msra.mxu0 %v2051
  %2106 = vmatprep.subr.bf16.mxu0 0
  %2107 = vmatpush1.bf16.msra.mxu0 %v2052
  %2108 = vmatprep.subr.bf16.mxu0 0
  %2109 = vmatpush1.bf16.msra.mxu0 %v2053
  %2110 = vmatprep.subr.bf16.mxu0 0
  %2111 = vmatpush1.bf16.msra.mxu0 %v2054
  %2112 = vmatprep.subr.bf16.mxu0 0
  %2113 = vmatpush1.bf16.msra.mxu0 %v2055
  %2114 = vmatprep.subr.bf16.mxu0 0
  %2115 = vmatpush1.bf16.msra.mxu0 %v2056
  %2116 = vmatprep.subr.bf16.mxu0 0
  %2117 = vmatpush1.bf16.msra.mxu0 %v2057
  %2118 = vmatprep.subr.bf16.mxu0 0
  %2119 = vmatpush1.bf16.msra.mxu0 %v2058
  %2120 = vmatprep.subr.bf16.mxu0 0
  %2121 = vmatpush1.bf16.msra.mxu0 %v2059
  %2122 = vmatprep.subr.bf16.mxu0 0
  %2123 = vmatpush1.bf16.msra.mxu0 %v2060
  %2124 = vmatprep.subr.bf16.mxu0 0
  %2125 = vmatpush1.bf16.msra.mxu0 %v2061
  %2126 = vmatprep.mubr.bf16.mxu0 %v1797
  %2127 = vmatmul.mubr.bf16.gmra.mrb[0].mxu0 %v1869
  %v2128 = vpop.f32.mrb[0].mxu0
  %v2129 = vadd.f32 0.0, %v2128
  %v2130 = vpop.f32.mrb[0].mxu0
  %v2131 = vpop.f32.mrb[0].mxu0
  %v2132 = vadd.f32 0.0, %v2131
  %v2133 = vpop.f32.mrb[0].mxu0
  %2134 = vmatprep.mubr.bf16.mxu0 %v1798
  %2135 = vmatmul.mubr.bf16.gmra.mrb[0].mxu0 %v1819
  %v2136 = vpop.f32.mrb[0].mxu0
  %v2137 = vadd.f32 0.0, %v2136
  %v2138 = vpop.f32.mrb[0].mxu0
  %v2139 = vpop.f32.mrb[0].mxu0
  %v2140 = vadd.f32 0.0, %v2139
  %v2141 = vpop.f32.mrb[0].mxu0
  %2142 = vmatprep.mubr.bf16.mxu0 %v1799
  %2143 = vmatmul.mubr.bf16.gmra.mrb[0].mxu0 %v1827
  %v2144 = vpop.f32.mrb[0].mxu0
  %v2145 = vadd.f32 0.0, %v2144
  %v2146 = vpop.f32.mrb[0].mxu0
  %v2147 = vpop.f32.mrb[0].mxu0
  %v2148 = vadd.f32 0.0, %v2147
  %v2149 = vpop.f32.mrb[0].mxu0
  %2150 = vmatprep.mubr.bf16.mxu0 %v1800
  %2151 = vmatmul.mubr.bf16.gmra.mrb[0].mxu0 %v1835
  %v2152 = vpop.f32.mrb[0].mxu0
  %v2153 = vadd.f32 0.0, %v2152
  %v2154 = vpop.f32.mrb[0].mxu0
  %v2155 = vpop.f32.mrb[0].mxu0
  %v2156 = vadd.f32 0.0, %v2155
  %v2157 = vpop.f32.mrb[0].mxu0
  %2158 = vmatprep.mubr.bf16.mxu0 %v1801
  %2159 = vmatmul.mubr.bf16.gmra.mrb[0].mxu0 %v1843
  %v2160 = vpop.f32.mrb[0].mxu0
  %v2161 = vadd.f32 0.0, %v2160
  %v2162 = vpop.f32.mrb[0].mxu0
  %v2163 = vpop.f32.mrb[0].mxu0
  %v2164 = vadd.f32 0.0, %v2163
  %v2165 = vpop.f32.mrb[0].mxu0
  %2166 = vmatprep.mubr.bf16.mxu0 %v1802
  %2167 = vmatmul.mubr.bf16.gmra.mrb[0].mxu0 %v1851
  %v2168 = vpop.f32.mrb[0].mxu0
  %v2169 = vadd.f32 0.0, %v2168
  %v2170 = vpop.f32.mrb[0].mxu0
  %v2171 = vpop.f32.mrb[0].mxu0
  %v2172 = vadd.f32 0.0, %v2171
  %v2173 = vpop.f32.mrb[0].mxu0
  %2174 = vmatprep.mubr.bf16.mxu0 %v1803
  %2175 = vmatmul.mubr.bf16.gmra.mrb[0].mxu0 %v1859
  %v2176 = vpop.f32.mrb[0].mxu0
  %v2177 = vadd.f32 0.0, %v2176
  %v2178 = vpop.f32.mrb[0].mxu0
  %v2179 = vpop.f32.mrb[0].mxu0
  %v2180 = vpop.f32.mrb[0].mxu0
  %2181 = vdwg.mxu0
  %2182 = vmatprep.subr.bf16.mxu0 0
  %2183 = vmatpush1.bf16.msra.mxu0 %v2062
  %2184 = vmatprep.subr.bf16.mxu0 0
  %2185 = vmatpush1.bf16.msra.mxu0 %v2063
  %2186 = vmatprep.subr.bf16.mxu0 0
  %2187 = vmatpush1.bf16.msra.mxu0 %v2064
  %2188 = vmatprep.subr.bf16.mxu0 0
  %2189 = vmatpush1.bf16.msra.mxu0 %v2065
  %2190 = vmatprep.subr.bf16.mxu0 0
  %2191 = vmatpush1.bf16.msra.mxu0 %v2066
  %2192 = vmatprep.subr.bf16.mxu0 0
  %2193 = vmatpush1.bf16.msra.mxu0 %v2067
  %2194 = vmatprep.subr.bf16.mxu0 0
  %2195 = vmatpush1.bf16.msra.mxu0 %v2068
  %2196 = vmatprep.subr.bf16.mxu0 0
  %2197 = vmatpush1.bf16.msra.mxu0 %v2069
  %2198 = vmatprep.subr.bf16.mxu0 0
  %2199 = vmatpush1.bf16.msra.mxu0 0
  %2200 = vmatprep.subr.bf16.mxu0 0
  %2201 = vmatpush1.bf16.msra.mxu0 0
  %2202 = vmatprep.subr.bf16.mxu0 0
  %2203 = vmatpush1.bf16.msra.mxu0 0
  %2204 = vmatprep.subr.bf16.mxu0 0
  %2205 = vmatpush1.bf16.msra.mxu0 0
  %2206 = vmatprep.subr.bf16.mxu0 0
  %2207 = vmatpush1.bf16.msra.mxu0 0
  %2208 = vmatprep.subr.bf16.mxu0 0
  %2209 = vmatpush1.bf16.msra.mxu0 0
  %2210 = vmatprep.subr.bf16.mxu0 0
  %2211 = vmatpush1.bf16.msra.mxu0 0
  %2212 = vmatprep.subr.bf16.mxu0 0
  %2213 = vmatpush1.bf16.msra.mxu0 0
  %2214 = vmatprep.mubr.bf16.mxu0 0
  %2215 = vmatmul.mubr.bf16.gmra.mrb[0].mxu0 %v1874
  %v2216 = vpop.f32.mrb[0].mxu0
  %v2217 = vadd.f32 %v2129, %v2216
  %v2218 = vpop.f32.mrb[0].mxu0
  %v2219 = vpop.f32.mrb[0].mxu0
  %v2220 = vadd.f32 %v2132, %v2219
  %v2221 = vpop.f32.mrb[0].mxu0
  %2222 = vmatprep.mubr.bf16.mxu0 0
  %2223 = vmatmul.mubr.bf16.gmra.mrb[0].mxu0 %v1877
  %v2224 = vpop.f32.mrb[0].mxu0
  %v2225 = vadd.f32 %v2137, %v2224
  %v2226 = vpop.f32.mrb[0].mxu0
  %v2227 = vpop.f32.mrb[0].mxu0
  %v2228 = vadd.f32 %v2140, %v2227
  %v2229 = vpop.f32.mrb[0].mxu0
  %2230 = vmatprep.mubr.bf16.mxu0 0
  %2231 = vmatmul.mubr.bf16.gmra.mrb[0].mxu0 %v1880
  %v2232 = vpop.f32.mrb[0].mxu0
  %v2233 = vadd.f32 %v2145, %v2232
  %v2234 = vpop.f32.mrb[0].mxu0
  %v2235 = vpop.f32.mrb[0].mxu0
  %v2236 = vadd.f32 %v2148, %v2235
  %v2237 = vpop.f32.mrb[0].mxu0
  %2238 = vmatprep.mubr.bf16.mxu0 0
  %2239 = vmatmul.mubr.bf16.gmra.mrb[0].mxu0 %v1883
  %v2240 = vpop.f32.mrb[0].mxu0
  %v2241 = vadd.f32 %v2153, %v2240
  %v2242 = vpop.f32.mrb[0].mxu0
  %v2243 = vpop.f32.mrb[0].mxu0
  %v2244 = vadd.f32 %v2156, %v2243
  %v2245 = vpop.f32.mrb[0].mxu0
  %2246 = vmatprep.mubr.bf16.mxu0 0
  %2247 = vmatmul.mubr.bf16.gmra.mrb[0].mxu0 %v1886
  %v2248 = vpop.f32.mrb[0].mxu0
  %v2249 = vadd.f32 %v2161, %v2248
  %v2250 = vpop.f32.mrb[0].mxu0
  %v2251 = vpop.f32.mrb[0].mxu0
  %v2252 = vadd.f32 %v2164, %v2251
  %v2253 = vpop.f32.mrb[0].mxu0
  %2254 = vmatprep.mubr.bf16.mxu0 0
  %2255 = vmatmul.mubr.bf16.gmra.mrb[0].mxu0 %v1889
  %v2256 = vpop.f32.mrb[0].mxu0
  %v2257 = vadd.f32 %v2169, %v2256
  %v2258 = vpop.f32.mrb[0].mxu0
  %v2259 = vpop.f32.mrb[0].mxu0
  %v2260 = vadd.f32 %v2172, %v2259
  %v2261 = vpop.f32.mrb[0].mxu0
  %2262 = vmatprep.mubr.bf16.mxu0 0
  %2263 = vmatmul.mubr.bf16.gmra.mrb[0].mxu0 %v1901
  %v2264 = vpop.f32.mrb[0].mxu0
  %v2265 = vadd.f32 %v2177, %v2264
  %v2266 = vpop.f32.mrb[0].mxu0
  %v2267 = vpop.f32.mrb[0].mxu0
  %v2268 = vpop.f32.mrb[0].mxu0
  %2269 = vdwg.mxu0
  %2270 = vset.pattern.permute.xlu0 1
  %2271 = vperm.xlu0 %2270, %v26
  %v2272 = vpop.permute.xlu0 %2271
  %2274 = vset.pattern.permute.xlu0 1
  %2275 = vperm.xlu0 %2274, %v27
  %v2276 = vpop.permute.xlu0 %2275
  %2278 = vset.pattern.permute.xlu0 1
  %2279 = vperm.xlu0 %2278, %v28
  %v2280 = vpop.permute.xlu0 %2279
  %2282 = vset.pattern.permute.xlu0 1
  %2283 = vperm.xlu0 %2282, %v29
  %v2284 = vpop.permute.xlu0 %2283
  %2286 = vset.pattern.permute.xlu0 1
  %2287 = vperm.xlu0 %2286, %v30
  %v2288 = vpop.permute.xlu0 %2287
  %2290 = vset.pattern.permute.xlu0 1
  %2291 = vperm.xlu0 %2290, %v31
  %v2292 = vpop.permute.xlu0 %2291
  %2294 = vset.pattern.permute.xlu0 1
  %2295 = vperm.xlu0 %2294, %v32
  %v2296 = vpop.permute.xlu0 %2295
  %2298 = vset.pattern.permute.xlu0 1
  %2299 = vperm.xlu0 %2298, %v33
  %v2300 = vpop.permute.xlu0 %2299
  %2302 = vset.pattern.permute.xlu0 1
  %2303 = vperm.xlu0 %2302, %v34
  %v2304 = vpop.permute.xlu0 %2303
  %2306 = vset.pattern.permute.xlu0 1
  %2307 = vperm.xlu0 %2306, %v35
  %v2308 = vpop.permute.xlu0 %2307
  %2310 = vset.pattern.permute.xlu0 1
  %2311 = vperm.xlu0 %2310, %v36
  %v2312 = vpop.permute.xlu0 %2311
  %2314 = vset.pattern.permute.xlu0 1
  %2315 = vperm.xlu0 %2314, %v37
  %v2316 = vpop.permute.xlu0 %2315
  %2318 = vset.pattern.permute.xlu0 1
  %2319 = vperm.xlu0 %2318, %v38
  %v2320 = vpop.permute.xlu0 %2319
  %v2322 = vmul.f32 %v2217, %v2272
  %v2323 = vmul.f32 %v2220, %v2276
  %v2324 = vmul.f32 %v2225, %v2280
  %v2325 = vmul.f32 %v2228, %v2284
  %v2326 = vmul.f32 %v2233, %v2288
  %v2327 = vmul.f32 %v2236, %v2292
  %v2328 = vmul.f32 %v2241, %v2296
  %v2329 = vmul.f32 %v2244, %v2300
  %v2330 = vmul.f32 %v2249, %v2304
  %v2331 = vmul.f32 %v2252, %v2308
  %v2332 = vmul.f32 %v2257, %v2312
  %v2333 = vmul.f32 %v2260, %v2316
  %v2334 = vmul.f32 %v2265, %v2320
  %v2335 = vadd.f32 %v2322, %v2323
  %v2336 = vadd.f32 %v2335, %v2324
  %v2337 = vadd.f32 %v2336, %v2325
  %v2338 = vadd.f32 %v2337, %v2326
  %v2339 = vadd.f32 %v2338, %v2327
  %v2340 = vadd.f32 %v2339, %v2328
  %v2341 = vadd.f32 %v2340, %v2329
  %v2342 = vadd.f32 %v2341, %v2330
  %v2343 = vadd.f32 %v2342, %v2331
  %v2344 = vadd.f32 %v2343, %v2332
  %v2345 = vadd.f32 %v2344, %v2333
  %v2346 = vsel %vm655, %v2334, 0.0
  %v2347 = vadd.f32 %v2345, %v2346
  %v2348 = vrot.slane %v2347, 4
  %v2349 = vadd.f32 %v2347, %v2348
  %v2350 = vrot.slane %v2349, 2
  %v2351 = vadd.f32 %v2349, %v2350
  %v2352 = vrot.slane %v2351, 1
  %v2353 = vadd.f32 %v2351, %v2352
  %v2354 = vmul.f32 %v2322, %v2217
  %v2355 = vmul.f32 %v2323, %v2220
  %v2356 = vmul.f32 %v2324, %v2225
  %v2357 = vmul.f32 %v2325, %v2228
  %v2358 = vmul.f32 %v2326, %v2233
  %v2359 = vmul.f32 %v2327, %v2236
  %v2360 = vmul.f32 %v2328, %v2241
  %v2361 = vmul.f32 %v2329, %v2244
  %v2362 = vmul.f32 %v2330, %v2249
  %v2363 = vmul.f32 %v2331, %v2252
  %v2364 = vmul.f32 %v2332, %v2257
  %v2365 = vmul.f32 %v2333, %v2260
  %v2366 = vmul.f32 %v2334, %v2265
  %v2367 = vadd.f32 %v2354, %v2355
  %v2368 = vadd.f32 %v2367, %v2356
  %v2369 = vadd.f32 %v2368, %v2357
  %v2370 = vadd.f32 %v2369, %v2358
  %v2371 = vadd.f32 %v2370, %v2359
  %v2372 = vadd.f32 %v2371, %v2360
  %v2373 = vadd.f32 %v2372, %v2361
  %v2374 = vadd.f32 %v2373, %v2362
  %v2375 = vadd.f32 %v2374, %v2363
  %v2376 = vadd.f32 %v2375, %v2364
  %v2377 = vadd.f32 %v2376, %v2365
  %v2378 = vsel %vm655, %v2366, 0.0
  %v2379 = vadd.f32 %v2377, %v2378
  %v2380 = vrot.slane %v2379, 4
  %v2381 = vadd.f32 %v2379, %v2380
  %v2382 = vrot.slane %v2381, 2
  %v2383 = vadd.f32 %v2381, %v2382
  %v2384 = vrot.slane %v2383, 1
  %v2385 = vadd.f32 %v2383, %v2384
  %v2386 = vsel %vm797, %v2353, %v2385
  %2388 = vrot.lane.b32.xlu0 %v2386, 16
  %v2389 = vpop.permute.xlu0 %2388
  %v2391 = vadd.f32 %v2386, %v2389
  %2393 = vrot.lane.b32.xlu0 %v2391, 32
  %v2394 = vpop.permute.xlu0 %2393
  %v2396 = vadd.f32 %v2391, %v2394
  %2398 = vrot.lane.b32.xlu0 %v2396, 64
  %v2399 = vpop.permute.xlu0 %2398
  %v2401 = vadd.f32 %v2396, %v2399
  %v2402 = vmul.f32 %v2401, 0.0015625
  %v2403 = vmul.f32 %v2402, %v2402
  %v2405 = vrot.slane %v2403, 7
  %v2407 = vsub.f32 %v2402, %v2405
  %v2408 = vadd.f32 %v2407, 1e-05
  %v2409 = vrsqrt.pop %v2408
  %v2411 = vrot.slane %v2409, 7
  %v2413 = vmul.f32 %v24, %v2411
  %v2415 = vrot.slane %v2413, 2
  %v2417 = vmul.f32 %v2402, %v2415
  %v2419 = vrot.slane %v2417, 5
  %v2421 = vsub.f32 %v24, %v2419
  %v2422 = vlaneseq
  %v2423 = vshrl.u32 %v2422, 7
  %v2424 = vsub.s32 2, %v2423
  %v2425 = vrot.slane %v2413, %v2424
  %v2426 = vmul.f32 %v2217, %v2425
  %v2427 = vmul.f32 %v2220, %v2425
  %v2428 = vmul.f32 %v2225, %v2425
  %v2429 = vmul.f32 %v2228, %v2425
  %v2430 = vmul.f32 %v2233, %v2425
  %v2431 = vmul.f32 %v2236, %v2425
  %v2432 = vmul.f32 %v2241, %v2425
  %v2433 = vmul.f32 %v2244, %v2425
  %v2434 = vmul.f32 %v2249, %v2425
  %v2435 = vmul.f32 %v2252, %v2425
  %v2436 = vmul.f32 %v2257, %v2425
  %v2437 = vmul.f32 %v2260, %v2425
  %v2438 = vmul.f32 %v2265, %v2425
  %v2439 = vlaneseq
  %v2440 = vshrl.u32 %v2439, 7
  %v2441 = vsub.s32 3, %v2440
  %v2442 = vrot.slane %v2421, %v2441
  %v2443 = vadd.f32 %v2426, %v2442
  %v2444 = vadd.f32 %v2427, %v2442
  %v2445 = vadd.f32 %v2428, %v2442
  %v2446 = vadd.f32 %v2429, %v2442
  %v2447 = vadd.f32 %v2430, %v2442
  %v2448 = vadd.f32 %v2431, %v2442
  %v2449 = vadd.f32 %v2432, %v2442
  %v2450 = vadd.f32 %v2433, %v2442
  %v2451 = vadd.f32 %v2434, %v2442
  %v2452 = vadd.f32 %v2435, %v2442
  %v2453 = vadd.f32 %v2436, %v2442
  %v2454 = vadd.f32 %v2437, %v2442
  %v2455 = vadd.f32 %v2438, %v2442
  %v2456 = vmax.f32 %v2443, 0.0
  %v2457 = vmax.f32 %v2444, 0.0
  %v2458 = vmax.f32 %v2445, 0.0
  %v2459 = vmax.f32 %v2446, 0.0
  %v2460 = vmax.f32 %v2447, 0.0
  %v2461 = vmax.f32 %v2448, 0.0
  %v2462 = vmax.f32 %v2449, 0.0
  %v2463 = vmax.f32 %v2450, 0.0
  %v2464 = vmax.f32 %v2451, 0.0
  %v2465 = vmax.f32 %v2452, 0.0
  %v2466 = vmax.f32 %v2453, 0.0
  %v2467 = vmax.f32 %v2454, 0.0
  %v2468 = vmax.f32 %v2455, 0.0
  %v2482 = vrot.slane %v2456, 1
  %v2483 = vrot.slane %v2457, 1
  %v2484 = vsel %vm1065, %v2482, %v2483
  %v2485 = vrot.slane %v2458, 1
  %v2486 = vsel %vm1065, %v2483, %v2485
  %v2487 = vrot.slane %v2459, 1
  %v2488 = vsel %vm1065, %v2485, %v2487
  %v2489 = vrot.slane %v2460, 1
  %v2490 = vsel %vm1065, %v2487, %v2489
  %v2491 = vrot.slane %v2461, 1
  %v2492 = vsel %vm1065, %v2489, %v2491
  %v2493 = vrot.slane %v2462, 1
  %v2494 = vsel %vm1065, %v2491, %v2493
  %v2495 = vrot.slane %v2463, 1
  %v2496 = vsel %vm1065, %v2493, %v2495
  %v2497 = vrot.slane %v2464, 1
  %v2498 = vsel %vm1065, %v2495, %v2497
  %v2499 = vrot.slane %v2465, 1
  %v2500 = vsel %vm1065, %v2497, %v2499
  %v2501 = vrot.slane %v2466, 1
  %v2502 = vsel %vm1065, %v2499, %v2501
  %v2503 = vrot.slane %v2467, 1
  %v2504 = vsel %vm1065, %v2501, %v2503
  %v2505 = vrot.slane %v2468, 1
  %v2506 = vsel %vm1065, %v2503, %v2505
  %v2520 = vmax.f32 %v2456, %v2484
  %v2521 = vmax.f32 %v2457, %v2486
  %v2522 = vmax.f32 %v2458, %v2488
  %v2523 = vmax.f32 %v2459, %v2490
  %v2524 = vmax.f32 %v2460, %v2492
  %v2525 = vmax.f32 %v2461, %v2494
  %v2526 = vmax.f32 %v2462, %v2496
  %v2527 = vmax.f32 %v2463, %v2498
  %v2528 = vmax.f32 %v2464, %v2500
  %v2529 = vmax.f32 %v2465, %v2502
  %v2530 = vmax.f32 %v2466, %v2504
  %v2531 = vmax.f32 %v2467, %v2506
  %v2532 = vmax.f32 %v2468, %v2505
  %v2533 = vpack.c.bf16 %v2521, %v2520
  %v2534 = vpack.c.bf16 %v2523, %v2522
  %v2535 = vpack.c.bf16 %v2525, %v2524
  %v2536 = vpack.c.bf16 %v2527, %v2526
  %v2537 = vpack.c.bf16 %v2529, %v2528
  %v2538 = vpack.c.bf16 %v2531, %v2530
  %v2539 = vpack.c.bf16 %v2532, %v2532
  %v2540 = vld [vmem:[%s3 + $0x68] sm:$0xf]
  %v2541 = vld [vmem:[%s3 + $0x70] sm:$0xf]
  %v2542 = vld [vmem:[%s3 + $0x78] sm:$0xf]
  %v2543 = vld [vmem:[%s3 + $0x80] sm:$0xf]
  %v2544 = vld [vmem:[%s3 + $0x88] sm:$0xf]
  %v2545 = vld [vmem:[%s3 + $0x90] sm:$0xf]
  %v2546 = vld [vmem:[%s3 + $0x98] sm:$0xf]
  %v2547 = vld [vmem:[%s3 + $0xa0] sm:$0x3]
  %v2556 = vunpack.c.l.b16 %v2540
  %v2557 = vunpack.c.l.b16 %v2541
  %v2558 = vunpack.c.l.b16 %v2542
  %v2559 = vunpack.c.l.b16 %v2543
  %v2560 = vunpack.c.l.b16 %v2544
  %v2561 = vunpack.c.l.b16 %v2545
  %v2562 = vunpack.c.l.b16 %v2546
  %v2563 = vunpack.c.l.b16 %v2547
  %v2564 = vpack.c.b16 %v2557, %v2556
  %v2565 = vpack.c.b16 %v2559, %v2558
  %v2566 = vpack.c.b16 %v2561, %v2560
  %v2567 = vpack.c.b16 %v2563, %v2562
  %vm2568 = vcmask 809984
  %v2570 = vsel %vm2568, %v2564, 0
  %v2573 = vsel %vm2568, %v2565, 0
  %v2576 = vsel %vm2568, %v2566, 0
  %v2579 = vsel %vm2568, %v2567, 0
  %v2582 = vand.u32 %v2539, %v1369
  %2584 = vmatprep.subr.bf16.mxu0 0
  %2585 = vmatpush1.bf16.msra.mxu0 %v2533
  %2586 = vmatprep.subr.bf16.mxu0 0
  %2587 = vmatpush1.bf16.msra.mxu0 %v2534
  %2588 = vmatprep.subr.bf16.mxu0 0
  %2589 = vmatpush1.bf16.msra.mxu0 %v2535
  %2590 = vmatprep.subr.bf16.mxu0 0
  %2591 = vmatpush1.bf16.msra.mxu0 %v2536
  %2592 = vmatprep.subr.bf16.mxu0 0
  %2593 = vmatpush1.bf16.msra.mxu0 %v2537
  %2594 = vmatprep.subr.bf16.mxu0 0
  %2595 = vmatpush1.bf16.msra.mxu0 %v2538
  %2596 = vmatprep.subr.bf16.mxu0 0
  %2597 = vmatpush1.bf16.msra.mxu0 %v2582
  %2598 = vmatprep.subr.bf16.mxu0 0
  %2599 = vmatpush1.bf16.msra.mxu0 0
  %2600 = vmatprep.subr.bf16.mxu0 0
  %2601 = vmatpush1.bf16.msra.mxu0 0
  %2602 = vmatprep.subr.bf16.mxu0 0
  %2603 = vmatpush1.bf16.msra.mxu0 0
  %2604 = vmatprep.subr.bf16.mxu0 0
  %2605 = vmatpush1.bf16.msra.mxu0 0
  %2606 = vmatprep.subr.bf16.mxu0 0
  %2607 = vmatpush1.bf16.msra.mxu0 0
  %2608 = vmatprep.subr.bf16.mxu0 0
  %2609 = vmatpush1.bf16.msra.mxu0 0
  %2610 = vmatprep.subr.bf16.mxu0 0
  %2611 = vmatpush1.bf16.msra.mxu0 0
  %2612 = vmatprep.subr.bf16.mxu0 0
  %2613 = vmatpush1.bf16.msra.mxu0 0
  %2614 = vmatprep.subr.bf16.mxu0 0
  %2615 = vmatpush1.bf16.msra.mxu0 0
  %2616 = vmatprep.mubr.bf16.mxu0 0
  %2617 = vmatmul.mubr.bf16.gmra.mrb[0].mxu0 %v2570
  %v2618 = vpop.f32.mrb[0].mxu0
  %v2619 = vadd.f32 0.0, %v2618
  %v2620 = vpop.f32.mrb[0].mxu0
  %v2621 = vpop.f32.mrb[0].mxu0
  %v2622 = vadd.f32 0.0, %v2621
  %v2623 = vpop.f32.mrb[0].mxu0
  %2624 = vmatprep.mubr.bf16.mxu0 0
  %2625 = vmatmul.mubr.bf16.gmra.mrb[0].mxu0 %v2573
  %v2626 = vpop.f32.mrb[0].mxu0
  %v2627 = vadd.f32 0.0, %v2626
  %v2628 = vpop.f32.mrb[0].mxu0
  %v2629 = vpop.f32.mrb[0].mxu0
  %v2630 = vadd.f32 0.0, %v2629
  %v2631 = vpop.f32.mrb[0].mxu0
  %2632 = vmatprep.mubr.bf16.mxu0 0
  %2633 = vmatmul.mubr.bf16.gmra.mrb[0].mxu0 %v2576
  %v2634 = vpop.f32.mrb[0].mxu0
  %v2635 = vadd.f32 0.0, %v2634
  %v2636 = vpop.f32.mrb[0].mxu0
  %v2637 = vpop.f32.mrb[0].mxu0
  %v2638 = vadd.f32 0.0, %v2637
  %v2639 = vpop.f32.mrb[0].mxu0
  %2640 = vmatprep.mubr.bf16.mxu0 0
  %2641 = vmatmul.mubr.bf16.gmra.mrb[0].mxu0 %v2579
  %v2642 = vpop.f32.mrb[0].mxu0
  %v2643 = vadd.f32 0.0, %v2642
  %v2644 = vpop.f32.mrb[0].mxu0
  %v2645 = vpop.f32.mrb[0].mxu0
  %v2646 = vadd.f32 0.0, %v2645
  %v2647 = vpop.f32.mrb[0].mxu0
  %2648 = vdwg.mxu0
  %v2649 = vld [vmem:[%s3 + $0x1e0] sm:$0xf]
  %v2650 = vld [vmem:[%s3 + $0x1e8] sm:$0xf]
  %v2651 = vld [vmem:[%s3 + $0x1f0] sm:$0xf]
  %v2652 = vld [vmem:[%s3 + $0x1f8] sm:$0xf]
  %v2653 = vld [vmem:[%s3 + $0x200] sm:$0xf]
  %v2654 = vld [vmem:[%s3 + $0x208] sm:$0xf]
  %v2655 = vld [vmem:[%s3 + $0x210] sm:$0xf]
  %v2656 = vld [vmem:[%s3 + $0x218] sm:$0xf]
  %v2657 = vld [vmem:[%s3 + $0x220] sm:$0xf]
  %v2658 = vld [vmem:[%s3 + $0x228] sm:$0xf]
  %v2659 = vld [vmem:[%s3 + $0x230] sm:$0xf]
  %v2660 = vld [vmem:[%s3 + $0x238] sm:$0xf]
  %v2661 = vld [vmem:[%s3 + $0x240] sm:$0xf]
  %v2662 = vld [vmem:[%s3 + $0x248] sm:$0xf]
  %v2663 = vld [vmem:[%s3 + $0x250] sm:$0xf]
  %v2664 = vld [vmem:[%s3 + $0x258] sm:$0xf]
  %v2665 = vpack.c.bf16 %v2622, %v2619
  %v2666 = vpack.c.bf16 %v2630, %v2627
  %v2667 = vpack.c.bf16 %v2638, %v2635
  %v2668 = vpack.c.bf16 %v2646, %v2643
  %v2685 = vunpack.c.l.b16 %v2649
  %v2686 = vunpack.c.l.b16 %v2650
  %v2687 = vunpack.c.l.b16 %v2651
  %v2688 = vunpack.c.l.b16 %v2652
  %v2689 = vunpack.c.l.b16 %v2653
  %v2690 = vunpack.c.l.b16 %v2654
  %v2691 = vunpack.c.l.b16 %v2655
  %v2692 = vunpack.c.l.b16 %v2656
  %v2693 = vunpack.c.l.b16 %v2657
  %v2694 = vunpack.c.l.b16 %v2658
  %v2695 = vunpack.c.l.b16 %v2659
  %v2696 = vunpack.c.l.b16 %v2660
  %v2697 = vunpack.c.l.b16 %v2661
  %v2698 = vunpack.c.l.b16 %v2662
  %v2699 = vunpack.c.l.b16 %v2663
  %v2700 = vunpack.c.l.b16 %v2664
  %v2701 = vpack.c.b16 %v2686, %v2685
  %v2702 = vpack.c.b16 %v2688, %v2687
  %v2703 = vpack.c.b16 %v2690, %v2689
  %v2704 = vpack.c.b16 %v2692, %v2691
  %v2705 = vpack.c.b16 %v2694, %v2693
  %v2706 = vpack.c.b16 %v2696, %v2695
  %v2707 = vpack.c.b16 %v2698, %v2697
  %v2708 = vpack.c.b16 %v2700, %v2699
  %2717 = vmatprep.subr.bf16.mxu0 0
  %2718 = vmatpush1.bf16.msra.mxu0 %v2701
  %2719 = vmatprep.subr.bf16.mxu0 0
  %2720 = vmatpush1.bf16.msra.mxu0 %v2702
  %2721 = vmatprep.subr.bf16.mxu0 0
  %2722 = vmatpush1.bf16.msra.mxu0 %v2703
  %2723 = vmatprep.subr.bf16.mxu0 0
  %2724 = vmatpush1.bf16.msra.mxu0 %v2704
  %2725 = vmatprep.subr.bf16.mxu0 0
  %2726 = vmatpush1.bf16.msra.mxu0 %v2705
  %2727 = vmatprep.subr.bf16.mxu0 0
  %2728 = vmatpush1.bf16.msra.mxu0 %v2706
  %2729 = vmatprep.subr.bf16.mxu0 0
  %2730 = vmatpush1.bf16.msra.mxu0 %v2707
  %2731 = vmatprep.subr.bf16.mxu0 0
  %2732 = vmatpush1.bf16.msra.mxu0 %v2708
  %2733 = vmatprep.subr.bf16.mxu0 0
  %2734 = vmatpush1.bf16.msra.mxu0 0
  %2735 = vmatprep.subr.bf16.mxu0 0
  %2736 = vmatpush1.bf16.msra.mxu0 0
  %2737 = vmatprep.subr.bf16.mxu0 0
  %2738 = vmatpush1.bf16.msra.mxu0 0
  %2739 = vmatprep.subr.bf16.mxu0 0
  %2740 = vmatpush1.bf16.msra.mxu0 0
  %2741 = vmatprep.subr.bf16.mxu0 0
  %2742 = vmatpush1.bf16.msra.mxu0 0
  %2743 = vmatprep.subr.bf16.mxu0 0
  %2744 = vmatpush1.bf16.msra.mxu0 0
  %2745 = vmatprep.subr.bf16.mxu0 0
  %2746 = vmatpush1.bf16.msra.mxu0 0
  %2747 = vmatprep.subr.bf16.mxu0 0
  %2748 = vmatpush1.bf16.msra.mxu0 0
  %2749 = vmatprep.mubr.bf16.mxu0 0
  %2750 = vmatmul.mubr.bf16.gmra.mrb[0].mxu0 %v2665
  %v2751 = vpop.f32.mrb[0].mxu0
  %v2752 = vadd.f32 0.0, %v2751
  %v2753 = vpop.f32.mrb[0].mxu0
  %v2754 = vpop.f32.mrb[0].mxu0
  %v2755 = vadd.f32 0.0, %v2754
  %v2756 = vpop.f32.mrb[0].mxu0
  %2757 = vmatprep.mubr.bf16.mxu0 0
  %2758 = vmatmul.mubr.bf16.gmra.mrb[0].mxu0 %v2666
  %v2759 = vpop.f32.mrb[0].mxu0
  %v2760 = vadd.f32 0.0, %v2759
  %v2761 = vpop.f32.mrb[0].mxu0
  %v2762 = vpop.f32.mrb[0].mxu0
  %v2763 = vadd.f32 0.0, %v2762
  %v2764 = vpop.f32.mrb[0].mxu0
  %2765 = vmatprep.mubr.bf16.mxu0 0
  %2766 = vmatmul.mubr.bf16.gmra.mrb[0].mxu0 %v2667
  %v2767 = vpop.f32.mrb[0].mxu0
  %v2768 = vadd.f32 0.0, %v2767
  %v2769 = vpop.f32.mrb[0].mxu0
  %v2770 = vpop.f32.mrb[0].mxu0
  %v2771 = vadd.f32 0.0, %v2770
  %v2772 = vpop.f32.mrb[0].mxu0
  %2773 = vmatprep.mubr.bf16.mxu0 0
  %2774 = vmatmul.mubr.bf16.gmra.mrb[0].mxu0 %v2668
  %v2775 = vpop.f32.mrb[0].mxu0
  %v2776 = vadd.f32 0.0, %v2775
  %v2777 = vpop.f32.mrb[0].mxu0
  %v2778 = vpop.f32.mrb[0].mxu0
  %v2779 = vadd.f32 0.0, %v2778
  %v2780 = vpop.f32.mrb[0].mxu0
  %2781 = vdwg.mxu0
  %2790 = vrot.lane.b32.xlu0 %v2752, 64
  %v2791 = vpop.permute.xlu0 %2790
  %2792 = vrot.lane.b32.xlu0 %v2755, 64
  %v2793 = vpop.permute.xlu0 %2792
  %2794 = vrot.lane.b32.xlu0 %v2760, 64
  %v2795 = vpop.permute.xlu0 %2794
  %2796 = vrot.lane.b32.xlu0 %v2763, 64
  %v2797 = vpop.permute.xlu0 %2796
  %2798 = vrot.lane.b32.xlu0 %v2768, 64
  %v2799 = vpop.permute.xlu0 %2798
  %2800 = vrot.lane.b32.xlu0 %v2771, 64
  %v2801 = vpop.permute.xlu0 %2800
  %2802 = vrot.lane.b32.xlu0 %v2776, 64
  %v2803 = vpop.permute.xlu0 %2802
  %2804 = vrot.lane.b32.xlu0 %v2779, 64
  %v2805 = vpop.permute.xlu0 %2804
  %v2814 = vmax.f32 %v2752, %v2791
  %v2815 = vmax.f32 %v2755, %v2793
  %v2816 = vmax.f32 %v2760, %v2795
  %v2817 = vmax.f32 %v2763, %v2797
  %v2818 = vmax.f32 %v2768, %v2799
  %v2819 = vmax.f32 %v2771, %v2801
  %v2820 = vmax.f32 %v2776, %v2803
  %v2821 = vmax.f32 %v2779, %v2805
  %v2822 = vpack.c.bf16 %v2815, %v2814
  %v2823 = vpack.c.bf16 %v2817, %v2816
  %v2824 = vpack.c.bf16 %v2819, %v2818
  %v2825 = vpack.c.bf16 %v2821, %v2820
  %v2827 = vshrl.u32 %v2822, 16
  %v2829 = vrot.slane %v2827, 7
  %v2830 = vshll.u32 %v2822, 16
  %v2832 = vor.u32 %v2829, %v2830
  %v2834 = vshrl.u32 %v2823, 16
  %v2836 = vrot.slane %v2834, 7
  %v2837 = vshll.u32 %v2823, 16
  %v2839 = vor.u32 %v2836, %v2837
  %v2840 = vsel %vm1804, %v2829, %v2839
  %v2842 = vshrl.u32 %v2824, 16
  %v2844 = vrot.slane %v2842, 7
  %v2845 = vshll.u32 %v2824, 16
  %v2847 = vor.u32 %v2844, %v2845
  %v2848 = vsel %vm1804, %v2836, %v2847
  %v2850 = vshrl.u32 %v2825, 16
  %v2852 = vrot.slane %v2850, 7
  %v2853 = vshll.u32 %v2825, 16
  %v2855 = vor.u32 %v2852, %v2853
  %v2856 = vsel %vm1804, %v2844, %v2855
  %v2858 = vsel %vm1868, 0, %v2832
  %v2859 = vrot.slane %v2830, 1
  %v2860 = vor.u32 %v2827, %v2859
  %v2861 = vrot.slane %v2837, 1
  %v2862 = vsel %vm1870, %v2860, %v2861
  %v2863 = vor.u32 %v2834, %v2861
  %v2864 = vrot.slane %v2845, 1
  %v2865 = vsel %vm1870, %v2863, %v2864
  %v2866 = vor.u32 %v2842, %v2864
  %v2867 = vrot.slane %v2853, 1
  %v2868 = vsel %vm1870, %v2866, %v2867
  %v2869 = vor.u32 %v2850, %v2867
  %vm2871 = vcmask 1045504
  %vm2872 = vsmask.f32 5376
  %vm2873 = vmand %vm2871, %vm2872
  %v2874 = vsel %vm2873, %v2869, 0
  %2879 = vrot.lane.b32.xlu0 %v2822, 64
  %v2880 = vpop.permute.xlu0 %2879
  %2881 = vrot.lane.b32.xlu0 %v2823, 64
  %v2882 = vpop.permute.xlu0 %2881
  %2883 = vrot.lane.b32.xlu0 %v2824, 64
  %v2884 = vpop.permute.xlu0 %2883
  %2885 = vrot.lane.b32.xlu0 %v2825, 64
  %v2886 = vpop.permute.xlu0 %2885
  %v2889 = vsel %vm834, %v2858, %v2880
  %v2893 = vsel %vm834, %v2840, %v2882
  %v2897 = vsel %vm834, %v2848, %v2884
  %v2901 = vsel %vm834, %v2856, %v2886
  %v2903 = vld [vmem:[%s1 + $0x210] sm:$0xf]
  %v2904 = vld [vmem:[%s1 + $0x218] sm:$0xf]
  %v2905 = vld [vmem:[%s1 + $0x220] sm:$0xf]
  %v2906 = vld [vmem:[%s1 + $0x228] sm:$0xf]
  %v2907 = vld [vmem:[%s1 + $0x230] sm:$0xf]
  %v2908 = vld [vmem:[%s1 + $0x238] sm:$0xf]
  %v2909 = vld [vmem:[%s1 + $0x240] sm:$0xf]
  %v2910 = vld [vmem:[%s1 + $0x248] sm:$0xf]
  %v2911 = vld [vmem:[%s1 + $0x250] sm:$0xf]
  %v2912 = vld [vmem:[%s1 + $0x258] sm:$0xf]
  %v2913 = vld [vmem:[%s1 + $0x260] sm:$0xf]
  %v2914 = vld [vmem:[%s1 + $0x268] sm:$0xf]
  %v2915 = vld [vmem:[%s1 + $0x270] sm:$0xf]
  %v2916 = vld [vmem:[%s1 + $0x278] sm:$0xf]
  %v2917 = vld [vmem:[%s1 + $0x280] sm:$0xf]
  %v2918 = vld [vmem:[%s1 + $0x288] sm:$0xf]
  %v2919 = vld [vmem:[%s1 + $0x290] sm:$0xf]
  %v2920 = vld [vmem:[%s1 + $0x298] sm:$0xf]
  %v2921 = vld [vmem:[%s1 + $0x2a0] sm:$0xf]
  %v2922 = vld [vmem:[%s1 + $0x2a8] sm:$0xf]
  %v2923 = vld [vmem:[%s1 + $0x2b0] sm:$0xf]
  %v2924 = vld [vmem:[%s1 + $0x2b8] sm:$0xf]
  %v2925 = vld [vmem:[%s1 + $0x2c0] sm:$0xf]
  %v2926 = vld [vmem:[%s1 + $0x2c8] sm:$0xf]
  %v2951 = vunpack.c.l.b16 %v2903
  %v2952 = vunpack.c.l.b16 %v2904
  %v2953 = vunpack.c.l.b16 %v2905
  %v2954 = vunpack.c.l.b16 %v2906
  %v2955 = vunpack.c.l.b16 %v2907
  %v2956 = vunpack.c.l.b16 %v2908
  %v2957 = vunpack.c.l.b16 %v2909
  %v2958 = vunpack.c.l.b16 %v2910
  %v2959 = vunpack.c.l.b16 %v2911
  %v2960 = vunpack.c.l.b16 %v2912
  %v2961 = vunpack.c.l.b16 %v2913
  %v2962 = vunpack.c.l.b16 %v2914
  %v2963 = vunpack.c.l.b16 %v2915
  %v2964 = vunpack.c.l.b16 %v2916
  %v2965 = vunpack.c.l.b16 %v2917
  %v2966 = vunpack.c.l.b16 %v2918
  %v2967 = vunpack.c.l.b16 %v2919
  %v2968 = vunpack.c.l.b16 %v2920
  %v2969 = vunpack.c.l.b16 %v2921
  %v2970 = vunpack.c.l.b16 %v2922
  %v2971 = vunpack.c.l.b16 %v2923
  %v2972 = vunpack.c.l.b16 %v2924
  %v2973 = vunpack.c.l.b16 %v2925
  %v2974 = vunpack.c.l.b16 %v2926
  %v2975 = vpack.c.b16 %v2952, %v2951
  %v2976 = vpack.c.b16 %v2954, %v2953
  %v2977 = vpack.c.b16 %v2956, %v2955
  %v2978 = vpack.c.b16 %v2958, %v2957
  %v2979 = vpack.c.b16 %v2960, %v2959
  %v2980 = vpack.c.b16 %v2962, %v2961
  %v2981 = vpack.c.b16 %v2964, %v2963
  %v2982 = vpack.c.b16 %v2966, %v2965
  %v2983 = vpack.c.b16 %v2968, %v2967
  %v2984 = vpack.c.b16 %v2970, %v2969
  %v2985 = vpack.c.b16 %v2972, %v2971
  %v2986 = vpack.c.b16 %v2974, %v2973
  %v3000 = vsel %vm834, %v2862, 0
  %v3003 = vsel %vm834, %v2865, 0
  %v3006 = vsel %vm834, %v2868, 0
  %v3009 = vsel %vm834, %v2874, 0
  %3011 = vmatprep.subr.bf16.mxu0 0
  %3012 = vmatpush1.bf16.msra.mxu0 %v2975
  %3013 = vmatprep.subr.bf16.mxu0 0
  %3014 = vmatpush1.bf16.msra.mxu0 %v2976
  %3015 = vmatprep.subr.bf16.mxu0 0
  %3016 = vmatpush1.bf16.msra.mxu0 %v2977
  %3017 = vmatprep.subr.bf16.mxu0 0
  %3018 = vmatpush1.bf16.msra.mxu0 %v2978
  %3019 = vmatprep.subr.bf16.mxu0 0
  %3020 = vmatpush1.bf16.msra.mxu0 %v2979
  %3021 = vmatprep.subr.bf16.mxu0 0
  %3022 = vmatpush1.bf16.msra.mxu0 %v2980
  %3023 = vmatprep.subr.bf16.mxu0 0
  %3024 = vmatpush1.bf16.msra.mxu0 %v2981
  %3025 = vmatprep.subr.bf16.mxu0 0
  %3026 = vmatpush1.bf16.msra.mxu0 %v2982
  %3027 = vmatprep.subr.bf16.mxu0 0
  %3028 = vmatpush1.bf16.msra.mxu0 %v2983
  %3029 = vmatprep.subr.bf16.mxu0 0
  %3030 = vmatpush1.bf16.msra.mxu0 %v2984
  %3031 = vmatprep.subr.bf16.mxu0 0
  %3032 = vmatpush1.bf16.msra.mxu0 %v2985
  %3033 = vmatprep.subr.bf16.mxu0 0
  %3034 = vmatpush1.bf16.msra.mxu0 %v2986
  %3035 = vmatprep.subr.bf16.mxu0 0
  %3036 = vmatpush1.bf16.msra.mxu0 0
  %3037 = vmatprep.subr.bf16.mxu0 0
  %3038 = vmatpush1.bf16.msra.mxu0 0
  %3039 = vmatprep.subr.bf16.mxu0 0
  %3040 = vmatpush1.bf16.msra.mxu0 0
  %3041 = vmatprep.subr.bf16.mxu0 0
  %3042 = vmatpush1.bf16.msra.mxu0 0
  %3043 = vmatprep.mubr.bf16.mxu0 %v3000
  %3044 = vmatmul.mubr.bf16.gmra.mrb[0].mxu0 %v2889
  %v3045 = vpop.f32.mrb[0].mxu0
  %v3046 = vadd.f32 0.0, %v3045
  %v3047 = vpop.f32.mrb[0].mxu0
  %v3048 = vpop.f32.mrb[0].mxu0
  %v3049 = vadd.f32 0.0, %v3048
  %v3050 = vpop.f32.mrb[0].mxu0
  %3051 = vmatprep.mubr.bf16.mxu0 %v3003
  %3052 = vmatmul.mubr.bf16.gmra.mrb[0].mxu0 %v2893
  %v3053 = vpop.f32.mrb[0].mxu0
  %v3054 = vadd.f32 0.0, %v3053
  %v3055 = vpop.f32.mrb[0].mxu0
  %v3056 = vpop.f32.mrb[0].mxu0
  %v3057 = vadd.f32 0.0, %v3056
  %v3058 = vpop.f32.mrb[0].mxu0
  %3059 = vmatprep.mubr.bf16.mxu0 %v3006
  %3060 = vmatmul.mubr.bf16.gmra.mrb[0].mxu0 %v2897
  %v3061 = vpop.f32.mrb[0].mxu0
  %v3062 = vadd.f32 0.0, %v3061
  %v3063 = vpop.f32.mrb[0].mxu0
  %v3064 = vpop.f32.mrb[0].mxu0
  %v3065 = vadd.f32 0.0, %v3064
  %v3066 = vpop.f32.mrb[0].mxu0
  %3067 = vmatprep.mubr.bf16.mxu0 %v3009
  %3068 = vmatmul.mubr.bf16.gmra.mrb[0].mxu0 %v2901
  %v3069 = vpop.f32.mrb[0].mxu0
  %v3070 = vadd.f32 0.0, %v3069
  %v3071 = vpop.f32.mrb[0].mxu0
  %v3072 = vpop.f32.mrb[0].mxu0
  %v3073 = vadd.f32 0.0, %v3072
  %v3074 = vpop.f32.mrb[0].mxu0
  %3075 = vdwg.mxu0
  %3076 = vset.pattern.permute.xlu0 2
  %3077 = vperm.xlu0 %3076, %v26
  %v3078 = vpop.permute.xlu0 %3077
  %3080 = vset.pattern.permute.xlu0 2
  %3081 = vperm.xlu0 %3080, %v27
  %v3082 = vpop.permute.xlu0 %3081
  %3084 = vset.pattern.permute.xlu0 2
  %3085 = vperm.xlu0 %3084, %v28
  %v3086 = vpop.permute.xlu0 %3085
  %3088 = vset.pattern.permute.xlu0 2
  %3089 = vperm.xlu0 %3088, %v29
  %v3090 = vpop.permute.xlu0 %3089
  %3092 = vset.pattern.permute.xlu0 2
  %3093 = vperm.xlu0 %3092, %v30
  %v3094 = vpop.permute.xlu0 %3093
  %3096 = vset.pattern.permute.xlu0 2
  %3097 = vperm.xlu0 %3096, %v31
  %v3098 = vpop.permute.xlu0 %3097
  %3100 = vset.pattern.permute.xlu0 2
  %3101 = vperm.xlu0 %3100, %v32
  %v3102 = vpop.permute.xlu0 %3101
  %3104 = vset.pattern.permute.xlu0 2
  %3105 = vperm.xlu0 %3104, %v33
  %v3106 = vpop.permute.xlu0 %3105
  %v3108 = vmul.f32 %v3046, %v3078
  %v3109 = vmul.f32 %v3049, %v3082
  %v3110 = vmul.f32 %v3054, %v3086
  %v3111 = vmul.f32 %v3057, %v3090
  %v3112 = vmul.f32 %v3062, %v3094
  %v3113 = vmul.f32 %v3065, %v3098
  %v3114 = vmul.f32 %v3070, %v3102
  %v3115 = vmul.f32 %v3073, %v3106
  %v3116 = vsel %vm834, %v3108, 0.0
  %v3117 = vsel %vm834, %v3109, 0.0
  %v3118 = vadd.f32 %v3116, %v3117
  %v3119 = vsel %vm834, %v3110, 0.0
  %v3120 = vadd.f32 %v3118, %v3119
  %v3121 = vsel %vm834, %v3111, 0.0
  %v3122 = vadd.f32 %v3120, %v3121
  %v3123 = vsel %vm834, %v3112, 0.0
  %v3124 = vadd.f32 %v3122, %v3123
  %v3125 = vsel %vm834, %v3113, 0.0
  %v3126 = vadd.f32 %v3124, %v3125
  %v3127 = vsel %vm834, %v3114, 0.0
  %v3128 = vadd.f32 %v3126, %v3127
  %vm3129 = vcmask 519168
  %v3130 = vsel %vm3129, %v3115, 0.0
  %v3131 = vadd.f32 %v3128, %v3130
  %v3132 = vrot.slane %v3131, 4
  %v3133 = vadd.f32 %v3131, %v3132
  %v3134 = vrot.slane %v3133, 2
  %v3135 = vadd.f32 %v3133, %v3134
  %v3136 = vrot.slane %v3135, 1
  %v3137 = vadd.f32 %v3135, %v3136
  %v3138 = vmul.f32 %v3108, %v3046
  %v3139 = vmul.f32 %v3109, %v3049
  %v3140 = vmul.f32 %v3110, %v3054
  %v3141 = vmul.f32 %v3111, %v3057
  %v3142 = vmul.f32 %v3112, %v3062
  %v3143 = vmul.f32 %v3113, %v3065
  %v3144 = vmul.f32 %v3114, %v3070
  %v3145 = vmul.f32 %v3115, %v3073
  %v3146 = vsel %vm834, %v3138, 0.0
  %v3147 = vsel %vm834, %v3139, 0.0
  %v3148 = vadd.f32 %v3146, %v3147
  %v3149 = vsel %vm834, %v3140, 0.0
  %v3150 = vadd.f32 %v3148, %v3149
  %v3151 = vsel %vm834, %v3141, 0.0
  %v3152 = vadd.f32 %v3150, %v3151
  %v3153 = vsel %vm834, %v3142, 0.0
  %v3154 = vadd.f32 %v3152, %v3153
  %v3155 = vsel %vm834, %v3143, 0.0
  %v3156 = vadd.f32 %v3154, %v3155
  %v3157 = vsel %vm834, %v3144, 0.0
  %v3158 = vadd.f32 %v3156, %v3157
  %v3159 = vsel %vm3129, %v3145, 0.0
  %v3160 = vadd.f32 %v3158, %v3159
  %v3161 = vrot.slane %v3160, 4
  %v3162 = vadd.f32 %v3160, %v3161
  %v3163 = vrot.slane %v3162, 2
  %v3164 = vadd.f32 %v3162, %v3163
  %v3165 = vrot.slane %v3164, 1
  %v3166 = vadd.f32 %v3164, %v3165
  %v3167 = vsel %vm797, %v3137, %v3166
  %3169 = vrot.lane.b32.xlu0 %v3167, 80
  %v3170 = vpop.permute.xlu0 %3169
  %3172 = vrot.lane.b32.xlu0 %v3167, 16
  %v3173 = vpop.permute.xlu0 %3172
  %v3175 = vsel %vm285, %v3170, %v3173
  %v3176 = vadd.f32 %v3167, %v3175
  %3178 = vrot.lane.b32.xlu0 %v3176, 96
  %v3179 = vpop.permute.xlu0 %3178
  %3181 = vrot.lane.b32.xlu0 %v3176, 32
  %v3182 = vpop.permute.xlu0 %3181
  %v3184 = vsel %vm820, %v3179, %v3182
  %v3185 = vadd.f32 %v3176, %v3184
  %v3186 = vmul.f32 %v3185, 0.00625
  %v3187 = vmul.f32 %v3186, %v3186
  %v3189 = vrot.slane %v3187, 7
  %v3191 = vsub.f32 %v3186, %v3189
  %v3192 = vadd.f32 %v3191, 1e-05
  %v3193 = vrsqrt.pop %v3192
  %v3195 = vrot.slane %v3193, 5
  %v3197 = vmul.f32 %v24, %v3195
  %v3199 = vrot.slane %v3197, 4
  %v3201 = vmul.f32 %v3186, %v3199
  %v3203 = vrot.slane %v3201, 3
  %v3205 = vsub.f32 %v24, %v3203
  %v3206 = vlaneseq
  %v3207 = vshrl.u32 %v3206, 7
  %v3208 = vsub.s32 4, %v3207
  %v3209 = vrot.slane %v3197, %v3208
  %v3210 = vmul.f32 %v3046, %v3209
  %v3211 = vmul.f32 %v3049, %v3209
  %v3212 = vmul.f32 %v3054, %v3209
  %v3213 = vmul.f32 %v3057, %v3209
  %v3214 = vmul.f32 %v3062, %v3209
  %v3215 = vmul.f32 %v3065, %v3209
  %v3216 = vmul.f32 %v3070, %v3209
  %v3217 = vmul.f32 %v3073, %v3209
  %v3218 = vlaneseq
  %v3219 = vshrl.u32 %v3218, 7
  %v3220 = vsub.s32 5, %v3219
  %v3221 = vrot.slane %v3205, %v3220
  %v3222 = vadd.f32 %v3210, %v3221
  %v3223 = vadd.f32 %v3211, %v3221
  %v3224 = vadd.f32 %v3212, %v3221
  %v3225 = vadd.f32 %v3213, %v3221
  %v3226 = vadd.f32 %v3214, %v3221
  %v3227 = vadd.f32 %v3215, %v3221
  %v3228 = vadd.f32 %v3216, %v3221
  %v3229 = vadd.f32 %v3217, %v3221
  %v3230 = vmax.f32 %v3222, 0.0
  %v3231 = vmax.f32 %v3223, 0.0
  %v3232 = vmax.f32 %v3224, 0.0
  %v3233 = vmax.f32 %v3225, 0.0
  %v3234 = vmax.f32 %v3226, 0.0
  %v3235 = vmax.f32 %v3227, 0.0
  %v3236 = vmax.f32 %v3228, 0.0
  %v3237 = vmax.f32 %v3229, 0.0
  %v3246 = vrot.slane %v3230, 1
  %v3247 = vrot.slane %v3231, 1
  %v3248 = vsel %vm1065, %v3246, %v3247
  %v3249 = vrot.slane %v3232, 1
  %v3250 = vsel %vm1065, %v3247, %v3249
  %v3251 = vrot.slane %v3233, 1
  %v3252 = vsel %vm1065, %v3249, %v3251
  %v3253 = vrot.slane %v3234, 1
  %v3254 = vsel %vm1065, %v3251, %v3253
  %v3255 = vrot.slane %v3235, 1
  %v3256 = vsel %vm1065, %v3253, %v3255
  %v3257 = vrot.slane %v3236, 1
  %v3258 = vsel %vm1065, %v3255, %v3257
  %v3259 = vrot.slane %v3237, 1
  %v3260 = vsel %vm1065, %v3257, %v3259
  %v3269 = vmax.f32 %v3230, %v3248
  %v3270 = vmax.f32 %v3231, %v3250
  %v3271 = vmax.f32 %v3232, %v3252
  %v3272 = vmax.f32 %v3233, %v3254
  %v3273 = vmax.f32 %v3234, %v3256
  %v3274 = vmax.f32 %v3235, %v3258
  %v3275 = vmax.f32 %v3236, %v3260
  %v3276 = vmax.f32 %v3237, %v3259
  %v3277 = vpack.c.bf16 %v3270, %v3269
  %v3278 = vpack.c.bf16 %v3272, %v3271
  %v3279 = vpack.c.bf16 %v3274, %v3273
  %v3280 = vpack.c.bf16 %v3276, %v3275
  %v3281 = vld [vmem:[%s3 + $0xa8] sm:$0xf]
  %v3282 = vld [vmem:[%s3 + $0xb0] sm:$0xf]
  %v3283 = vld [vmem:[%s3 + $0xb8] sm:$0xf]
  %v3284 = vld [vmem:[%s3 + $0xc0] sm:$0xf]
  %v3285 = vld [vmem:[%s3 + $0xc8] sm:$0xf]
  %v3291 = vunpack.c.l.b16 %v3281
  %v3292 = vunpack.c.l.b16 %v3282
  %v3293 = vunpack.c.l.b16 %v3283
  %v3294 = vunpack.c.l.b16 %v3284
  %v3295 = vunpack.c.l.b16 %v3285
  %v3296 = vpack.c.b16 %v3292, %v3291
  %v3297 = vpack.c.b16 %v3294, %v3293
  %v3298 = vpack.c.b16 %v3295, %v3295
  %vm3299 = vcmask 482304
  %v3301 = vsel %vm3299, %v3296, 0
  %v3304 = vsel %vm3299, %v3297, 0
  %v3307 = vsel %vm3299, %v3298, 0
  %vm3309 = vcmask 1044480
  %vm3310 = vcmask 1045504
  %v3311 = vsel %vm3309, 4294967295, 65535
  %v3312 = vsel %vm3310, %v3311, 0
  %v3314 = vand.u32 %v3280, %v3312
  %3316 = vmatprep.subr.bf16.mxu0 0
  %3317 = vmatpush1.bf16.msra.mxu0 %v3277
  %3318 = vmatprep.subr.bf16.mxu0 0
  %3319 = vmatpush1.bf16.msra.mxu0 %v3278
  %3320 = vmatprep.subr.bf16.mxu0 0
  %3321 = vmatpush1.bf16.msra.mxu0 %v3279
  %3322 = vmatprep.subr.bf16.mxu0 0
  %3323 = vmatpush1.bf16.msra.mxu0 %v3314
  %3324 = vmatprep.subr.bf16.mxu0 0
  %3325 = vmatpush1.bf16.msra.mxu0 0
  %3326 = vmatprep.subr.bf16.mxu0 0
  %3327 = vmatpush1.bf16.msra.mxu0 0
  %3328 = vmatprep.subr.bf16.mxu0 0
  %3329 = vmatpush1.bf16.msra.mxu0 0
  %3330 = vmatprep.subr.bf16.mxu0 0
  %3331 = vmatpush1.bf16.msra.mxu0 0
  %3332 = vmatprep.subr.bf16.mxu0 0
  %3333 = vmatpush1.bf16.msra.mxu0 0
  %3334 = vmatprep.subr.bf16.mxu0 0
  %3335 = vmatpush1.bf16.msra.mxu0 0
  %3336 = vmatprep.subr.bf16.mxu0 0
  %3337 = vmatpush1.bf16.msra.mxu0 0
  %3338 = vmatprep.subr.bf16.mxu0 0
  %3339 = vmatpush1.bf16.msra.mxu0 0
  %3340 = vmatprep.subr.bf16.mxu0 0
  %3341 = vmatpush1.bf16.msra.mxu0 0
  %3342 = vmatprep.subr.bf16.mxu0 0
  %3343 = vmatpush1.bf16.msra.mxu0 0
  %3344 = vmatprep.subr.bf16.mxu0 0
  %3345 = vmatpush1.bf16.msra.mxu0 0
  %3346 = vmatprep.subr.bf16.mxu0 0
  %3347 = vmatpush1.bf16.msra.mxu0 0
  %3348 = vmatprep.mubr.bf16.mxu0 0
  %3349 = vmatmul.mubr.bf16.gmra.mrb[0].mxu0 %v3301
  %v3350 = vpop.f32.mrb[0].mxu0
  %v3351 = vadd.f32 0.0, %v3350
  %v3352 = vpop.f32.mrb[0].mxu0
  %v3353 = vpop.f32.mrb[0].mxu0
  %v3354 = vadd.f32 0.0, %v3353
  %v3355 = vpop.f32.mrb[0].mxu0
  %3356 = vmatprep.mubr.bf16.mxu0 0
  %3357 = vmatmul.mubr.bf16.gmra.mrb[0].mxu0 %v3304
  %v3358 = vpop.f32.mrb[0].mxu0
  %v3359 = vadd.f32 0.0, %v3358
  %v3360 = vpop.f32.mrb[0].mxu0
  %v3361 = vpop.f32.mrb[0].mxu0
  %v3362 = vadd.f32 0.0, %v3361
  %v3363 = vpop.f32.mrb[0].mxu0
  %3364 = vmatprep.mubr.bf16.mxu0 0
  %3365 = vmatmul.mubr.bf16.gmra.mrb[0].mxu0 %v3307
  %v3366 = vpop.f32.mrb[0].mxu0
  %v3367 = vadd.f32 0.0, %v3366
  %v3368 = vpop.f32.mrb[0].mxu0
  %v3369 = vpop.f32.mrb[0].mxu0
  %v3370 = vpop.f32.mrb[0].mxu0
  %3371 = vdwg.mxu0
  %v3372 = vld [vmem:[%s3 + $0x260] sm:$0xf]
  %v3373 = vld [vmem:[%s3 + $0x268] sm:$0xf]
  %v3374 = vld [vmem:[%s3 + $0x270] sm:$0xf]
  %v3375 = vld [vmem:[%s3 + $0x278] sm:$0xf]
  %v3376 = vld [vmem:[%s3 + $0x280] sm:$0xf]
  %v3377 = vld [vmem:[%s3 + $0x288] sm:$0xf]
  %v3378 = vld [vmem:[%s3 + $0x290] sm:$0xf]
  %v3379 = vld [vmem:[%s3 + $0x298] sm:$0xf]
  %v3380 = vpack.c.bf16 %v3354, %v3351
  %v3381 = vpack.c.bf16 %v3362, %v3359
  %v3382 = vpack.c.bf16 %v3367, %v3367
  %v3391 = vunpack.c.l.b16 %v3372
  %v3392 = vunpack.c.l.b16 %v3373
  %v3393 = vunpack.c.l.b16 %v3374
  %v3394 = vunpack.c.l.b16 %v3375
  %v3395 = vunpack.c.l.b16 %v3376
  %v3396 = vunpack.c.l.b16 %v3377
  %v3397 = vunpack.c.l.b16 %v3378
  %v3398 = vunpack.c.l.b16 %v3379
  %v3399 = vpack.c.b16 %v3392, %v3391
  %v3400 = vpack.c.b16 %v3394, %v3393
  %v3401 = vpack.c.b16 %v3396, %v3395
  %v3402 = vpack.c.b16 %v3398, %v3397
  %v3408 = vsel %vm834, %v3380, 0
  %v3411 = vsel %vm834, %v3381, 0
  %v3414 = vsel %vm834, %v3382, 0
  %3416 = vmatprep.subr.bf16.mxu0 0
  %3417 = vmatpush1.bf16.msra.mxu0 %v3399
  %3418 = vmatprep.subr.bf16.mxu0 0
  %3419 = vmatpush1.bf16.msra.mxu0 %v3400
  %3420 = vmatprep.subr.bf16.mxu0 0
  %3421 = vmatpush1.bf16.msra.mxu0 %v3401
  %3422 = vmatprep.subr.bf16.mxu0 0
  %3423 = vmatpush1.bf16.msra.mxu0 %v3402
  %3424 = vmatprep.subr.bf16.mxu0 0
  %3425 = vmatpush1.bf16.msra.mxu0 0
  %3426 = vmatprep.subr.bf16.mxu0 0
  %3427 = vmatpush1.bf16.msra.mxu0 0
  %3428 = vmatprep.subr.bf16.mxu0 0
  %3429 = vmatpush1.bf16.msra.mxu0 0
  %3430 = vmatprep.subr.bf16.mxu0 0
  %3431 = vmatpush1.bf16.msra.mxu0 0
  %3432 = vmatprep.subr.bf16.mxu0 0
  %3433 = vmatpush1.bf16.msra.mxu0 0
  %3434 = vmatprep.subr.bf16.mxu0 0
  %3435 = vmatpush1.bf16.msra.mxu0 0
  %3436 = vmatprep.subr.bf16.mxu0 0
  %3437 = vmatpush1.bf16.msra.mxu0 0
  %3438 = vmatprep.subr.bf16.mxu0 0
  %3439 = vmatpush1.bf16.msra.mxu0 0
  %3440 = vmatprep.subr.bf16.mxu0 0
  %3441 = vmatpush1.bf16.msra.mxu0 0
  %3442 = vmatprep.subr.bf16.mxu0 0
  %3443 = vmatpush1.bf16.msra.mxu0 0
  %3444 = vmatprep.subr.bf16.mxu0 0
  %3445 = vmatpush1.bf16.msra.mxu0 0
  %3446 = vmatprep.subr.bf16.mxu0 0
  %3447 = vmatpush1.bf16.msra.mxu0 0
  %3448 = vmatprep.mubr.bf16.mxu0 0
  %3449 = vmatmul.mubr.bf16.gmra.mrb[0].mxu0 %v3408
  %v3450 = vpop.f32.mrb[0].mxu0
  %v3451 = vadd.f32 0.0, %v3450
  %v3452 = vpop.f32.mrb[0].mxu0
  %v3453 = vpop.f32.mrb[0].mxu0
  %v3454 = vadd.f32 0.0, %v3453
  %v3455 = vpop.f32.mrb[0].mxu0
  %3456 = vmatprep.mubr.bf16.mxu0 0
  %3457 = vmatmul.mubr.bf16.gmra.mrb[0].mxu0 %v3411
  %v3458 = vpop.f32.mrb[0].mxu0
  %v3459 = vadd.f32 0.0, %v3458
  %v3460 = vpop.f32.mrb[0].mxu0
  %v3461 = vpop.f32.mrb[0].mxu0
  %v3462 = vadd.f32 0.0, %v3461
  %v3463 = vpop.f32.mrb[0].mxu0
  %3464 = vmatprep.mubr.bf16.mxu0 0
  %3465 = vmatmul.mubr.bf16.gmra.mrb[0].mxu0 %v3414
  %v3466 = vpop.f32.mrb[0].mxu0
  %v3467 = vadd.f32 0.0, %v3466
  %v3468 = vpop.f32.mrb[0].mxu0
  %v3469 = vpop.f32.mrb[0].mxu0
  %v3470 = vpop.f32.mrb[0].mxu0
  %3471 = vdwg.mxu0
  %3477 = vrot.lane.b32.xlu0 %v3451, 96
  %v3478 = vpop.permute.xlu0 %3477
  %3479 = vrot.lane.b32.xlu0 %v3454, 96
  %v3480 = vpop.permute.xlu0 %3479
  %3481 = vrot.lane.b32.xlu0 %v3459, 96
  %v3482 = vpop.permute.xlu0 %3481
  %3483 = vrot.lane.b32.xlu0 %v3462, 96
  %v3484 = vpop.permute.xlu0 %3483
  %3485 = vrot.lane.b32.xlu0 %v3467, 96
  %v3486 = vpop.permute.xlu0 %3485
  %v3492 = vmax.f32 %v3451, %v3478
  %v3493 = vmax.f32 %v3454, %v3480
  %v3494 = vmax.f32 %v3459, %v3482
  %v3495 = vmax.f32 %v3462, %v3484
  %v3496 = vmax.f32 %v3467, %v3486
  %v3497 = vpack.c.bf16 %v3493, %v3492
  %v3498 = vpack.c.bf16 %v3495, %v3494
  %v3499 = vpack.c.bf16 %v3496, %v3496
  %v3501 = vshrl.u32 %v3497, 16
  %v3503 = vrot.slane %v3501, 7
  %v3504 = vshll.u32 %v3497, 16
  %v3506 = vor.u32 %v3503, %v3504
  %v3508 = vshrl.u32 %v3498, 16
  %v3510 = vrot.slane %v3508, 7
  %v3511 = vshll.u32 %v3498, 16
  %v3513 = vor.u32 %v3510, %v3511
  %v3514 = vsel %vm1804, %v3503, %v3513
  %v3516 = vshrl.u32 %v3499, 16
  %v3518 = vrot.slane %v3516, 7
  %v3519 = vshll.u32 %v3499, 16
  %v3521 = vor.u32 %v3518, %v3519
  %v3522 = vsel %vm1804, %v3510, %v3521
  %v3524 = vsel %vm1868, 0, %v3506
  %v3525 = vrot.slane %v3504, 1
  %v3526 = vor.u32 %v3501, %v3525
  %v3527 = vrot.slane %v3511, 1
  %v3528 = vsel %vm1870, %v3526, %v3527
  %v3529 = vor.u32 %v3508, %v3527
  %v3530 = vrot.slane %v3519, 1
  %v3531 = vsel %vm1870, %v3529, %v3530
  %v3532 = vor.u32 %v3516, %v3530
  %vm3534 = vcmask 1043456
  %vm3535 = vsmask.f32 3328
  %vm3536 = vmand %vm3534, %vm3535
  %v3537 = vsel %vm3536, %v3532, 0
  %3541 = vrot.lane.b32.xlu0 %v3497, 32
  %v3542 = vpop.permute.xlu0 %3541
  %3543 = vrot.lane.b32.xlu0 %v3498, 32
  %v3544 = vpop.permute.xlu0 %3543
  %3545 = vrot.lane.b32.xlu0 %v3499, 32
  %v3546 = vpop.permute.xlu0 %3545
  %3548 = vrot.lane.b32.xlu0 %v3528, 64
  %v3549 = vpop.permute.xlu0 %3548
  %3550 = vrot.lane.b32.xlu0 %v3531, 64
  %v3551 = vpop.permute.xlu0 %3550
  %3552 = vrot.lane.b32.xlu0 %v3537, 64
  %v3553 = vpop.permute.xlu0 %3552
  %v3556 = vsel %vm820, %v3524, %v3542
  %v3559 = vsel %vm820, %v3514, %v3544
  %v3562 = vsel %vm820, %v3522, %v3546
  %v3564 = vsel %vm834, %v3556, %v3549
  %v3566 = vsel %vm834, %v3559, %v3551
  %v3568 = vsel %vm834, %v3562, %v3553
  %v3569 = vld [vmem:[%s1 + $0x2d0] sm:$0xf]
  %v3570 = vld [vmem:[%s1 + $0x2d8] sm:$0xf]
  %v3571 = vld [vmem:[%s1 + $0x2e0] sm:$0xf]
  %v3572 = vld [vmem:[%s1 + $0x2e8] sm:$0xf]
  %v3573 = vld [vmem:[%s1 + $0x2f0] sm:$0xf]
  %v3574 = vld [vmem:[%s1 + $0x2f8] sm:$0xf]
  %v3575 = vld [vmem:[%s1 + $0x300] sm:$0xf]
  %v3576 = vld [vmem:[%s1 + $0x308] sm:$0xf]
  %v3577 = vld [vmem:[%s1 + $0x310] sm:$0xf]
  %v3578 = vld [vmem:[%s1 + $0x318] sm:$0xf]
  %v3579 = vld [vmem:[%s1 + $0x320] sm:$0xf]
  %v3580 = vld [vmem:[%s1 + $0x328] sm:$0xf]
  %v3593 = vunpack.c.l.b16 %v3569
  %v3594 = vunpack.c.l.b16 %v3570
  %v3595 = vunpack.c.l.b16 %v3571
  %v3596 = vunpack.c.l.b16 %v3572
  %v3597 = vunpack.c.l.b16 %v3573
  %v3598 = vunpack.c.l.b16 %v3574
  %v3599 = vunpack.c.l.b16 %v3575
  %v3600 = vunpack.c.l.b16 %v3576
  %v3601 = vunpack.c.l.b16 %v3577
  %v3602 = vunpack.c.l.b16 %v3578
  %v3603 = vunpack.c.l.b16 %v3579
  %v3604 = vunpack.c.l.b16 %v3580
  %v3605 = vpack.c.b16 %v3594, %v3593
  %v3606 = vpack.c.b16 %v3596, %v3595
  %v3607 = vpack.c.b16 %v3598, %v3597
  %v3608 = vpack.c.b16 %v3600, %v3599
  %v3609 = vpack.c.b16 %v3602, %v3601
  %v3610 = vpack.c.b16 %v3604, %v3603
  %vm3617 = vcmask 785408
  %v3618 = vsel %vm3617, %v3564, 0
  %v3620 = vsel %vm3617, %v3566, 0
  %v3622 = vsel %vm3617, %v3568, 0
  %3624 = vmatprep.subr.bf16.mxu0 0
  %3625 = vmatpush1.bf16.msra.mxu0 %v3605
  %3626 = vmatprep.subr.bf16.mxu0 0
  %3627 = vmatpush1.bf16.msra.mxu0 %v3606
  %3628 = vmatprep.subr.bf16.mxu0 0
  %3629 = vmatpush1.bf16.msra.mxu0 %v3607
  %3630 = vmatprep.subr.bf16.mxu0 0
  %3631 = vmatpush1.bf16.msra.mxu0 %v3608
  %3632 = vmatprep.subr.bf16.mxu0 0
  %3633 = vmatpush1.bf16.msra.mxu0 %v3609
  %3634 = vmatprep.subr.bf16.mxu0 0
  %3635 = vmatpush1.bf16.msra.mxu0 %v3610
  %3636 = vmatprep.subr.bf16.mxu0 0
  %3637 = vmatpush1.bf16.msra.mxu0 0
  %3638 = vmatprep.subr.bf16.mxu0 0
  %3639 = vmatpush1.bf16.msra.mxu0 0
  %3640 = vmatprep.subr.bf16.mxu0 0
  %3641 = vmatpush1.bf16.msra.mxu0 0
  %3642 = vmatprep.subr.bf16.mxu0 0
  %3643 = vmatpush1.bf16.msra.mxu0 0
  %3644 = vmatprep.subr.bf16.mxu0 0
  %3645 = vmatpush1.bf16.msra.mxu0 0
  %3646 = vmatprep.subr.bf16.mxu0 0
  %3647 = vmatpush1.bf16.msra.mxu0 0
  %3648 = vmatprep.subr.bf16.mxu0 0
  %3649 = vmatpush1.bf16.msra.mxu0 0
  %3650 = vmatprep.subr.bf16.mxu0 0
  %3651 = vmatpush1.bf16.msra.mxu0 0
  %3652 = vmatprep.subr.bf16.mxu0 0
  %3653 = vmatpush1.bf16.msra.mxu0 0
  %3654 = vmatprep.subr.bf16.mxu0 0
  %3655 = vmatpush1.bf16.msra.mxu0 0
  %3656 = vmatprep.mubr.bf16.mxu0 0
  %3657 = vmatmul.mubr.bf16.gmra.mrb[0].mxu0 %v3618
  %v3658 = vpop.f32.mrb[0].mxu0
  %v3659 = vadd.f32 0.0, %v3658
  %v3660 = vpop.f32.mrb[0].mxu0
  %v3661 = vpop.f32.mrb[0].mxu0
  %v3662 = vadd.f32 0.0, %v3661
  %v3663 = vpop.f32.mrb[0].mxu0
  %3664 = vmatprep.mubr.bf16.mxu0 0
  %3665 = vmatmul.mubr.bf16.gmra.mrb[0].mxu0 %v3620
  %v3666 = vpop.f32.mrb[0].mxu0
  %v3667 = vadd.f32 0.0, %v3666
  %v3668 = vpop.f32.mrb[0].mxu0
  %v3669 = vpop.f32.mrb[0].mxu0
  %v3670 = vadd.f32 0.0, %v3669
  %v3671 = vpop.f32.mrb[0].mxu0
  %3672 = vmatprep.mubr.bf16.mxu0 0
  %3673 = vmatmul.mubr.bf16.gmra.mrb[0].mxu0 %v3622
  %v3674 = vpop.f32.mrb[0].mxu0
  %v3675 = vadd.f32 0.0, %v3674
  %v3676 = vpop.f32.mrb[0].mxu0
  %v3677 = vpop.f32.mrb[0].mxu0
  %v3678 = vpop.f32.mrb[0].mxu0
  %3679 = vdwg.mxu0
  %3680 = vset.pattern.permute.xlu0 3
  %3681 = vperm.xlu0 %3680, %v26
  %v3682 = vpop.permute.xlu0 %3681
  %3684 = vset.pattern.permute.xlu0 3
  %3685 = vperm.xlu0 %3684, %v27
  %v3686 = vpop.permute.xlu0 %3685
  %3688 = vset.pattern.permute.xlu0 3
  %3689 = vperm.xlu0 %3688, %v28
  %v3690 = vpop.permute.xlu0 %3689
  %3692 = vset.pattern.permute.xlu0 3
  %3693 = vperm.xlu0 %3692, %v29
  %v3694 = vpop.permute.xlu0 %3693
  %3696 = vset.pattern.permute.xlu0 3
  %3697 = vperm.xlu0 %3696, %v30
  %v3698 = vpop.permute.xlu0 %3697
  %v3700 = vmul.f32 %v3659, %v3682
  %v3701 = vmul.f32 %v3662, %v3686
  %v3702 = vmul.f32 %v3667, %v3690
  %v3703 = vmul.f32 %v3670, %v3694
  %v3704 = vmul.f32 %v3675, %v3698
  %v3705 = vsel %vm820, %v3700, 0.0
  %v3706 = vsel %vm820, %v3701, 0.0
  %v3707 = vadd.f32 %v3705, %v3706
  %v3708 = vsel %vm820, %v3702, 0.0
  %v3709 = vadd.f32 %v3707, %v3708
  %v3710 = vsel %vm820, %v3703, 0.0
  %v3711 = vadd.f32 %v3709, %v3710
  %v3712 = vsel %vm820, %v3704, 0.0
  %v3713 = vadd.f32 %v3711, %v3712
  %v3714 = vrot.slane %v3713, 4
  %v3715 = vadd.f32 %v3713, %v3714
  %v3716 = vrot.slane %v3715, 2
  %v3717 = vadd.f32 %v3715, %v3716
  %v3718 = vrot.slane %v3717, 1
  %v3719 = vadd.f32 %v3717, %v3718
  %v3720 = vmul.f32 %v3700, %v3659
  %v3721 = vmul.f32 %v3701, %v3662
  %v3722 = vmul.f32 %v3702, %v3667
  %v3723 = vmul.f32 %v3703, %v3670
  %v3724 = vmul.f32 %v3704, %v3675
  %v3725 = vsel %vm820, %v3720, 0.0
  %v3726 = vsel %vm820, %v3721, 0.0
  %v3727 = vadd.f32 %v3725, %v3726
  %v3728 = vsel %vm820, %v3722, 0.0
  %v3729 = vadd.f32 %v3727, %v3728
  %v3730 = vsel %vm820, %v3723, 0.0
  %v3731 = vadd.f32 %v3729, %v3730
  %v3732 = vsel %vm820, %v3724, 0.0
  %v3733 = vadd.f32 %v3731, %v3732
  %v3734 = vrot.slane %v3733, 4
  %v3735 = vadd.f32 %v3733, %v3734
  %v3736 = vrot.slane %v3735, 2
  %v3737 = vadd.f32 %v3735, %v3736
  %v3738 = vrot.slane %v3737, 1
  %v3739 = vadd.f32 %v3737, %v3738
  %v3740 = vsel %vm797, %v3719, %v3739
  %3742 = vrot.lane.b32.xlu0 %v3740, 112
  %v3743 = vpop.permute.xlu0 %3742
  %3745 = vrot.lane.b32.xlu0 %v3740, 16
  %v3746 = vpop.permute.xlu0 %3745
  %v3748 = vsel %vm285, %v3743, %v3746
  %v3749 = vadd.f32 %v3740, %v3748
  %v3750 = vmul.f32 %v3749, 0.025
  %v3751 = vmul.f32 %v3750, %v3750
  %v3753 = vrot.slane %v3751, 7
  %v3755 = vsub.f32 %v3750, %v3753
  %v3756 = vadd.f32 %v3755, 1e-05
  %v3757 = vrsqrt.pop %v3756
  %v3759 = vrot.slane %v3757, 3
  %v3761 = vmul.f32 %v24, %v3759
  %v3763 = vrot.slane %v3761, 6
  %v3765 = vmul.f32 %v3750, %v3763
  %v3767 = vrot.slane %v3765, 1
  %v3769 = vsub.f32 %v24, %v3767
  %v3770 = vlaneseq
  %v3771 = vshrl.u32 %v3770, 7
  %v3772 = vsub.s32 6, %v3771
  %v3773 = vrot.slane %v3761, %v3772
  %v3774 = vmul.f32 %v3659, %v3773
  %v3775 = vmul.f32 %v3662, %v3773
  %v3776 = vmul.f32 %v3667, %v3773
  %v3777 = vmul.f32 %v3670, %v3773
  %v3778 = vmul.f32 %v3675, %v3773
  %v3779 = vlaneseq
  %v3780 = vshrl.u32 %v3779, 7
  %v3781 = vsub.s32 7, %v3780
  %v3782 = vrot.slane %v3769, %v3781
  %v3783 = vadd.f32 %v3774, %v3782
  %v3784 = vadd.f32 %v3775, %v3782
  %v3785 = vadd.f32 %v3776, %v3782
  %v3786 = vadd.f32 %v3777, %v3782
  %v3787 = vadd.f32 %v3778, %v3782
  %v3788 = vmax.f32 %v3783, 0.0
  %v3789 = vmax.f32 %v3784, 0.0
  %v3790 = vmax.f32 %v3785, 0.0
  %v3791 = vmax.f32 %v3786, 0.0
  %v3792 = vmax.f32 %v3787, 0.0
  %v3798 = vrot.slane %v3788, 1
  %v3799 = vrot.slane %v3789, 1
  %v3800 = vsel %vm1065, %v3798, %v3799
  %v3801 = vrot.slane %v3790, 1
  %v3802 = vsel %vm1065, %v3799, %v3801
  %v3803 = vrot.slane %v3791, 1
  %v3804 = vsel %vm1065, %v3801, %v3803
  %v3805 = vrot.slane %v3792, 1
  %v3806 = vsel %vm1065, %v3803, %v3805
  %v3812 = vmax.f32 %v3788, %v3800
  %v3813 = vmax.f32 %v3789, %v3802
  %v3814 = vmax.f32 %v3790, %v3804
  %v3815 = vmax.f32 %v3791, %v3806
  %v3816 = vmax.f32 %v3792, %v3805
  %v3817 = vpack.c.bf16 %v3813, %v3812
  %v3818 = vpack.c.bf16 %v3815, %v3814
  %v3819 = vpack.c.bf16 %v3816, %v3816
  %v3820 = vld [vmem:[%s3 + $0xd0] sm:$0xf]
  %v3821 = vld [vmem:[%s3 + $0xd8] sm:$0x1]
  %v3824 = vunpack.c.l.b16 %v3820
  %v3825 = vunpack.c.l.b16 %v3821
  %v3826 = vpack.c.b16 %v3825, %v3824
  %vm3827 = vcmask 318464
  %v3829 = vsel %vm3827, %v3826, 0
  %vm3831 = vcmask 1042432
  %v3832 = vsel %vm3831, 4294967295, 65535
  %v3833 = vsel %vm655, %v3832, 0
  %v3835 = vand.u32 %v3819, %v3833
  %3837 = vmatprep.subr.bf16.mxu0 0
  %3838 = vmatpush1.bf16.msra.mxu0 %v3817
  %3839 = vmatprep.subr.bf16.mxu0 0
  %3840 = vmatpush1.bf16.msra.mxu0 %v3818
  %3841 = vmatprep.subr.bf16.mxu0 0
  %3842 = vmatpush1.bf16.msra.mxu0 %v3835
  %3843 = vmatprep.subr.bf16.mxu0 0
  %3844 = vmatpush1.bf16.msra.mxu0 0
  %3845 = vmatprep.subr.bf16.mxu0 0
  %3846 = vmatpush1.bf16.msra.mxu0 0
  %3847 = vmatprep.subr.bf16.mxu0 0
  %3848 = vmatpush1.bf16.msra.mxu0 0
  %3849 = vmatprep.subr.bf16.mxu0 0
  %3850 = vmatpush1.bf16.msra.mxu0 0
  %3851 = vmatprep.subr.bf16.mxu0 0
  %3852 = vmatpush1.bf16.msra.mxu0 0
  %3853 = vmatprep.subr.bf16.mxu0 0
  %3854 = vmatpush1.bf16.msra.mxu0 0
  %3855 = vmatprep.subr.bf16.mxu0 0
  %3856 = vmatpush1.bf16.msra.mxu0 0
  %3857 = vmatprep.subr.bf16.mxu0 0
  %3858 = vmatpush1.bf16.msra.mxu0 0
  %3859 = vmatprep.subr.bf16.mxu0 0
  %3860 = vmatpush1.bf16.msra.mxu0 0
  %3861 = vmatprep.subr.bf16.mxu0 0
  %3862 = vmatpush1.bf16.msra.mxu0 0
  %3863 = vmatprep.subr.bf16.mxu0 0
  %3864 = vmatpush1.bf16.msra.mxu0 0
  %3865 = vmatprep.subr.bf16.mxu0 0
  %3866 = vmatpush1.bf16.msra.mxu0 0
  %3867 = vmatprep.subr.bf16.mxu0 0
  %3868 = vmatpush1.bf16.msra.mxu0 0
  %3869 = vmatprep.mubr.bf16.mxu0 0
  %3870 = vmatmul.mubr.bf16.gmra.mrb[0].mxu0 %v3829
  %v3871 = vpop.f32.mrb[0].mxu0
  %v3872 = vadd.f32 0.0, %v3871
  %v3873 = vpop.f32.mrb[0].mxu0
  %v3874 = vpop.f32.mrb[0].mxu0
  %v3875 = vadd.f32 0.0, %v3874
  %v3876 = vpop.f32.mrb[0].mxu0
  %3877 = vdwg.mxu0
  %v3878 = vld [vmem:[%s3 + $0x2a0] sm:$0xf]
  %v3879 = vld [vmem:[%s3 + $0x2a8] sm:$0xf]
  %v3880 = vld [vmem:[%s3 + $0x2b0] sm:$0xf]
  %v3881 = vld [vmem:[%s3 + $0x2b8] sm:$0xf]
  %v3882 = vpack.c.bf16 %v3875, %v3872
  %v3887 = vunpack.c.l.b16 %v3878
  %v3888 = vunpack.c.l.b16 %v3879
  %v3889 = vunpack.c.l.b16 %v3880
  %v3890 = vunpack.c.l.b16 %v3881
  %v3891 = vpack.c.b16 %v3888, %v3887
  %v3892 = vpack.c.b16 %v3890, %v3889
  %v3896 = vsel %vm820, %v3882, 0
  %3898 = vmatprep.subr.bf16.mxu0 0
  %3899 = vmatpush1.bf16.msra.mxu0 %v3891
  %3900 = vmatprep.subr.bf16.mxu0 0
  %3901 = vmatpush1.bf16.msra.mxu0 %v3892
  %3902 = vmatprep.subr.bf16.mxu0 0
  %3903 = vmatpush1.bf16.msra.mxu0 0
  %3904 = vmatprep.subr.bf16.mxu0 0
  %3905 = vmatpush1.bf16.msra.mxu0 0
  %3906 = vmatprep.subr.bf16.mxu0 0
  %3907 = vmatpush1.bf16.msra.mxu0 0
  %3908 = vmatprep.subr.bf16.mxu0 0
  %3909 = vmatpush1.bf16.msra.mxu0 0
  %3910 = vmatprep.subr.bf16.mxu0 0
  %3911 = vmatpush1.bf16.msra.mxu0 0
  %3912 = vmatprep.subr.bf16.mxu0 0
  %3913 = vmatpush1.bf16.msra.mxu0 0
  %3914 = vmatprep.subr.bf16.mxu0 0
  %3915 = vmatpush1.bf16.msra.mxu0 0
  %3916 = vmatprep.subr.bf16.mxu0 0
  %3917 = vmatpush1.bf16.msra.mxu0 0
  %3918 = vmatprep.subr.bf16.mxu0 0
  %3919 = vmatpush1.bf16.msra.mxu0 0
  %3920 = vmatprep.subr.bf16.mxu0 0
  %3921 = vmatpush1.bf16.msra.mxu0 0
  %3922 = vmatprep.subr.bf16.mxu0 0
  %3923 = vmatpush1.bf16.msra.mxu0 0
  %3924 = vmatprep.subr.bf16.mxu0 0
  %3925 = vmatpush1.bf16.msra.mxu0 0
  %3926 = vmatprep.subr.bf16.mxu0 0
  %3927 = vmatpush1.bf16.msra.mxu0 0
  %3928 = vmatprep.subr.bf16.mxu0 0
  %3929 = vmatpush1.bf16.msra.mxu0 0
  %3930 = vmatprep.mubr.bf16.mxu0 0
  %3931 = vmatmul.mubr.bf16.gmra.mrb[0].mxu0 %v3896
  %v3932 = vpop.f32.mrb[0].mxu0
  %v3933 = vadd.f32 0.0, %v3932
  %v3934 = vpop.f32.mrb[0].mxu0
  %v3935 = vpop.f32.mrb[0].mxu0
  %v3936 = vadd.f32 0.0, %v3935
  %v3937 = vpop.f32.mrb[0].mxu0
  %3938 = vdwg.mxu0
  %3941 = vrot.lane.b32.xlu0 %v3933, 112
  %v3942 = vpop.permute.xlu0 %3941
  %3943 = vrot.lane.b32.xlu0 %v3936, 112
  %v3944 = vpop.permute.xlu0 %3943
  %v3947 = vmax.f32 %v3933, %v3942
  %v3948 = vmax.f32 %v3936, %v3944
  %v3949 = vld [vmem:[%s5] sm:$0xff]
  %v3950 = vld [vmem:[%s5 + $0x8] sm:$0xff]
  %v3951 = vld [vmem:[%s5 + $0x10] sm:$0x1]
  %v3952 = vlaneseq
  %v3953 = vshrl.u32 %v3952, 7
  %v3954 = vsub.s32 0, %v3953
  %v3955 = vrot.slane %v3951, %v3954
  %v3957 = vsel %vm285, %v3947, 0
  %v3960 = vsel %vm285, %v3948, 0
  %3962 = vmatprep.subr.mxu0 0.0
  %3963 = vmatpush1.msra.mxu0 %v3949
  %3964 = vmatprep.subr.mxu0 0.0
  %3965 = vmatpush1.msra.mxu0 %v3950
  %3966 = vmatprep.subr.mxu0 0.0
  %3967 = vmatpush1.msra.mxu0 0.0
  %3968 = vmatprep.subr.mxu0 0.0
  %3969 = vmatpush1.msra.mxu0 0.0
  %3970 = vmatprep.subr.mxu0 0.0
  %3971 = vmatpush1.msra.mxu0 0.0
  %3972 = vmatprep.subr.mxu0 0.0
  %3973 = vmatpush1.msra.mxu0 0.0
  %3974 = vmatprep.subr.mxu0 0.0
  %3975 = vmatpush1.msra.mxu0 0.0
  %3976 = vmatprep.subr.mxu0 0.0
  %3977 = vmatpush1.msra.mxu0 0.0
  %3978 = vmatprep.subr.mxu0 0.0
  %3979 = vmatpush1.msra.mxu0 0.0
  %3980 = vmatprep.subr.mxu0 0.0
  %3981 = vmatpush1.msra.mxu0 0.0
  %3982 = vmatprep.subr.mxu0 0.0
  %3983 = vmatpush1.msra.mxu0 0.0
  %3984 = vmatprep.subr.mxu0 0.0
  %3985 = vmatpush1.msra.mxu0 0.0
  %3986 = vmatprep.subr.mxu0 0.0
  %3987 = vmatpush1.msra.mxu0 0.0
  %3988 = vmatprep.subr.mxu0 0.0
  %3989 = vmatpush1.msra.mxu0 0.0
  %3990 = vmatprep.subr.mxu0 0.0
  %3991 = vmatpush1.msra.mxu0 0.0
  %3992 = vmatprep.subr.mxu0 0.0
  %3993 = vmatpush1.msra.mxu0 0.0
  %3994 = vmatprep.subr.mxu0 0.0
  %3995 = vmatpush1.msra.mxu0 0.0
  %3996 = vmatprep.subr.mxu0 0.0
  %3997 = vmatpush1.msra.mxu0 0.0
  %3998 = vmatprep.subr.mxu0 0.0
  %3999 = vmatpush1.msra.mxu0 0.0
  %4000 = vmatprep.subr.mxu0 0.0
  %4001 = vmatpush1.msra.mxu0 0.0
  %4002 = vmatprep.subr.mxu0 0.0
  %4003 = vmatpush1.msra.mxu0 0.0
  %4004 = vmatprep.subr.mxu0 0.0
  %4005 = vmatpush1.msra.mxu0 0.0
  %4006 = vmatprep.subr.mxu0 0.0
  %4007 = vmatpush1.msra.mxu0 0.0
  %4008 = vmatprep.subr.mxu0 0.0
  %4009 = vmatpush1.msra.mxu0 0.0
  %4010 = vmatprep.subr.mxu0 0.0
  %4011 = vmatpush1.msra.mxu0 0.0
  %4012 = vmatprep.subr.mxu0 0.0
  %4013 = vmatpush1.msra.mxu0 0.0
  %4014 = vmatprep.subr.mxu0 0.0
  %4015 = vmatpush1.msra.mxu0 0.0
  %4016 = vmatprep.subr.mxu0 0.0
  %4017 = vmatpush1.msra.mxu0 0.0
  %4018 = vmatprep.subr.mxu0 0.0
  %4019 = vmatpush1.msra.mxu0 0.0
  %4020 = vmatprep.subr.mxu0 0.0
  %4021 = vmatpush1.msra.mxu0 0.0
  %4022 = vmatprep.subr.mxu0 0.0
  %4023 = vmatpush1.msra.mxu0 0.0
  %4024 = vmatprep.subr.mxu0 0.0
  %4025 = vmatpush1.msra.mxu0 0.0
  %4026 = vmatprep.mubr.f32.mxu0 0.0
  %4027 = vmatmul.mubr.f32.gmra.mrb[0].mxu0 %v3957
  %v4028 = vpop.f32.mrb[0].mxu0
  %v4029 = vadd.f32 %v3955, %v4028
  %v4030 = vpop.f32.mrb[0].mxu0
  %4031 = vmatprep.mubr.f32.mxu0 0.0
  %4032 = vmatmul.mubr.f32.gmra.mrb[0].mxu0 %v3960
  %v4033 = vpop.f32.mrb[0].mxu0
  %v4034 = vadd.f32 %v3955, %v4033
  %v4035 = vpop.f32.mrb[0].mxu0
  %4036 = vdwg.mxu0
  %4037 = vst [vmem:[%s6] sm:$0xff] %v4029
  %4038 = vst [vmem:[%s6 + $0x8] sm:$0x3] %v4034
  // Predicated region
  $region26: #{maml_forward.1} parent=0 // pred_check
    _
  $region27: #{maml_forward.1} parent=0 // pred_check_branch
    %4040 = sbr.rel (0) target = $region29
  $region28: #{maml_forward.1} parent=0 // pred_region
    _
  $region29: #{maml_forward.1} parent=0 // pred_fallthru
    _
  // Predicated region
  $region30: #{maml_forward.1} parent=0 // pred_check
    _
  $region31: #{maml_forward.1} parent=0 // pred_check_branch
    %4042 = sbr.rel (0) target = $region33
  $region32: #{maml_forward.1} parent=0 // pred_region
    _
  $region33: #{maml_forward.1} parent=0 // pred_fallthru
    _

</llo_original>
